<compile_context>
chip_gen: v7x
topology: tpu7x:2x2x1
jax: 0.10.0
libtpu: 0.0.40
codegen_flags: <defaults>
</compile_context>

<pallas_src>
import functools

import jax
import jax.numpy as jnp
from jax import lax
from jax.experimental import pallas as pl
from jax.experimental.pallas import tpu as pltpu

BN_EPS = 1e-5      # nn.BatchNorm2d default eps
_LANES = 128       # lane width; every channel dim is padded to a multiple
_LPAD = 16         # left halo width of the padded VMEM image (bf16 sublane tile)


def _round_up(n, m):
    return ((n + m - 1) // m) * m


@functools.lru_cache(maxsize=None)
def _vmem_limit_bytes():
    """Scoped-VMEM cap: near physical capacity (v5e/v6e 128 MiB, v7x 64 MiB)."""
    try:
        info = pltpu.get_tpu_info()
        cap = int(getattr(info, "vmem_capacity_bytes", 0) or 0)
        if cap > 0:
            return int(min(cap - 8 * 1024 * 1024, 112 * 1024 * 1024))
    except Exception:
        pass
    return 48 * 1024 * 1024


# --------------------------------------------------------------------------
# Kernel 1: fused [previous layer's BN scale/shift + ReLU] -> zero-pad ->
# im2col -> Conv2d(3x3, stride=1, pad=1) for one image per grid step.  Emits
# the raw (pre-BN) conv output plus per-image per-channel sum / sum-of-squares
# so the *next* kernel can apply this layer's training-mode BatchNorm.
# --------------------------------------------------------------------------
def _conv_block_kernel(x_ref, scale_ref, shift_ref, w_ref,
                       raw_ref, s1_ref, s2_ref,
                       xpad_ref, col_ref,
                       *, H, W, Cin, apply_act):
    # x_ref     : (1, H*W, Cin)        raw (pre-BN) activation of previous layer
    # scale_ref : (1, Cin) f32         prev layer's gamma * rsqrt(var + eps)
    # shift_ref : (1, Cin) f32         prev layer's beta - mean * scale
    # w_ref     : (9*Cin, Cout) bf16   im2col-packed conv weights
    # raw_ref   : (1, H*W, Cout)       this layer's raw conv output (pre-BN)
    # s1_ref    : (1, 1, Cout) f32     per-image channel sums of raw output
    # s2_ref    : (1, 1, Cout) f32     per-image channel sums of squares
    # xpad_ref  : (H+2, W+2*_LPAD, Cin) bf16  zero-padded activation (VMEM)
    # col_ref   : (H, W, 9*Cin) bf16   im2col buffer (VMEM)
    hw = H * W

    # Previous layer's BN + ReLU in f32, one cast to the matmul dtype.
    x = x_ref[0].astype(jnp.float32)                        # (HW, Cin)
    y = x * scale_ref[...] + shift_ref[...]
    if apply_act:
        y = jnp.maximum(y, 0.0)
    y = y.reshape(H, W, Cin).astype(xpad_ref.dtype)

    # Halo-only zero fill (the interior is fully overwritten right after, so
    # this is safe when the scratch is reused across megacore grid shards).
    zrow = jnp.zeros((1, W + 2 * _LPAD, Cin), xpad_ref.dtype)
    xpad_ref[pl.ds(0, 1), :, :] = zrow
    xpad_ref[pl.ds(H + 1, 1), :, :] = zrow
    zcol = jnp.zeros((H, _LPAD, Cin), xpad_ref.dtype)
    xpad_ref[pl.ds(1, H), pl.ds(0, _LPAD), :] = zcol
    xpad_ref[pl.ds(1, H), pl.ds(_LPAD + W, _LPAD), :] = zcol
    xpad_ref[pl.ds(1, H), pl.ds(_LPAD, W), :] = y

    # im2col: tap k = 3*dy+dx occupies the aligned lane block
    # [k*Cin, (k+1)*Cin) of col_ref; 9 direct 3D shifted copies, no reshapes.
    for k in range(9):
        dy, dx = k // 3, k % 3
        col_ref[:, :, pl.ds(k * Cin, Cin)] = \
            xpad_ref[pl.ds(dy, H), pl.ds(_LPAD - 1 + dx, W), :]

    # Single MXU matmul with K = 9*Cin (bf16 x bf16 -> f32).  Conv bias is
    # intentionally omitted (cancelled by training-mode BN mean subtraction).
    col = col_ref[...].reshape(hw, 9 * Cin)
    acc = jnp.dot(col, w_ref[...], preferred_element_type=jnp.float32)

    # Fused epilogue: raw store + BN partial statistics in one pass over acc.
    raw_ref[0] = acc.astype(raw_ref.dtype)
    s1_ref[0] = jnp.sum(acc, axis=0, keepdims=True)
    s2_ref[0] = jnp.sum(acc * acc, axis=0, keepdims=True)


def conv3x3_block(x_raw, scale, shift, w2d, *, H, W, apply_act, out_dtype):
    """One conv block.  Returns (raw_out (N,HW,Cout), sum, sum_sq)."""
    N, hw, Cin = x_raw.shape
    assert hw == H * W
    K, Cout = w2d.shape
    assert K == 9 * Cin
    kernel = functools.partial(_conv_block_kernel, H=H, W=W, Cin=Cin,
                               apply_act=apply_act)
    return pl.pallas_call(
        kernel,
        out_shape=(
            jax.ShapeDtypeStruct((N, hw, Cout), out_dtype),
            jax.ShapeDtypeStruct((N, 1, Cout), jnp.float32),
            jax.ShapeDtypeStruct((N, 1, Cout), jnp.float32),
        ),
        grid_spec=pltpu.PrefetchScalarGridSpec(
            num_scalar_prefetch=0,
            grid=(N,),                                  # one image per grid step
            in_specs=[
                pl.BlockSpec((1, hw, Cin), lambda n: (n, 0, 0)),
                pl.BlockSpec((1, Cin), lambda n: (0, 0)),
                pl.BlockSpec((1, Cin), lambda n: (0, 0)),
                pl.BlockSpec((K, Cout), lambda n: (0, 0)),
            ],
            out_specs=(
                pl.BlockSpec((1, hw, Cout), lambda n: (n, 0, 0)),
                pl.BlockSpec((1, 1, Cout), lambda n: (n, 0, 0)),
                pl.BlockSpec((1, 1, Cout), lambda n: (n, 0, 0)),
            ),
            scratch_shapes=[
                pltpu.VMEM((H + 2, W + 2 * _LPAD, Cin), w2d.dtype),
                pltpu.VMEM((H, W, 9 * Cin), w2d.dtype),
            ],
        ),
        compiler_params=pltpu.CompilerParams(
            dimension_semantics=("parallel",),          # megacore splits batch
            vmem_limit_bytes=_vmem_limit_bytes()),
    )(x_raw, scale, shift, w2d)


def _bn_affine(s1, s2, gamma, beta, count, eps=BN_EPS):
    """Collapse training-mode BatchNorm to per-channel scale/shift (O(C) work,
    done in plain JAX between the two kernel passes)."""
    total1 = jnp.sum(s1, axis=(0, 1))                       # (Cout,)
    total2 = jnp.sum(s2, axis=(0, 1))
    mean = total1 / count
    var = jnp.maximum(total2 / count - mean * mean, 0.0)    # biased variance
    scale = gamma * lax.rsqrt(var + eps)
    shift = beta - mean * scale
    return (scale.reshape(1, -1).astype(jnp.float32),
            shift.reshape(1, -1).astype(jnp.float32))


# --------------------------------------------------------------------------
# Kernel 2: last block's BatchNorm + ReLU fused with max_pool2d(2, 2) and
# PyTorch-compatible flat indices (h*W + w; strict '>' scan => first candidate
# wins ties, matching torch CPU).  The 2x2 window is exposed by a free
# wrapper-side view (N, Ho, 2, Wo, 2*C): no strided ref loads — the four
# candidates are plain integer / aligned lane slices of one block load.
# Assumes H and W even (no ceil_mode), like the reference usage.
# --------------------------------------------------------------------------
def _bn_relu_pool_kernel(x_ref, scale_ref, shift_ref, o_ref, i_ref, *, H, W, C):
    # x_ref : (1, Ho, 2, Wo, 2*C)  last raw conv output, 2x2 window view
    # o_ref : (1, Ho, Wo, C) f32   pooled values
    # i_ref : (1, Ho, Wo, C) i32   flat spatial indices into the (H, W) plane
    Ho, Wo = H // 2, W // 2
    scale = scale_ref[...].reshape(1, 1, C)                 # hoisted out of loop
    shift = shift_ref[...].reshape(1, 1, C)
    x = x_ref[0].astype(jnp.float32)                        # (Ho, 2, Wo, 2*C)

    row = 2 * lax.broadcasted_iota(jnp.int32, (Ho, Wo, C), 0)
    col = 2 * lax.broadcasted_iota(jnp.int32, (Ho, Wo, C), 1)
    base = row * W + col

    best_v = None
    best_i = None
    for k in range(4):                                # window order (0,0)..(1,1)
        dy, dx = k // 2, k % 2
        cand = x[:, dy, :, dx * C:(dx + 1) * C]       # (Ho, Wo, C), aligned lanes
        v = jnp.maximum(cand * scale + shift, 0.0)    # this layer's BN + ReLU
        idx = base + dy * W + dx
        if k == 0:
            best_v, best_i = v, idx
        else:
            take = v > best_v                         # strict '>': first wins ties
            best_i = jnp.where(take, idx, best_i)
            best_v = jnp.where(take, v, best_v)

    o_ref[0] = best_v
    i_ref[0] = best_i


def bn_relu_pool(raw, scale, shift, *, H, W):
    N, hw, C = raw.shape
    assert hw == H * W
    Ho, Wo = H // 2, W // 2
    # Free row-major-compatible view: (h, w, c) -> (ho, r, wo, c_in_pair*C + c).
    x_view = raw.reshape(N, Ho, 2, Wo, 2 * C)
    kernel = functools.partial(_bn_relu_pool_kernel, H=H, W=W, C=C)
    return pl.pallas_call(
        kernel,
        out_shape=(
            jax.ShapeDtypeStruct((N, Ho, Wo, C), jnp.float32),
            jax.ShapeDtypeStruct((N, Ho, Wo, C), jnp.int32),
        ),
        grid_spec=pltpu.PrefetchScalarGridSpec(
            num_scalar_prefetch=0,
            grid=(N,),
            in_specs=[
                pl.BlockSpec((1, Ho, 2, Wo, 2 * C), lambda n: (n, 0, 0, 0, 0)),
                pl.BlockSpec((1, C), lambda n: (0, 0)),
                pl.BlockSpec((1, C), lambda n: (0, 0)),
            ],
            out_specs=(
                pl.BlockSpec((1, Ho, Wo, C), lambda n: (n, 0, 0, 0)),
                pl.BlockSpec((1, Ho, Wo, C), lambda n: (n, 0, 0, 0)),
            ),
        ),
        compiler_params=pltpu.CompilerParams(
            dimension_semantics=("parallel",),
            vmem_limit_bytes=_vmem_limit_bytes()),
    )(x_view, scale, shift)


# --------------------------------------------------------------------------
# Parameter init (deterministic, synthetic) and full forward pass.
# --------------------------------------------------------------------------
def init_params(key, n_in_feat, n_out_feat, n_blocks=2):
    channels = [n_in_feat] + [n_out_feat] * n_blocks
    params = []
    for i in range(n_blocks):
        key, k1, k2, k3, k4 = jax.random.split(key, 5)
        cin, cout = channels[i], channels[i + 1]
        w = 0.1 * jax.random.normal(k1, (3, 3, cin, cout), jnp.float32)   # HWIO
        # Conv bias: kept as a parameter for parity with nn.Conv2d but unused
        # by the kernels (training-mode BatchNorm cancels it exactly).
        # TODO(synk): eval-mode BN (running stats) would need the bias back.
        b = 0.1 * jax.random.normal(k2, (cout,), jnp.float32)
        gamma = 1.0 + 0.1 * jax.random.normal(k3, (cout,), jnp.float32)
        beta = 0.1 * jax.random.normal(k4, (cout,), jnp.float32)
        params.append((w, b, gamma, beta))
    return params


def encoder_forward(x_nchw, params, *, compute_dtype=jnp.bfloat16):
    """Mirrors _Encoder.forward: returns ((pooled, indices), output_size)."""
    N, Cin0, H, W = x_nchw.shape
    count = N * H * W

    # NCHW -> NHWC -> (N, H*W, C): channels on the lane axis, lane-padded.
    cp_in = _round_up(Cin0, _LANES)
    raw = jnp.transpose(x_nchw, (0, 2, 3, 1)).reshape(N, H * W, Cin0)
    raw = jnp.pad(raw, ((0, 0), (0, 0), (0, cp_in - Cin0))).astype(compute_dtype)

    scale = jnp.ones((1, cp_in), jnp.float32)       # identity "prev BN" for block 0
    shift = jnp.zeros((1, cp_in), jnp.float32)
    apply_act = False

    for (w, _b, gamma, beta) in params:
        cin, cout = w.shape[2], w.shape[3]
        cp_in = _round_up(cin, _LANES)
        cp_out = _round_up(cout, _LANES)
        assert raw.shape[-1] == cp_in
        # Zero-pad weights to lane-multiples and pack for im2col (K = 9*Cin).
        wp = jnp.zeros((3, 3, cp_in, cp_out), jnp.float32)
        wp = wp.at[:, :, :cin, :cout].set(w)
        w2d = wp.reshape(9 * cp_in, cp_out).astype(compute_dtype)

        raw, s1, s2 = conv3x3_block(
            raw, scale, shift, w2d,
            H=H, W=W, apply_act=apply_act, out_dtype=compute_dtype)

        # Padded channels: gamma=1 / beta=0 -> post-BN+ReLU value stays 0.
        gamma_p = jnp.concatenate(
            [gamma, jnp.ones((cp_out - cout,), gamma.dtype)]) if cp_out > cout else gamma
        beta_p = jnp.concatenate(
            [beta, jnp.zeros((cp_out - cout,), beta.dtype)]) if cp_out > cout else beta
        scale, shift = _bn_affine(s1, s2, gamma_p, beta_p, count)
        apply_act = True

    cout = params[-1][0].shape[-1]
    output_size = (N, cout, H, W)                   # torch `output.size()` (pre-pool)

    # Last block's BN + ReLU is fused into the pool kernel.
    pooled_p, indices_p = bn_relu_pool(raw, scale, shift, H=H, W=W)

    # Drop channel padding; NHWC -> NCHW to match PyTorch.
    pooled = jnp.transpose(pooled_p[..., :cout], (0, 3, 1, 2))
    indices = jnp.transpose(indices_p[..., :cout], (0, 3, 1, 2))
    # TODO(synk): PyTorch returns int64 pooling indices; int32 is used here.
    return (pooled, indices), output_size


# --------------------------------------------------------------------------
# Pure-JAX f32 reference (for the in-script self-check only).
# --------------------------------------------------------------------------
def encoder_reference(x_nchw, params, eps=BN_EPS):
    x = jnp.transpose(x_nchw, (0, 2, 3, 1)).astype(jnp.float32)
    for (w, b, gamma, beta) in params:
        y = lax.conv_general_dilated(
            x, w, window_strides=(1, 1), padding=((1, 1), (1, 1)),
            dimension_numbers=("NHWC", "HWIO", "NHWC"))
        y = y + b.reshape(1, 1, 1, -1)
        mean = jnp.mean(y, axis=(0, 1, 2))
        var = jnp.var(y, axis=(0, 1, 2))
        y = (y - mean) * (gamma * lax.rsqrt(var + eps)) + beta
        x = jnp.maximum(y, 0.0)
    N, H, W, C = x.shape
    pooled = x.reshape(N, H // 2, 2, W // 2, 2, C).max(axis=(2, 4))
    return jnp.transpose(pooled, (0, 3, 1, 2)), jnp.transpose(x, (0, 3, 1, 2))


if __name__ == "__main__":
    N, Cin, H, W = 2, 4, 16, 16
    n_out_feat, n_blocks = 8, 2

    key = jax.random.PRNGKey(0)
    kx, kp = jax.random.split(key)
    x = jax.random.normal(kx, (N, Cin, H, W), jnp.float32)
    params = init_params(kp, Cin, n_out_feat, n_blocks)

    (pooled, indices), out_size = encoder_forward(x, params)
    jax.block_until_ready((pooled, indices))

    Ho, Wo = H // 2, W // 2
    assert pooled.shape == (N, n_out_feat, Ho, Wo)
    assert indices.shape == (N, n_out_feat, Ho, Wo)
    assert out_size == (N, n_out_feat, H, W)

    # Self-check vs. the f32 reference (kernels use bf16 matmuls -> loose tol).
    ref_pooled, ref_act = encoder_reference(x, params)
    assert bool(jnp.allclose(pooled, ref_pooled, rtol=1e-1, atol=1.5e-1))
    # Each index lies inside its own 2x2 window (exact, tie-independent).
    r, c = indices // W, indices % W
    ho = jnp.arange(Ho).reshape(1, 1, Ho, 1)
    wo = jnp.arange(Wo).reshape(1, 1, 1, Wo)
    assert bool(jnp.all((r // 2 == ho) & (c // 2 == wo)))
    # The activation value at the returned index matches the pooled value.
    gathered = jnp.take_along_axis(
        ref_act.reshape(N, n_out_feat, H * W),
        indices.reshape(N, n_out_feat, Ho * Wo), axis=2)
    assert bool(jnp.allclose(gathered.reshape(pooled.shape), pooled,
                             rtol=1e-1, atol=1.5e-1))

    print("KERNEL_OK")
</pallas_src>

<mosaic_0001>
module attributes {stable_mosaic.version = 11 : i64} {
  func.func @_conv_block_kernel(%arg0: i32, %arg1: memref<1x256x128xbf16, #tpu.memory_space<vmem>>, %arg2: memref<1x128xf32, #tpu.memory_space<vmem>>, %arg3: memref<1x128xf32, #tpu.memory_space<vmem>>, %arg4: memref<1152x128xbf16, #tpu.memory_space<vmem>>, %arg5: memref<1x256x128xbf16, #tpu.memory_space<vmem>>, %arg6: memref<1x1x128xf32, #tpu.memory_space<vmem>>, %arg7: memref<1x1x128xf32, #tpu.memory_space<vmem>>, %arg8: memref<18x48x128xbf16, #tpu.memory_space<vmem>>, %arg9: memref<16x16x1152xbf16, #tpu.memory_space<vmem>>) attributes {dimension_semantics = [#tpu.dimension_semantics<parallel>], iteration_bounds = array<i64: 2>, scalar_prefetch = 0 : i64, scratch_operands = 2 : i64, tpu.core_type = #tpu.core_type<tc>, window_params = [{transform_indices = @transform_0, window_bounds = array<i64: 1, 256, 128>}, {pipeline_mode = #tpu.pipeline_mode<synchronous>, transform_indices = @transform_1, window_bounds = array<i64: 1, 128>}, {pipeline_mode = #tpu.pipeline_mode<synchronous>, transform_indices = @transform_2, window_bounds = array<i64: 1, 128>}, {pipeline_mode = #tpu.pipeline_mode<synchronous>, transform_indices = @transform_3, window_bounds = array<i64: 1152, 128>}, {transform_indices = @transform_4, window_bounds = array<i64: 1, 256, 128>}, {transform_indices = @transform_5, window_bounds = array<i64: 1, 1, 128>}, {transform_indices = @transform_6, window_bounds = array<i64: 1, 1, 128>}]} {
    %c0 = arith.constant 0 : index
    %c0_0 = arith.constant 0 : index
    %c0_1 = arith.constant 0 : index
    %0 = vector.load %arg1[%c0, %c0_0, %c0_1] : memref<1x256x128xbf16, #tpu.memory_space<vmem>>, vector<1x256x128xbf16>
    %1 = vector.shape_cast %0 : vector<1x256x128xbf16> to vector<256x128xbf16>
    %2 = arith.extf %1 : vector<256x128xbf16> to vector<256x128xf32>
    %c0_2 = arith.constant 0 : index
    %c0_3 = arith.constant 0 : index
    %3 = vector.load %arg2[%c0_2, %c0_3] : memref<1x128xf32, #tpu.memory_space<vmem>>, vector<1x128xf32>
    %4 = vector.broadcast %3 : vector<1x128xf32> to vector<256x128xf32>
    %5 = arith.mulf %2, %4 : vector<256x128xf32>
    %c0_4 = arith.constant 0 : index
    %c0_5 = arith.constant 0 : index
    %6 = vector.load %arg3[%c0_4, %c0_5] : memref<1x128xf32, #tpu.memory_space<vmem>>, vector<1x128xf32>
    %7 = vector.broadcast %6 : vector<1x128xf32> to vector<256x128xf32>
    %8 = arith.addf %5, %7 : vector<256x128xf32>
    %9 = vector.shape_cast %8 : vector<256x128xf32> to vector<16x16x128xf32>
    %10 = arith.truncf %9 : vector<16x16x128xf32> to vector<16x16x128xbf16>
    %cst = arith.constant 0.000000e+00 : bf16
    %11 = vector.broadcast %cst : bf16 to vector<1x48x128xbf16>
    %c0_6 = arith.constant 0 : index
    %c0_7 = arith.constant 0 : index
    %c0_8 = arith.constant 0 : index
    %12 = vector.load %arg8[%c0_6, %c0_7, %c0_8] : memref<18x48x128xbf16, #tpu.memory_space<vmem>>, vector<1x48x128xbf16>
    tpu.vector_store %arg8[%c0_6, %c0_7, %c0_8], %11 {strides = array<i32>} : memref<18x48x128xbf16, #tpu.memory_space<vmem>>, vector<1x48x128xbf16>,
    %c17 = arith.constant 17 : index
    %c0_9 = arith.constant 0 : index
    %c0_10 = arith.constant 0 : index
    %13 = vector.load %arg8[%c17, %c0_9, %c0_10] : memref<18x48x128xbf16, #tpu.memory_space<vmem>>, vector<1x48x128xbf16>
    tpu.vector_store %arg8[%c17, %c0_9, %c0_10], %11 {strides = array<i32>} : memref<18x48x128xbf16, #tpu.memory_space<vmem>>, vector<1x48x128xbf16>,
    %cst_11 = arith.constant 0.000000e+00 : bf16
    %14 = vector.broadcast %cst_11 : bf16 to vector<16x16x128xbf16>
    %c1 = arith.constant 1 : index
    %c0_12 = arith.constant 0 : index
    %c0_13 = arith.constant 0 : index
    %15 = vector.load %arg8[%c1, %c0_12, %c0_13] : memref<18x48x128xbf16, #tpu.memory_space<vmem>>, vector<16x16x128xbf16>
    tpu.vector_store %arg8[%c1, %c0_12, %c0_13], %14 {strides = array<i32>} : memref<18x48x128xbf16, #tpu.memory_space<vmem>>, vector<16x16x128xbf16>,
    %c1_14 = arith.constant 1 : index
    %c32 = arith.constant 32 : index
    %c0_15 = arith.constant 0 : index
    %16 = vector.load %arg8[%c1_14, %c32, %c0_15] : memref<18x48x128xbf16, #tpu.memory_space<vmem>>, vector<16x16x128xbf16>
    tpu.vector_store %arg8[%c1_14, %c32, %c0_15], %14 {strides = array<i32>} : memref<18x48x128xbf16, #tpu.memory_space<vmem>>, vector<16x16x128xbf16>,
    %c1_16 = arith.constant 1 : index
    %c16 = arith.constant 16 : index
    %c0_17 = arith.constant 0 : index
    %17 = vector.load %arg8[%c1_16, %c16, %c0_17] : memref<18x48x128xbf16, #tpu.memory_space<vmem>>, vector<16x16x128xbf16>
    tpu.vector_store %arg8[%c1_16, %c16, %c0_17], %10 {strides = array<i32>} : memref<18x48x128xbf16, #tpu.memory_space<vmem>>, vector<16x16x128xbf16>,
    %c0_18 = arith.constant 0 : index
    %c15 = arith.constant 15 : index
    %c0_19 = arith.constant 0 : index
    %18 = vector.load %arg8[%c0_18, %c15, %c0_19] : memref<18x48x128xbf16, #tpu.memory_space<vmem>>, vector<16x16x128xbf16>
    %c0_20 = arith.constant 0 : index
    %c0_21 = arith.constant 0 : index
    %c0_22 = arith.constant 0 : index
    %19 = vector.load %arg9[%c0_20, %c0_21, %c0_22] : memref<16x16x1152xbf16, #tpu.memory_space<vmem>>, vector<16x16x128xbf16>
    tpu.vector_store %arg9[%c0_20, %c0_21, %c0_22], %18 {strides = array<i32>} : memref<16x16x1152xbf16, #tpu.memory_space<vmem>>, vector<16x16x128xbf16>,
    %c0_23 = arith.constant 0 : index
    %c16_24 = arith.constant 16 : index
    %c0_25 = arith.constant 0 : index
    %20 = vector.load %arg8[%c0_23, %c16_24, %c0_25] : memref<18x48x128xbf16, #tpu.memory_space<vmem>>, vector<16x16x128xbf16>
    %c0_26 = arith.constant 0 : index
    %c0_27 = arith.constant 0 : index
    %c128 = arith.constant 128 : index
    %21 = vector.load %arg9[%c0_26, %c0_27, %c128] : memref<16x16x1152xbf16, #tpu.memory_space<vmem>>, vector<16x16x128xbf16>
    tpu.vector_store %arg9[%c0_26, %c0_27, %c128], %20 {strides = array<i32>} : memref<16x16x1152xbf16, #tpu.memory_space<vmem>>, vector<16x16x128xbf16>,
    %c0_28 = arith.constant 0 : index
    %c17_29 = arith.constant 17 : index
    %c0_30 = arith.constant 0 : index
    %22 = vector.load %arg8[%c0_28, %c17_29, %c0_30] : memref<18x48x128xbf16, #tpu.memory_space<vmem>>, vector<16x16x128xbf16>
    %c0_31 = arith.constant 0 : index
    %c0_32 = arith.constant 0 : index
    %c256 = arith.constant 256 : index
    %23 = vector.load %arg9[%c0_31, %c0_32, %c256] : memref<16x16x1152xbf16, #tpu.memory_space<vmem>>, vector<16x16x128xbf16>
    tpu.vector_store %arg9[%c0_31, %c0_32, %c256], %22 {strides = array<i32>} : memref<16x16x1152xbf16, #tpu.memory_space<vmem>>, vector<16x16x128xbf16>,
    %c1_33 = arith.constant 1 : index
    %c15_34 = arith.constant 15 : index
    %c0_35 = arith.constant 0 : index
    %24 = vector.load %arg8[%c1_33, %c15_34, %c0_35] : memref<18x48x128xbf16, #tpu.memory_space<vmem>>, vector<16x16x128xbf16>
    %c0_36 = arith.constant 0 : index
    %c0_37 = arith.constant 0 : index
    %c384 = arith.constant 384 : index
    %25 = vector.load %arg9[%c0_36, %c0_37, %c384] : memref<16x16x1152xbf16, #tpu.memory_space<vmem>>, vector<16x16x128xbf16>
    tpu.vector_store %arg9[%c0_36, %c0_37, %c384], %24 {strides = array<i32>} : memref<16x16x1152xbf16, #tpu.memory_space<vmem>>, vector<16x16x128xbf16>,
    %c1_38 = arith.constant 1 : index
    %c16_39 = arith.constant 16 : index
    %c0_40 = arith.constant 0 : index
    %26 = vector.load %arg8[%c1_38, %c16_39, %c0_40] : memref<18x48x128xbf16, #tpu.memory_space<vmem>>, vector<16x16x128xbf16>
    %c0_41 = arith.constant 0 : index
    %c0_42 = arith.constant 0 : index
    %c512 = arith.constant 512 : index
    %27 = vector.load %arg9[%c0_41, %c0_42, %c512] : memref<16x16x1152xbf16, #tpu.memory_space<vmem>>, vector<16x16x128xbf16>
    tpu.vector_store %arg9[%c0_41, %c0_42, %c512], %26 {strides = array<i32>} : memref<16x16x1152xbf16, #tpu.memory_space<vmem>>, vector<16x16x128xbf16>,
    %c1_43 = arith.constant 1 : index
    %c17_44 = arith.constant 17 : index
    %c0_45 = arith.constant 0 : index
    %28 = vector.load %arg8[%c1_43, %c17_44, %c0_45] : memref<18x48x128xbf16, #tpu.memory_space<vmem>>, vector<16x16x128xbf16>
    %c0_46 = arith.constant 0 : index
    %c0_47 = arith.constant 0 : index
    %c640 = arith.constant 640 : index
    %29 = vector.load %arg9[%c0_46, %c0_47, %c640] : memref<16x16x1152xbf16, #tpu.memory_space<vmem>>, vector<16x16x128xbf16>
    tpu.vector_store %arg9[%c0_46, %c0_47, %c640], %28 {strides = array<i32>} : memref<16x16x1152xbf16, #tpu.memory_space<vmem>>, vector<16x16x128xbf16>,
    %c2 = arith.constant 2 : index
    %c15_48 = arith.constant 15 : index
    %c0_49 = arith.constant 0 : index
    %30 = vector.load %arg8[%c2, %c15_48, %c0_49] : memref<18x48x128xbf16, #tpu.memory_space<vmem>>, vector<16x16x128xbf16>
    %c0_50 = arith.constant 0 : index
    %c0_51 = arith.constant 0 : index
    %c768 = arith.constant 768 : index
    %31 = vector.load %arg9[%c0_50, %c0_51, %c768] : memref<16x16x1152xbf16, #tpu.memory_space<vmem>>, vector<16x16x128xbf16>
    tpu.vector_store %arg9[%c0_50, %c0_51, %c768], %30 {strides = array<i32>} : memref<16x16x1152xbf16, #tpu.memory_space<vmem>>, vector<16x16x128xbf16>,
    %c2_52 = arith.constant 2 : index
    %c16_53 = arith.constant 16 : index
    %c0_54 = arith.constant 0 : index
    %32 = vector.load %arg8[%c2_52, %c16_53, %c0_54] : memref<18x48x128xbf16, #tpu.memory_space<vmem>>, vector<16x16x128xbf16>
    %c0_55 = arith.constant 0 : index
    %c0_56 = arith.constant 0 : index
    %c896 = arith.constant 896 : index
    %33 = vector.load %arg9[%c0_55, %c0_56, %c896] : memref<16x16x1152xbf16, #tpu.memory_space<vmem>>, vector<16x16x128xbf16>
    tpu.vector_store %arg9[%c0_55, %c0_56, %c896], %32 {strides = array<i32>} : memref<16x16x1152xbf16, #tpu.memory_space<vmem>>, vector<16x16x128xbf16>,
    %c2_57 = arith.constant 2 : index
    %c17_58 = arith.constant 17 : index
    %c0_59 = arith.constant 0 : index
    %34 = vector.load %arg8[%c2_57, %c17_58, %c0_59] : memref<18x48x128xbf16, #tpu.memory_space<vmem>>, vector<16x16x128xbf16>
    %c0_60 = arith.constant 0 : index
    %c0_61 = arith.constant 0 : index
    %c1024 = arith.constant 1024 : index
    %35 = vector.load %arg9[%c0_60, %c0_61, %c1024] : memref<16x16x1152xbf16, #tpu.memory_space<vmem>>, vector<16x16x128xbf16>
    tpu.vector_store %arg9[%c0_60, %c0_61, %c1024], %34 {strides = array<i32>} : memref<16x16x1152xbf16, #tpu.memory_space<vmem>>, vector<16x16x128xbf16>,
    %c0_62 = arith.constant 0 : index
    %c0_63 = arith.constant 0 : index
    %c0_64 = arith.constant 0 : index
    %36 = vector.load %arg9[%c0_62, %c0_63, %c0_64] : memref<16x16x1152xbf16, #tpu.memory_space<vmem>>, vector<16x16x1152xbf16>
    %37 = vector.shape_cast %36 : vector<16x16x1152xbf16> to vector<256x1152xbf16>
    %c0_65 = arith.constant 0 : index
    %c0_66 = arith.constant 0 : index
    %38 = vector.load %arg4[%c0_65, %c0_66] : memref<1152x128xbf16, #tpu.memory_space<vmem>>, vector<1152x128xbf16>
    %cst_67 = arith.constant dense<0.000000e+00> : vector<256x128xf32>
    %39 = tpu.matmul %37, %38, %cst_67 {dimension_numbers = #tpu.dot_dimension_numbers<[1], [0], [0], [1], [0, 0, 1, 1], [], []>} : vector<256x1152xbf16>, vector<1152x128xbf16>, vector<256x128xf32> -> vector<256x128xf32>
    %40 = arith.truncf %39 : vector<256x128xf32> to vector<256x128xbf16>
    %c0_68 = arith.constant 0 : index
    %c0_69 = arith.constant 0 : index
    %c0_70 = arith.constant 0 : index
    %41 = vector.load %arg5[%c0_68, %c0_69, %c0_70] : memref<1x256x128xbf16, #tpu.memory_space<vmem>>, vector<1x256x128xbf16>
    %42 = vector.shape_cast %41 : vector<1x256x128xbf16> to vector<256x128xbf16>
    %43 = vector.shape_cast %40 : vector<256x128xbf16> to vector<1x256x128xbf16>
    tpu.vector_store %arg5[%c0_68, %c0_69, %c0_70], %43 {strides = array<i32>} : memref<1x256x128xbf16, #tpu.memory_space<vmem>>, vector<1x256x128xbf16>,
    %cst_71 = arith.constant dense<0.000000e+00> : vector<128xf32>
    %44 = vector.multi_reduction <add>, %39, %cst_71 [0] : vector<256x128xf32> to vector<128xf32>
    %45 = vector.shape_cast %44 : vector<128xf32> to vector<1x128xf32>
    %c0_72 = arith.constant 0 : index
    %c0_73 = arith.constant 0 : index
    %c0_74 = arith.constant 0 : index
    %46 = vector.load %arg6[%c0_72, %c0_73, %c0_74] : memref<1x1x128xf32, #tpu.memory_space<vmem>>, vector<1x1x128xf32>
    %47 = vector.shape_cast %46 : vector<1x1x128xf32> to vector<1x128xf32>
    %48 = vector.shape_cast %45 : vector<1x128xf32> to vector<1x1x128xf32>
    tpu.vector_store %arg6[%c0_72, %c0_73, %c0_74], %48 {strides = array<i32>} : memref<1x1x128xf32, #tpu.memory_space<vmem>>, vector<1x1x128xf32>,
    %49 = arith.mulf %39, %39 : vector<256x128xf32>
    %cst_75 = arith.constant dense<0.000000e+00> : vector<128xf32>
    %50 = vector.multi_reduction <add>, %49, %cst_75 [0] : vector<256x128xf32> to vector<128xf32>
    %51 = vector.shape_cast %50 : vector<128xf32> to vector<1x128xf32>
    %c0_76 = arith.constant 0 : index
    %c0_77 = arith.constant 0 : index
    %c0_78 = arith.constant 0 : index
    %52 = vector.load %arg7[%c0_76, %c0_77, %c0_78] : memref<1x1x128xf32, #tpu.memory_space<vmem>>, vector<1x1x128xf32>
    %53 = vector.shape_cast %52 : vector<1x1x128xf32> to vector<1x128xf32>
    %54 = vector.shape_cast %51 : vector<1x128xf32> to vector<1x1x128xf32>
    tpu.vector_store %arg7[%c0_76, %c0_77, %c0_78], %54 {strides = array<i32>} : memref<1x1x128xf32, #tpu.memory_space<vmem>>, vector<1x1x128xf32>,
    return
  }
  func.func @transform_0(%arg0: i32) -> (i32, i32, i32) {
    %c0_i32 = arith.constant 0 : i32
    %c0_i32_0 = arith.constant 0 : i32
    %c0_i32_1 = arith.constant 0 : i32
    return %arg0, %c0_i32, %c0_i32_0 : i32, i32, i32
  }
  func.func @transform_1(%arg0: i32) -> (i32, i32) {
    %c0_i32 = arith.constant 0 : i32
    %c0_i32_0 = arith.constant 0 : i32
    %c0_i32_1 = arith.constant 0 : i32
    return %c0_i32, %c0_i32_0 : i32, i32
  }
  func.func @transform_2(%arg0: i32) -> (i32, i32) {
    %c0_i32 = arith.constant 0 : i32
    %c0_i32_0 = arith.constant 0 : i32
    %c0_i32_1 = arith.constant 0 : i32
    return %c0_i32, %c0_i32_0 : i32, i32
  }
  func.func @transform_3(%arg0: i32) -> (i32, i32) {
    %c0_i32 = arith.constant 0 : i32
    %c0_i32_0 = arith.constant 0 : i32
    %c0_i32_1 = arith.constant 0 : i32
    return %c0_i32, %c0_i32_0 : i32, i32
  }
  func.func @transform_4(%arg0: i32) -> (i32, i32, i32) {
    %c0_i32 = arith.constant 0 : i32
    %c0_i32_0 = arith.constant 0 : i32
    %c0_i32_1 = arith.constant 0 : i32
    return %arg0, %c0_i32, %c0_i32_0 : i32, i32, i32
  }
  func.func @transform_5(%arg0: i32) -> (i32, i32, i32) {
    %c0_i32 = arith.constant 0 : i32
    %c0_i32_0 = arith.constant 0 : i32
    %c0_i32_1 = arith.constant 0 : i32
    return %arg0, %c0_i32, %c0_i32_0 : i32, i32, i32
  }
  func.func @transform_6(%arg0: i32) -> (i32, i32, i32) {
    %c0_i32 = arith.constant 0 : i32
    %c0_i32_0 = arith.constant 0 : i32
    %c0_i32_1 = arith.constant 0 : i32
    return %arg0, %c0_i32, %c0_i32_0 : i32, i32, i32
  }
}

</mosaic_0001>

<llo_original>
// kernel: tpu_custom_call.1
$region0: #{tpu_custom_call.1}
  #allocation0 [shape = 'u32[]', space=smem, size = 0x4, offset = 0x4, fixed_abs, tag = 'smem constant byte address 0x4 - core index']
  #allocation1 [shape = 'u32[144,128]{1,0:T(1,128)}', space=vmem, size = 0x12000, scoped, tag = 'internal scratch']
  #allocation2 [shape = 'bf16[18,48,128]{2,1,0:T(16,128)(2,1)}', space=vmem, size = 0x36000, scoped, tag = 'scratch operand']
  #allocation3 [shape = 'bf16[16,16,1152]{2,1,0:T(16,128)(2,1)}', space=vmem, size = 0x90000, scoped, tag = 'scratch operand']
  %s0 = inlined_call_operand.hbm [shape: bf16[2,256,128], index: 0, kind: input, shape index: {}]
  %s1 = inlined_call_operand.vmem [shape: f32[1,128], index: 1, kind: input, shape index: {}]
  %s2 = inlined_call_operand.vmem [shape: f32[1,128], index: 2, kind: input, shape index: {}]
  %s3 = inlined_call_operand.hbm [shape: bf16[1152,128], index: 3, kind: input, shape index: {}]
  %s4 = inlined_call_operand.hbm [shape: bf16[2,256,128], index: 4, kind: output, shape index: {0}]
  %s5 = inlined_call_operand.hbm [shape: f32[2,1,128], index: 5, kind: output, shape index: {1}]
  %s6 = inlined_call_operand.hbm [shape: f32[2,1,128], index: 6, kind: output, shape index: {2}]
  %7 = xla_tuple %s4, %s5, %s6
  %s8 = sld [smem:[#allocation0]]
  $region73: #{tpu_custom_call.1} parent=0
    _
  %s10 = ssub.s32 1, %s8
  %s11 = scalar_select 0, %s10, %s8
  $region1: #{tpu_custom_call.1} parent=0
    #allocation4 [shape = 'u8[131072]{0}', space=vmem, size = 0x20000, scoped, tag = 'input window, operand 0']
    #allocation5 [shape = 's32[2]{0}', space=sflag, size = 0x8, scoped, tag = 'scoped memory for tpu_custom_call.1']
    #allocation6 [shape = 's32[2]{0}', space=sflag, size = 0x8, scoped, tag = 'scoped memory for tpu_custom_call.1']
    #allocation7 [shape = 'u8[294912]{0}', space=vmem, size = 0x48000, scoped, tag = 'input window, operand 3, single buffered']
    #allocation8 [shape = 's32[1]{0}', space=sflag, size = 0x4, scoped, tag = 'scoped memory for tpu_custom_call.1']
    #allocation9 [shape = 'u8[131072]{0}', space=vmem, size = 0x20000, scoped, tag = 'output window, operand 0']
    #allocation10 [shape = 'u8[1024]{0}', space=vmem, size = 0x400, scoped, tag = 'output window, operand 1']
    #allocation11 [shape = 's32[2]{0}', space=sflag, size = 0x8, scoped, tag = 'scoped memory for tpu_custom_call.1']
    #allocation12 [shape = 'u8[1024]{0}', space=vmem, size = 0x400, scoped, tag = 'output window, operand 2']
    %12 = vsyncpa [#allocation5], 0
    %s13 = scalar_lea.sflag [#allocation5], 1
    %14 = vsyncpa %s13, 0
    %15 = vsyncpa [#allocation8], 0
    %16 = vsyncpa [#allocation6], 0
    %s17 = scalar_lea.sflag [#allocation6], 1
    %18 = vsyncpa %s17, 0
    %19 = vsyncpa [#allocation11], 0
    %s20 = scalar_lea.sflag [#allocation11], 1
    %21 = vsyncpa %s20, 0
    loop: start=0, step=1, limit=4
    $region2: #{tpu_custom_call.1} parent=1 // loop_pre_header
      _
    $region3: #{tpu_custom_call.1} parent=1 // loop_header
      %s23 = sphi 0, %s27
      %p24 = scmp.ge.s32.totalorder %s23, 4
      %s33 = sphi 0, %s35
      %s36 = sphi 0, %s33
      %s37 = sphi 0, %s36
      %s53 = sphi 0, %s37
      %s57 = sphi 0, %s57
      %s59 = sphi 0, %s57
      %s60 = sphi 0, %s59
      %s74 = sphi 0, %s60
      %s78 = sphi 0, %s78
      %s80 = sphi 0, %s78
      %s81 = sphi 0, %s80
      %s95 = sphi 0, %s81
      %s99 = sphi 0, %s99
      %s101 = sphi 0, %s99
      %s102 = sphi 0, %s101
      %s116 = sphi 0, %s102
      %s122 = sphi 0, %s124
      %s125 = sphi 0, %s122
      %s126 = sphi 0, %s125
      %s142 = sphi 0, %s126
      %s148 = sphi 0, %s150
      %s151 = sphi 0, %s148
      %s152 = sphi 0, %s151
      %s168 = sphi 0, %s152
      %s174 = sphi 0, %s176
      %s177 = sphi 0, %s174
      %s178 = sphi 0, %s177
      %s194 = sphi 0, %s178
    $region4: #{tpu_custom_call.1} parent=1 // loop_header_branch
      %26 = sbr.rel (%p24) target = $region8
    $region5: #{tpu_custom_call.1} parent=1 // loop_body
      %s28 = ssub.s32 %s23, 1
      %s29 = ssub.s32 %s23, 2
      %s30 = sadd.s32 %s23, 1
      %s31 = ssub.s32 %s23, %s30
      %p32 = scmp.eq.s32.totalorder %s31, 0
      %s34 = sadd.s32 %s33, 1
      %s35 = scalar_select %p32, %s33, %s34
      %p38 = pneg %p32
      %p39 = scmp.eq.s32.totalorder %s23, 1
      %p40 = por %p38, %p39
      %p41 = scmp.ne.s32.totalorder %s33, %s36
      %p42 = scmp.eq.s32.totalorder %s23, 0
      %p43 = por %p41, %p42
      %p44 = scmp.ne.s32.totalorder %s33, %s36
      %p45 = scmp.eq.s32.totalorder %s28, 1
      %p46 = por %p44, %p45
      %p47 = scmp.ne.s32.totalorder %s36, %s37
      %p48 = scmp.eq.s32.totalorder %s28, 0
      %p49 = por %p47, %p48
      %p50 = scmp.ne.s32.totalorder %s36, %s37
      %p51 = scmp.eq.s32.totalorder %s29, 1
      %p52 = por %p50, %p51
      %p54 = scmp.ne.s32.totalorder %s37, %s53
      %p55 = scmp.eq.s32.totalorder %s29, 0
      %p56 = por %p54, %p55
      %s58 = sadd.s32 %s57, 1
      %p61 = scmp.eq.s32.totalorder %s23, 1
      %p62 = scmp.ne.s32.totalorder %s57, %s59
      %p63 = scmp.eq.s32.totalorder %s23, 0
      %p64 = por %p62, %p63
      %p65 = scmp.ne.s32.totalorder %s57, %s59
      %p66 = scmp.eq.s32.totalorder %s28, 1
      %p67 = por %p65, %p66
      %p68 = scmp.ne.s32.totalorder %s59, %s60
      %p69 = scmp.eq.s32.totalorder %s28, 0
      %p70 = por %p68, %p69
      %p71 = scmp.ne.s32.totalorder %s59, %s60
      %p72 = scmp.eq.s32.totalorder %s29, 1
      %p73 = por %p71, %p72
      %p75 = scmp.ne.s32.totalorder %s60, %s74
      %p76 = scmp.eq.s32.totalorder %s29, 0
      %p77 = por %p75, %p76
      %s79 = sadd.s32 %s78, 1
      %p82 = scmp.eq.s32.totalorder %s23, 1
      %p83 = scmp.ne.s32.totalorder %s78, %s80
      %p84 = scmp.eq.s32.totalorder %s23, 0
      %p85 = por %p83, %p84
      %p86 = scmp.ne.s32.totalorder %s78, %s80
      %p87 = scmp.eq.s32.totalorder %s28, 1
      %p88 = por %p86, %p87
      %p89 = scmp.ne.s32.totalorder %s80, %s81
      %p90 = scmp.eq.s32.totalorder %s28, 0
      %p91 = por %p89, %p90
      %p92 = scmp.ne.s32.totalorder %s80, %s81
      %p93 = scmp.eq.s32.totalorder %s29, 1
      %p94 = por %p92, %p93
      %p96 = scmp.ne.s32.totalorder %s81, %s95
      %p97 = scmp.eq.s32.totalorder %s29, 0
      %p98 = por %p96, %p97
      %s100 = sadd.s32 %s99, 1
      %p103 = scmp.eq.s32.totalorder %s23, 1
      %p104 = scmp.ne.s32.totalorder %s99, %s101
      %p105 = scmp.eq.s32.totalorder %s23, 0
      %p106 = por %p104, %p105
      %p107 = scmp.ne.s32.totalorder %s99, %s101
      %p108 = scmp.eq.s32.totalorder %s28, 1
      %p109 = por %p107, %p108
      %p110 = scmp.ne.s32.totalorder %s101, %s102
      %p111 = scmp.eq.s32.totalorder %s28, 0
      %p112 = por %p110, %p111
      %p113 = scmp.ne.s32.totalorder %s101, %s102
      %p114 = scmp.eq.s32.totalorder %s29, 1
      %p115 = por %p113, %p114
      %p117 = scmp.ne.s32.totalorder %s102, %s116
      %p118 = scmp.eq.s32.totalorder %s29, 0
      %p119 = por %p117, %p118
      %s120 = ssub.s32 %s23, %s30
      %p121 = scmp.eq.s32.totalorder %s120, 0
      %s123 = sadd.s32 %s122, 1
      %s124 = scalar_select %p121, %s122, %s123
      %p127 = pneg %p121
      %p128 = scmp.eq.s32.totalorder %s23, 1
      %p129 = por %p127, %p128
      %p130 = scmp.ne.s32.totalorder %s122, %s125
      %p131 = scmp.eq.s32.totalorder %s23, 0
      %p132 = por %p130, %p131
      %p133 = scmp.ne.s32.totalorder %s122, %s125
      %p134 = scmp.eq.s32.totalorder %s28, 1
      %p135 = por %p133, %p134
      %p136 = scmp.ne.s32.totalorder %s125, %s126
      %p137 = scmp.eq.s32.totalorder %s28, 0
      %p138 = por %p136, %p137
      %p139 = scmp.ne.s32.totalorder %s125, %s126
      %p140 = scmp.eq.s32.totalorder %s29, 1
      %p141 = por %p139, %p140
      %p143 = scmp.ne.s32.totalorder %s126, %s142
      %p144 = scmp.eq.s32.totalorder %s29, 0
      %p145 = por %p143, %p144
      %s146 = ssub.s32 %s23, %s30
      %p147 = scmp.eq.s32.totalorder %s146, 0
      %s149 = sadd.s32 %s148, 1
      %s150 = scalar_select %p147, %s148, %s149
      %p153 = pneg %p147
      %p154 = scmp.eq.s32.totalorder %s23, 1
      %p155 = por %p153, %p154
      %p156 = scmp.ne.s32.totalorder %s148, %s151
      %p157 = scmp.eq.s32.totalorder %s23, 0
      %p158 = por %p156, %p157
      %p159 = scmp.ne.s32.totalorder %s148, %s151
      %p160 = scmp.eq.s32.totalorder %s28, 1
      %p161 = por %p159, %p160
      %p162 = scmp.ne.s32.totalorder %s151, %s152
      %p163 = scmp.eq.s32.totalorder %s28, 0
      %p164 = por %p162, %p163
      %p165 = scmp.ne.s32.totalorder %s151, %s152
      %p166 = scmp.eq.s32.totalorder %s29, 1
      %p167 = por %p165, %p166
      %p169 = scmp.ne.s32.totalorder %s152, %s168
      %p170 = scmp.eq.s32.totalorder %s29, 0
      %p171 = por %p169, %p170
      %s172 = ssub.s32 %s23, %s30
      %p173 = scmp.eq.s32.totalorder %s172, 0
      %s175 = sadd.s32 %s174, 1
      %s176 = scalar_select %p173, %s174, %s175
      %p179 = pneg %p173
      %p180 = scmp.eq.s32.totalorder %s23, 1
      %p181 = por %p179, %p180
      %p182 = scmp.ne.s32.totalorder %s174, %s177
      %p183 = scmp.eq.s32.totalorder %s23, 0
      %p184 = por %p182, %p183
      %p185 = scmp.ne.s32.totalorder %s174, %s177
      %p186 = scmp.eq.s32.totalorder %s28, 1
      %p187 = por %p185, %p186
      %p188 = scmp.ne.s32.totalorder %s177, %s178
      %p189 = scmp.eq.s32.totalorder %s28, 0
      %p190 = por %p188, %p189
      %p191 = scmp.ne.s32.totalorder %s177, %s178
      %p192 = scmp.eq.s32.totalorder %s29, 1
      %p193 = por %p191, %p192
      %p195 = scmp.ne.s32.totalorder %s178, %s194
      %p196 = scmp.eq.s32.totalorder %s29, 0
      %p197 = por %p195, %p196
      %p198 = scmp.le.s32.totalorder 1, %s23
      %p199 = scmp.lt.s32.totalorder %s23, 3
      %p200 = pnand %p198, %p199
      %p201 = pneg %p200
      // Predicated region
      $region9: #{tpu_custom_call.1} parent=5 // pred_check
        _
      $region10: #{tpu_custom_call.1} parent=5 // pred_check_branch
        %203 = sbr.rel (%p200) target = $region12
      $region11: #{tpu_custom_call.1} parent=5 // pred_region
        %s204 = ssub.s32 %s23, 1
        // Predicated region
        $region13: #{tpu_custom_call.1} parent=11 // pred_check
          %p205 = pneg %p70
        $region14: #{tpu_custom_call.1} parent=11 // pred_check_branch
          %207 = sbr.rel (%p205) target = $region16
        $region15: #{tpu_custom_call.1} parent=11 // pred_region
          _
        $region16: #{tpu_custom_call.1} parent=11 // pred_fallthru
          _
        // Predicated region
        $region17: #{tpu_custom_call.1} parent=11 // pred_check
          %p208 = pneg %p91
        $region18: #{tpu_custom_call.1} parent=11 // pred_check_branch
          %210 = sbr.rel (%p208) target = $region20
        $region19: #{tpu_custom_call.1} parent=11 // pred_region
          _
        $region20: #{tpu_custom_call.1} parent=11 // pred_fallthru
          _
        // Predicated region
        $region21: #{tpu_custom_call.1} parent=11 // pred_check
          %p211 = pneg %p112
        $region22: #{tpu_custom_call.1} parent=11 // pred_check_branch
          %213 = sbr.rel (%p211) target = $region24
        $region23: #{tpu_custom_call.1} parent=11 // pred_region
          %s215 = ssub.s32 9216, 9216
          %216 = vsyncadd [#allocation8], %s215
          %s217 = sshll.u32 [#allocation7], 4
          %s218 = int_to_ptr.vmem [resolvable:$true] %s217
          %223 = dma.hbm_to_vmem [thread:$0]  %s3, 9216, %s218, [#allocation8], 64, 64, 4
        $region24: #{tpu_custom_call.1} parent=11 // pred_fallthru
          _
      $region12: #{tpu_custom_call.1} parent=5 // pred_fallthru
        _
      %p224 = scmp.lt.s32.totalorder %s23, 2
      // Predicated region
      $region25: #{tpu_custom_call.1} parent=5 // pred_check
        %p225 = pneg %p224
      $region26: #{tpu_custom_call.1} parent=5 // pred_check_branch
        %227 = sbr.rel (%p225) target = $region28
      $region27: #{tpu_custom_call.1} parent=5 // pred_region
        // Predicated region
        $region29: #{tpu_custom_call.1} parent=27 // pred_check
          %p228 = pneg %p43
        $region30: #{tpu_custom_call.1} parent=27 // pred_check_branch
          %230 = sbr.rel (%p228) target = $region32
        $region31: #{tpu_custom_call.1} parent=27 // pred_region
          %s231 = sand.u32 %s33, 1
          %s232 = scalar_lea.sflag [#allocation5], %s231
          %s233 = sand.u32 %s33, 1
          %s234 = smul.addr %s233, 128
          %s235 = scalar_lea.vmem [#allocation4], %s234
          %s237 = ssub.s32 2048, 2048
          %238 = vsyncadd %s232, %s237
          %s239 = smul.addr %s23, 32
          %s240 = smul.addr %s239, 64
          %s241 = scalar_lea.hbm %s0, %s240
          %s242 = sshll.u32 %s235, 4
          %s243 = int_to_ptr.vmem [resolvable:$true] %s242
          %248 = dma.hbm_to_vmem [thread:$0]  %s241, 2048, %s243, %s232, 64, 64, 4
        $region32: #{tpu_custom_call.1} parent=27 // pred_fallthru
          _
      $region28: #{tpu_custom_call.1} parent=5 // pred_fallthru
        _
      %p249 = scmp.le.s32.totalorder 1, %s23
      %p250 = scmp.lt.s32.totalorder %s23, 3
      %p251 = pnand %p249, %p250
      %p252 = pneg %p251
      // Predicated region
      $region33: #{tpu_custom_call.1} parent=5 // pred_check
        _
      $region34: #{tpu_custom_call.1} parent=5 // pred_check_branch
        %254 = sbr.rel (%p251) target = $region36
      $region35: #{tpu_custom_call.1} parent=5 // pred_region
        %s255 = ssub.s32 %s23, 1
        %s256 = sand.u32 %s36, 1
        %s257 = scalar_lea.sflag [#allocation5], %s256
        %s258 = sand.u32 %s36, 1
        %s259 = smul.addr %s258, 128
        %s260 = scalar_lea.vmem [#allocation4], %s259
        // Predicated region
        $region37: #{tpu_custom_call.1} parent=35 // pred_check
          %p261 = pneg %p49
        $region38: #{tpu_custom_call.1} parent=35 // pred_check_branch
          %263 = sbr.rel (%p261) target = $region40
        $region39: #{tpu_custom_call.1} parent=35 // pred_region
          %264 = dma.done %s257, 2048
        $region40: #{tpu_custom_call.1} parent=35 // pred_fallthru
          _
        // Predicated region
        $region41: #{tpu_custom_call.1} parent=35 // pred_check
          %p265 = pneg %p112
        $region42: #{tpu_custom_call.1} parent=35 // pred_check_branch
          %267 = sbr.rel (%p265) target = $region44
        $region43: #{tpu_custom_call.1} parent=35 // pred_region
          %268 = dma.done [#allocation8], 9216
        $region44: #{tpu_custom_call.1} parent=35 // pred_fallthru
          _
        %s269 = sand.u32 %s36, 1
        %s270 = scalar_lea.sflag [#allocation5], %s269
        %s271 = sand.u32 %s36, 1
        %s272 = smul.addr %s271, 128
        %s273 = scalar_lea.vmem [#allocation4], %s272
        %p274 = pneg %p49
        %p275 = pneg %p46
        %p276 = pneg %p70
        %p277 = pneg %p67
        %p278 = pneg %p91
        %p279 = pneg %p88
        %p280 = pneg %p112
        %p281 = pneg %p109
        %p282 = pneg %p138
        %p283 = pneg %p135
        %s284 = sand.u32 %s125, 1
        %s285 = scalar_lea.sflag [#allocation6], %s284
        %s286 = sand.u32 %s125, 1
        %s287 = smul.addr %s286, 128
        %s288 = scalar_lea.vmem [#allocation9], %s287
        %p289 = pneg %p164
        %p290 = pneg %p161
        %s291 = sand.u32 %s28, 1
        %s292 = scalar_lea.sflag [#allocation11], %s291
        %s293 = sand.u32 %s151, 1
        %s294 = scalar_lea.vmem [#allocation10], %s293
        %p295 = pneg %p190
        %p296 = pneg %p187
        %s297 = sand.u32 %s28, 1
        %s298 = scalar_lea.sflag [#allocation11], %s297
        %s299 = sand.u32 %s177, 1
        %s300 = scalar_lea.vmem [#allocation12], %s299
        %v302 = vld [vmem:[%s260] sm:$0xf]
        %v303 = vld [vmem:[%s260 + $0x4] sm:$0xf]
        %v304 = vld [vmem:[%s260 + $0x8] sm:$0xf]
        %v305 = vld [vmem:[%s260 + $0xc] sm:$0xf]
        %v306 = vld [vmem:[%s260 + $0x10] sm:$0xf]
        %v307 = vld [vmem:[%s260 + $0x14] sm:$0xf]
        %v308 = vld [vmem:[%s260 + $0x18] sm:$0xf]
        %v309 = vld [vmem:[%s260 + $0x1c] sm:$0xf]
        %v310 = vld [vmem:[%s260 + $0x20] sm:$0xf]
        %v311 = vld [vmem:[%s260 + $0x24] sm:$0xf]
        %v312 = vld [vmem:[%s260 + $0x28] sm:$0xf]
        %v313 = vld [vmem:[%s260 + $0x2c] sm:$0xf]
        %v314 = vld [vmem:[%s260 + $0x30] sm:$0xf]
        %v315 = vld [vmem:[%s260 + $0x34] sm:$0xf]
        %v316 = vld [vmem:[%s260 + $0x38] sm:$0xf]
        %v317 = vld [vmem:[%s260 + $0x3c] sm:$0xf]
        %v318 = vld [vmem:[%s260 + $0x40] sm:$0xf]
        %v319 = vld [vmem:[%s260 + $0x44] sm:$0xf]
        %v320 = vld [vmem:[%s260 + $0x48] sm:$0xf]
        %v321 = vld [vmem:[%s260 + $0x4c] sm:$0xf]
        %v322 = vld [vmem:[%s260 + $0x50] sm:$0xf]
        %v323 = vld [vmem:[%s260 + $0x54] sm:$0xf]
        %v324 = vld [vmem:[%s260 + $0x58] sm:$0xf]
        %v325 = vld [vmem:[%s260 + $0x5c] sm:$0xf]
        %v326 = vld [vmem:[%s260 + $0x60] sm:$0xf]
        %v327 = vld [vmem:[%s260 + $0x64] sm:$0xf]
        %v328 = vld [vmem:[%s260 + $0x68] sm:$0xf]
        %v329 = vld [vmem:[%s260 + $0x6c] sm:$0xf]
        %v330 = vld [vmem:[%s260 + $0x70] sm:$0xf]
        %v331 = vld [vmem:[%s260 + $0x74] sm:$0xf]
        %v332 = vld [vmem:[%s260 + $0x78] sm:$0xf]
        %v333 = vld [vmem:[%s260 + $0x7c] sm:$0xf]
        %v334 = vunpack.c.l.bf16 %v302
        %v335 = vunpack.c.l.bf16 %v303
        %v336 = vunpack.c.l.bf16 %v304
        %v337 = vunpack.c.l.bf16 %v305
        %v338 = vunpack.c.l.bf16 %v306
        %v339 = vunpack.c.l.bf16 %v307
        %v340 = vunpack.c.l.bf16 %v308
        %v341 = vunpack.c.l.bf16 %v309
        %v342 = vunpack.c.l.bf16 %v310
        %v343 = vunpack.c.l.bf16 %v311
        %v344 = vunpack.c.l.bf16 %v312
        %v345 = vunpack.c.l.bf16 %v313
        %v346 = vunpack.c.l.bf16 %v314
        %v347 = vunpack.c.l.bf16 %v315
        %v348 = vunpack.c.l.bf16 %v316
        %v349 = vunpack.c.l.bf16 %v317
        %v350 = vunpack.c.l.bf16 %v318
        %v351 = vunpack.c.l.bf16 %v319
        %v352 = vunpack.c.l.bf16 %v320
        %v353 = vunpack.c.l.bf16 %v321
        %v354 = vunpack.c.l.bf16 %v322
        %v355 = vunpack.c.l.bf16 %v323
        %v356 = vunpack.c.l.bf16 %v324
        %v357 = vunpack.c.l.bf16 %v325
        %v358 = vunpack.c.l.bf16 %v326
        %v359 = vunpack.c.l.bf16 %v327
        %v360 = vunpack.c.l.bf16 %v328
        %v361 = vunpack.c.l.bf16 %v329
        %v362 = vunpack.c.l.bf16 %v330
        %v363 = vunpack.c.l.bf16 %v331
        %v364 = vunpack.c.l.bf16 %v332
        %v365 = vunpack.c.l.bf16 %v333
        %v366 = vld [vmem:[%s1] sm:$0x1]
        %v368 = vlaneseq
        %v369 = vshrl.u32 %v368, 7
        %v370 = vsub.s32 0, %v369
        %v371 = vrot.slane %v366, %v370
        %v373 = vmul.f32 %v334, %v371
        %v374 = vmul.f32 %v335, %v371
        %v375 = vmul.f32 %v336, %v371
        %v376 = vmul.f32 %v337, %v371
        %v377 = vmul.f32 %v338, %v371
        %v378 = vmul.f32 %v339, %v371
        %v379 = vmul.f32 %v340, %v371
        %v380 = vmul.f32 %v341, %v371
        %v381 = vmul.f32 %v342, %v371
        %v382 = vmul.f32 %v343, %v371
        %v383 = vmul.f32 %v344, %v371
        %v384 = vmul.f32 %v345, %v371
        %v385 = vmul.f32 %v346, %v371
        %v386 = vmul.f32 %v347, %v371
        %v387 = vmul.f32 %v348, %v371
        %v388 = vmul.f32 %v349, %v371
        %v389 = vmul.f32 %v350, %v371
        %v390 = vmul.f32 %v351, %v371
        %v391 = vmul.f32 %v352, %v371
        %v392 = vmul.f32 %v353, %v371
        %v393 = vmul.f32 %v354, %v371
        %v394 = vmul.f32 %v355, %v371
        %v395 = vmul.f32 %v356, %v371
        %v396 = vmul.f32 %v357, %v371
        %v397 = vmul.f32 %v358, %v371
        %v398 = vmul.f32 %v359, %v371
        %v399 = vmul.f32 %v360, %v371
        %v400 = vmul.f32 %v361, %v371
        %v401 = vmul.f32 %v362, %v371
        %v402 = vmul.f32 %v363, %v371
        %v403 = vmul.f32 %v364, %v371
        %v404 = vmul.f32 %v365, %v371
        %v405 = vld [vmem:[%s2] sm:$0x1]
        %v407 = vlaneseq
        %v408 = vshrl.u32 %v407, 7
        %v409 = vsub.s32 0, %v408
        %v410 = vrot.slane %v405, %v409
        %v412 = vadd.f32 %v373, %v410
        %v413 = vadd.f32 %v374, %v410
        %v414 = vadd.f32 %v375, %v410
        %v415 = vadd.f32 %v376, %v410
        %v416 = vadd.f32 %v377, %v410
        %v417 = vadd.f32 %v378, %v410
        %v418 = vadd.f32 %v379, %v410
        %v419 = vadd.f32 %v380, %v410
        %v420 = vadd.f32 %v381, %v410
        %v421 = vadd.f32 %v382, %v410
        %v422 = vadd.f32 %v383, %v410
        %v423 = vadd.f32 %v384, %v410
        %v424 = vadd.f32 %v385, %v410
        %v425 = vadd.f32 %v386, %v410
        %v426 = vadd.f32 %v387, %v410
        %v427 = vadd.f32 %v388, %v410
        %v428 = vadd.f32 %v389, %v410
        %v429 = vadd.f32 %v390, %v410
        %v430 = vadd.f32 %v391, %v410
        %v431 = vadd.f32 %v392, %v410
        %v432 = vadd.f32 %v393, %v410
        %v433 = vadd.f32 %v394, %v410
        %v434 = vadd.f32 %v395, %v410
        %v435 = vadd.f32 %v396, %v410
        %v436 = vadd.f32 %v397, %v410
        %v437 = vadd.f32 %v398, %v410
        %v438 = vadd.f32 %v399, %v410
        %v439 = vadd.f32 %v400, %v410
        %v440 = vadd.f32 %v401, %v410
        %v441 = vadd.f32 %v402, %v410
        %v442 = vadd.f32 %v403, %v410
        %v443 = vadd.f32 %v404, %v410
        %v444 = vpack.c.bf16 %v413, %v412
        %v445 = vpack.c.bf16 %v415, %v414
        %v446 = vpack.c.bf16 %v417, %v416
        %v447 = vpack.c.bf16 %v419, %v418
        %v448 = vpack.c.bf16 %v421, %v420
        %v449 = vpack.c.bf16 %v423, %v422
        %v450 = vpack.c.bf16 %v425, %v424
        %v451 = vpack.c.bf16 %v427, %v426
        %v452 = vpack.c.bf16 %v429, %v428
        %v453 = vpack.c.bf16 %v431, %v430
        %v454 = vpack.c.bf16 %v433, %v432
        %v455 = vpack.c.bf16 %v435, %v434
        %v456 = vpack.c.bf16 %v437, %v436
        %v457 = vpack.c.bf16 %v439, %v438
        %v458 = vpack.c.bf16 %v441, %v440
        %v459 = vpack.c.bf16 %v443, %v442
        %460 = vst [vmem:[#allocation2] sm:$0xff] 0
        %461 = vst [vmem:[#allocation2 + $0x8] sm:$0xff] 0
        %462 = vst [vmem:[#allocation2 + $0x10] sm:$0xff] 0
        %s463 = scalar_lea.vmem [#allocation2], 408
        %464 = vst [vmem:[%s463] sm:$0xff] 0
        %465 = vst [vmem:[%s463 + $0x8] sm:$0xff] 0
        %466 = vst [vmem:[%s463 + $0x10] sm:$0xff] 0
        %s467 = scalar_lea.vmem [#allocation2], 24
        %468 = vst [vmem:[%s467] sm:$0xff] 0
        %469 = vst [vmem:[%s467 + $0x18] sm:$0xff] 0
        %470 = vst [vmem:[%s467 + $0x30] sm:$0xff] 0
        %471 = vst [vmem:[%s467 + $0x48] sm:$0xff] 0
        %472 = vst [vmem:[%s467 + $0x60] sm:$0xff] 0
        %473 = vst [vmem:[%s467 + $0x78] sm:$0xff] 0
        %474 = vst [vmem:[%s467 + $0x90] sm:$0xff] 0
        %475 = vst [vmem:[%s467 + $0xa8] sm:$0xff] 0
        %476 = vst [vmem:[%s467 + $0xc0] sm:$0xff] 0
        %477 = vst [vmem:[%s467 + $0xd8] sm:$0xff] 0
        %478 = vst [vmem:[%s467 + $0xf0] sm:$0xff] 0
        %479 = vst [vmem:[%s467 + $0x108] sm:$0xff] 0
        %480 = vst [vmem:[%s467 + $0x120] sm:$0xff] 0
        %481 = vst [vmem:[%s467 + $0x138] sm:$0xff] 0
        %482 = vst [vmem:[%s467 + $0x150] sm:$0xff] 0
        %483 = vst [vmem:[%s467 + $0x168] sm:$0xff] 0
        %484 = vst [vmem:[%s467 + $0x10] sm:$0xff] 0
        %485 = vst [vmem:[%s467 + $0x28] sm:$0xff] 0
        %486 = vst [vmem:[%s467 + $0x40] sm:$0xff] 0
        %487 = vst [vmem:[%s467 + $0x58] sm:$0xff] 0
        %488 = vst [vmem:[%s467 + $0x70] sm:$0xff] 0
        %489 = vst [vmem:[%s467 + $0x88] sm:$0xff] 0
        %490 = vst [vmem:[%s467 + $0xa0] sm:$0xff] 0
        %491 = vst [vmem:[%s467 + $0xb8] sm:$0xff] 0
        %492 = vst [vmem:[%s467 + $0xd0] sm:$0xff] 0
        %493 = vst [vmem:[%s467 + $0xe8] sm:$0xff] 0
        %494 = vst [vmem:[%s467 + $0x100] sm:$0xff] 0
        %495 = vst [vmem:[%s467 + $0x118] sm:$0xff] 0
        %496 = vst [vmem:[%s467 + $0x130] sm:$0xff] 0
        %497 = vst [vmem:[%s467 + $0x148] sm:$0xff] 0
        %498 = vst [vmem:[%s467 + $0x160] sm:$0xff] 0
        %499 = vst [vmem:[%s467 + $0x178] sm:$0xff] 0
        %500 = vst [vmem:[%s467 + $0x8] sm:$0xff] %v444
        %501 = vst [vmem:[%s467 + $0x20] sm:$0xff] %v445
        %502 = vst [vmem:[%s467 + $0x38] sm:$0xff] %v446
        %503 = vst [vmem:[%s467 + $0x50] sm:$0xff] %v447
        %504 = vst [vmem:[%s467 + $0x68] sm:$0xff] %v448
        %505 = vst [vmem:[%s467 + $0x80] sm:$0xff] %v449
        %506 = vst [vmem:[%s467 + $0x98] sm:$0xff] %v450
        %507 = vst [vmem:[%s467 + $0xb0] sm:$0xff] %v451
        %508 = vst [vmem:[%s467 + $0xc8] sm:$0xff] %v452
        %509 = vst [vmem:[%s467 + $0xe0] sm:$0xff] %v453
        %510 = vst [vmem:[%s467 + $0xf8] sm:$0xff] %v454
        %511 = vst [vmem:[%s467 + $0x110] sm:$0xff] %v455
        %512 = vst [vmem:[%s467 + $0x128] sm:$0xff] %v456
        %513 = vst [vmem:[%s467 + $0x140] sm:$0xff] %v457
        %514 = vst [vmem:[%s467 + $0x158] sm:$0xff] %v458
        %515 = vst [vmem:[%s467 + $0x170] sm:$0xff] %v459
        %v516 = vld [vmem:[#allocation2] sm:$0x80]
        %v517 = vld [vmem:[#allocation2 + $0x8] sm:$0xff]
        %v518 = vld [vmem:[#allocation2 + $0x18] sm:$0x80]
        %v519 = vld [vmem:[#allocation2 + $0x20] sm:$0xff]
        %v520 = vld [vmem:[#allocation2 + $0x30] sm:$0x80]
        %v521 = vld [vmem:[#allocation2 + $0x38] sm:$0xff]
        %v522 = vld [vmem:[#allocation2 + $0x48] sm:$0x80]
        %v523 = vld [vmem:[#allocation2 + $0x50] sm:$0xff]
        %v524 = vld [vmem:[#allocation2 + $0x60] sm:$0x80]
        %v525 = vld [vmem:[#allocation2 + $0x68] sm:$0xff]
        %v526 = vld [vmem:[#allocation2 + $0x78] sm:$0x80]
        %v527 = vld [vmem:[#allocation2 + $0x80] sm:$0xff]
        %v528 = vld [vmem:[#allocation2 + $0x90] sm:$0x80]
        %v529 = vld [vmem:[#allocation2 + $0x98] sm:$0xff]
        %v530 = vld [vmem:[#allocation2 + $0xa8] sm:$0x80]
        %v531 = vld [vmem:[#allocation2 + $0xb0] sm:$0xff]
        %v532 = vld [vmem:[#allocation2 + $0xc0] sm:$0x80]
        %v533 = vld [vmem:[#allocation2 + $0xc8] sm:$0xff]
        %v534 = vld [vmem:[#allocation2 + $0xd8] sm:$0x80]
        %v535 = vld [vmem:[#allocation2 + $0xe0] sm:$0xff]
        %v536 = vld [vmem:[#allocation2 + $0xf0] sm:$0x80]
        %v537 = vld [vmem:[#allocation2 + $0xf8] sm:$0xff]
        %v538 = vld [vmem:[#allocation2 + $0x108] sm:$0x80]
        %v539 = vld [vmem:[#allocation2 + $0x110] sm:$0xff]
        %v540 = vld [vmem:[#allocation2 + $0x120] sm:$0x80]
        %v541 = vld [vmem:[#allocation2 + $0x128] sm:$0xff]
        %v542 = vld [vmem:[#allocation2 + $0x138] sm:$0x80]
        %v543 = vld [vmem:[#allocation2 + $0x140] sm:$0xff]
        %v544 = vld [vmem:[#allocation2 + $0x150] sm:$0x80]
        %v545 = vld [vmem:[#allocation2 + $0x158] sm:$0xff]
        %v546 = vld [vmem:[#allocation2 + $0x168] sm:$0x80]
        %v547 = vld [vmem:[#allocation2 + $0x170] sm:$0xff]
        %vm548 = vsmask.f32 256
        %v550 = vshrl.u32 %v516, 16
        %v552 = vrot.slane %v550, 7
        %v554 = vshrl.u32 %v517, 16
        %v556 = vrot.slane %v554, 7
        %v557 = vshll.u32 %v517, 16
        %v559 = vor.u32 %v556, %v557
        %v560 = vsel %vm548, %v552, %v559
        %v562 = vshrl.u32 %v518, 16
        %v564 = vrot.slane %v562, 7
        %v566 = vshrl.u32 %v519, 16
        %v568 = vrot.slane %v566, 7
        %v569 = vshll.u32 %v519, 16
        %v571 = vor.u32 %v568, %v569
        %v572 = vsel %vm548, %v564, %v571
        %v574 = vshrl.u32 %v520, 16
        %v576 = vrot.slane %v574, 7
        %v578 = vshrl.u32 %v521, 16
        %v580 = vrot.slane %v578, 7
        %v581 = vshll.u32 %v521, 16
        %v583 = vor.u32 %v580, %v581
        %v584 = vsel %vm548, %v576, %v583
        %v586 = vshrl.u32 %v522, 16
        %v588 = vrot.slane %v586, 7
        %v590 = vshrl.u32 %v523, 16
        %v592 = vrot.slane %v590, 7
        %v593 = vshll.u32 %v523, 16
        %v595 = vor.u32 %v592, %v593
        %v596 = vsel %vm548, %v588, %v595
        %v598 = vshrl.u32 %v524, 16
        %v600 = vrot.slane %v598, 7
        %v602 = vshrl.u32 %v525, 16
        %v604 = vrot.slane %v602, 7
        %v605 = vshll.u32 %v525, 16
        %v607 = vor.u32 %v604, %v605
        %v608 = vsel %vm548, %v600, %v607
        %v610 = vshrl.u32 %v526, 16
        %v612 = vrot.slane %v610, 7
        %v614 = vshrl.u32 %v527, 16
        %v616 = vrot.slane %v614, 7
        %v617 = vshll.u32 %v527, 16
        %v619 = vor.u32 %v616, %v617
        %v620 = vsel %vm548, %v612, %v619
        %v622 = vshrl.u32 %v528, 16
        %v624 = vrot.slane %v622, 7
        %v626 = vshrl.u32 %v529, 16
        %v628 = vrot.slane %v626, 7
        %v629 = vshll.u32 %v529, 16
        %v631 = vor.u32 %v628, %v629
        %v632 = vsel %vm548, %v624, %v631
        %v634 = vshrl.u32 %v530, 16
        %v636 = vrot.slane %v634, 7
        %v638 = vshrl.u32 %v531, 16
        %v640 = vrot.slane %v638, 7
        %v641 = vshll.u32 %v531, 16
        %v643 = vor.u32 %v640, %v641
        %v644 = vsel %vm548, %v636, %v643
        %v646 = vshrl.u32 %v532, 16
        %v648 = vrot.slane %v646, 7
        %v650 = vshrl.u32 %v533, 16
        %v652 = vrot.slane %v650, 7
        %v653 = vshll.u32 %v533, 16
        %v655 = vor.u32 %v652, %v653
        %v656 = vsel %vm548, %v648, %v655
        %v658 = vshrl.u32 %v534, 16
        %v660 = vrot.slane %v658, 7
        %v662 = vshrl.u32 %v535, 16
        %v664 = vrot.slane %v662, 7
        %v665 = vshll.u32 %v535, 16
        %v667 = vor.u32 %v664, %v665
        %v668 = vsel %vm548, %v660, %v667
        %v670 = vshrl.u32 %v536, 16
        %v672 = vrot.slane %v670, 7
        %v674 = vshrl.u32 %v537, 16
        %v676 = vrot.slane %v674, 7
        %v677 = vshll.u32 %v537, 16
        %v679 = vor.u32 %v676, %v677
        %v680 = vsel %vm548, %v672, %v679
        %v682 = vshrl.u32 %v538, 16
        %v684 = vrot.slane %v682, 7
        %v686 = vshrl.u32 %v539, 16
        %v688 = vrot.slane %v686, 7
        %v689 = vshll.u32 %v539, 16
        %v691 = vor.u32 %v688, %v689
        %v692 = vsel %vm548, %v684, %v691
        %v694 = vshrl.u32 %v540, 16
        %v696 = vrot.slane %v694, 7
        %v698 = vshrl.u32 %v541, 16
        %v700 = vrot.slane %v698, 7
        %v701 = vshll.u32 %v541, 16
        %v703 = vor.u32 %v700, %v701
        %v704 = vsel %vm548, %v696, %v703
        %v706 = vshrl.u32 %v542, 16
        %v708 = vrot.slane %v706, 7
        %v710 = vshrl.u32 %v543, 16
        %v712 = vrot.slane %v710, 7
        %v713 = vshll.u32 %v543, 16
        %v715 = vor.u32 %v712, %v713
        %v716 = vsel %vm548, %v708, %v715
        %v718 = vshrl.u32 %v544, 16
        %v720 = vrot.slane %v718, 7
        %v722 = vshrl.u32 %v545, 16
        %v724 = vrot.slane %v722, 7
        %v725 = vshll.u32 %v545, 16
        %v727 = vor.u32 %v724, %v725
        %v728 = vsel %vm548, %v720, %v727
        %v730 = vshrl.u32 %v546, 16
        %v732 = vrot.slane %v730, 7
        %v734 = vshrl.u32 %v547, 16
        %v736 = vrot.slane %v734, 7
        %v737 = vshll.u32 %v547, 16
        %v739 = vor.u32 %v736, %v737
        %v740 = vsel %vm548, %v732, %v739
        %757 = vst [vmem:[#allocation3] sm:$0xff] %v560
        %758 = vst [vmem:[#allocation3 + $0x48] sm:$0xff] %v572
        %759 = vst [vmem:[#allocation3 + $0x90] sm:$0xff] %v584
        %760 = vst [vmem:[#allocation3 + $0xd8] sm:$0xff] %v596
        %761 = vst [vmem:[#allocation3 + $0x120] sm:$0xff] %v608
        %762 = vst [vmem:[#allocation3 + $0x168] sm:$0xff] %v620
        %763 = vst [vmem:[#allocation3 + $0x1b0] sm:$0xff] %v632
        %764 = vst [vmem:[#allocation3 + $0x1f8] sm:$0xff] %v644
        %765 = vst [vmem:[#allocation3 + $0x240] sm:$0xff] %v656
        %766 = vst [vmem:[#allocation3 + $0x288] sm:$0xff] %v668
        %767 = vst [vmem:[#allocation3 + $0x2d0] sm:$0xff] %v680
        %768 = vst [vmem:[#allocation3 + $0x318] sm:$0xff] %v692
        %769 = vst [vmem:[#allocation3 + $0x360] sm:$0xff] %v704
        %770 = vst [vmem:[#allocation3 + $0x3a8] sm:$0xff] %v716
        %771 = vst [vmem:[#allocation3 + $0x3f0] sm:$0xff] %v728
        %772 = vst [vmem:[#allocation3 + $0x438] sm:$0xff] %v740
        %v773 = vld [vmem:[#allocation2 + $0x8] sm:$0xff]
        %v774 = vld [vmem:[#allocation2 + $0x20] sm:$0xff]
        %v775 = vld [vmem:[#allocation2 + $0x38] sm:$0xff]
        %v776 = vld [vmem:[#allocation2 + $0x50] sm:$0xff]
        %v777 = vld [vmem:[#allocation2 + $0x68] sm:$0xff]
        %v778 = vld [vmem:[#allocation2 + $0x80] sm:$0xff]
        %v779 = vld [vmem:[#allocation2 + $0x98] sm:$0xff]
        %v780 = vld [vmem:[#allocation2 + $0xb0] sm:$0xff]
        %v781 = vld [vmem:[#allocation2 + $0xc8] sm:$0xff]
        %v782 = vld [vmem:[#allocation2 + $0xe0] sm:$0xff]
        %v783 = vld [vmem:[#allocation2 + $0xf8] sm:$0xff]
        %v784 = vld [vmem:[#allocation2 + $0x110] sm:$0xff]
        %v785 = vld [vmem:[#allocation2 + $0x128] sm:$0xff]
        %v786 = vld [vmem:[#allocation2 + $0x140] sm:$0xff]
        %v787 = vld [vmem:[#allocation2 + $0x158] sm:$0xff]
        %v788 = vld [vmem:[#allocation2 + $0x170] sm:$0xff]
        %789 = vst [vmem:[#allocation3 + $0x8] sm:$0xff] %v773
        %790 = vst [vmem:[#allocation3 + $0x50] sm:$0xff] %v774
        %791 = vst [vmem:[#allocation3 + $0x98] sm:$0xff] %v775
        %792 = vst [vmem:[#allocation3 + $0xe0] sm:$0xff] %v776
        %793 = vst [vmem:[#allocation3 + $0x128] sm:$0xff] %v777
        %794 = vst [vmem:[#allocation3 + $0x170] sm:$0xff] %v778
        %795 = vst [vmem:[#allocation3 + $0x1b8] sm:$0xff] %v779
        %796 = vst [vmem:[#allocation3 + $0x200] sm:$0xff] %v780
        %797 = vst [vmem:[#allocation3 + $0x248] sm:$0xff] %v781
        %798 = vst [vmem:[#allocation3 + $0x290] sm:$0xff] %v782
        %799 = vst [vmem:[#allocation3 + $0x2d8] sm:$0xff] %v783
        %800 = vst [vmem:[#allocation3 + $0x320] sm:$0xff] %v784
        %801 = vst [vmem:[#allocation3 + $0x368] sm:$0xff] %v785
        %802 = vst [vmem:[#allocation3 + $0x3b0] sm:$0xff] %v786
        %803 = vst [vmem:[#allocation3 + $0x3f8] sm:$0xff] %v787
        %804 = vst [vmem:[#allocation3 + $0x440] sm:$0xff] %v788
        %v805 = vld [vmem:[#allocation2 + $0x8] sm:$0xff]
        %v806 = vld [vmem:[#allocation2 + $0x10] sm:$0x1]
        %v807 = vld [vmem:[#allocation2 + $0x20] sm:$0xff]
        %v808 = vld [vmem:[#allocation2 + $0x28] sm:$0x1]
        %v809 = vld [vmem:[#allocation2 + $0x38] sm:$0xff]
        %v810 = vld [vmem:[#allocation2 + $0x40] sm:$0x1]
        %v811 = vld [vmem:[#allocation2 + $0x50] sm:$0xff]
        %v812 = vld [vmem:[#allocation2 + $0x58] sm:$0x1]
        %v813 = vld [vmem:[#allocation2 + $0x68] sm:$0xff]
        %v814 = vld [vmem:[#allocation2 + $0x70] sm:$0x1]
        %v815 = vld [vmem:[#allocation2 + $0x80] sm:$0xff]
        %v816 = vld [vmem:[#allocation2 + $0x88] sm:$0x1]
        %v817 = vld [vmem:[#allocation2 + $0x98] sm:$0xff]
        %v818 = vld [vmem:[#allocation2 + $0xa0] sm:$0x1]
        %v819 = vld [vmem:[#allocation2 + $0xb0] sm:$0xff]
        %v820 = vld [vmem:[#allocation2 + $0xb8] sm:$0x1]
        %v821 = vld [vmem:[#allocation2 + $0xc8] sm:$0xff]
        %v822 = vld [vmem:[#allocation2 + $0xd0] sm:$0x1]
        %v823 = vld [vmem:[#allocation2 + $0xe0] sm:$0xff]
        %v824 = vld [vmem:[#allocation2 + $0xe8] sm:$0x1]
        %v825 = vld [vmem:[#allocation2 + $0xf8] sm:$0xff]
        %v826 = vld [vmem:[#allocation2 + $0x100] sm:$0x1]
        %v827 = vld [vmem:[#allocation2 + $0x110] sm:$0xff]
        %v828 = vld [vmem:[#allocation2 + $0x118] sm:$0x1]
        %v829 = vld [vmem:[#allocation2 + $0x128] sm:$0xff]
        %v830 = vld [vmem:[#allocation2 + $0x130] sm:$0x1]
        %v831 = vld [vmem:[#allocation2 + $0x140] sm:$0xff]
        %v832 = vld [vmem:[#allocation2 + $0x148] sm:$0x1]
        %v833 = vld [vmem:[#allocation2 + $0x158] sm:$0xff]
        %v834 = vld [vmem:[#allocation2 + $0x160] sm:$0x1]
        %v835 = vld [vmem:[#allocation2 + $0x170] sm:$0xff]
        %v836 = vld [vmem:[#allocation2 + $0x178] sm:$0x1]
        %vm837 = vsmask.f32 7424
        %v839 = vshrl.u32 %v805, 16
        %v841 = vshll.u32 %v805, 16
        %v843 = vrot.slane %v841, 1
        %v844 = vor.u32 %v839, %v843
        %v846 = vshll.u32 %v806, 16
        %v848 = vrot.slane %v846, 1
        %v849 = vsel %vm837, %v844, %v848
        %v851 = vshrl.u32 %v807, 16
        %v853 = vshll.u32 %v807, 16
        %v855 = vrot.slane %v853, 1
        %v856 = vor.u32 %v851, %v855
        %v858 = vshll.u32 %v808, 16
        %v860 = vrot.slane %v858, 1
        %v861 = vsel %vm837, %v856, %v860
        %v863 = vshrl.u32 %v809, 16
        %v865 = vshll.u32 %v809, 16
        %v867 = vrot.slane %v865, 1
        %v868 = vor.u32 %v863, %v867
        %v870 = vshll.u32 %v810, 16
        %v872 = vrot.slane %v870, 1
        %v873 = vsel %vm837, %v868, %v872
        %v875 = vshrl.u32 %v811, 16
        %v877 = vshll.u32 %v811, 16
        %v879 = vrot.slane %v877, 1
        %v880 = vor.u32 %v875, %v879
        %v882 = vshll.u32 %v812, 16
        %v884 = vrot.slane %v882, 1
        %v885 = vsel %vm837, %v880, %v884
        %v887 = vshrl.u32 %v813, 16
        %v889 = vshll.u32 %v813, 16
        %v891 = vrot.slane %v889, 1
        %v892 = vor.u32 %v887, %v891
        %v894 = vshll.u32 %v814, 16
        %v896 = vrot.slane %v894, 1
        %v897 = vsel %vm837, %v892, %v896
        %v899 = vshrl.u32 %v815, 16
        %v901 = vshll.u32 %v815, 16
        %v903 = vrot.slane %v901, 1
        %v904 = vor.u32 %v899, %v903
        %v906 = vshll.u32 %v816, 16
        %v908 = vrot.slane %v906, 1
        %v909 = vsel %vm837, %v904, %v908
        %v911 = vshrl.u32 %v817, 16
        %v913 = vshll.u32 %v817, 16
        %v915 = vrot.slane %v913, 1
        %v916 = vor.u32 %v911, %v915
        %v918 = vshll.u32 %v818, 16
        %v920 = vrot.slane %v918, 1
        %v921 = vsel %vm837, %v916, %v920
        %v923 = vshrl.u32 %v819, 16
        %v925 = vshll.u32 %v819, 16
        %v927 = vrot.slane %v925, 1
        %v928 = vor.u32 %v923, %v927
        %v930 = vshll.u32 %v820, 16
        %v932 = vrot.slane %v930, 1
        %v933 = vsel %vm837, %v928, %v932
        %v935 = vshrl.u32 %v821, 16
        %v937 = vshll.u32 %v821, 16
        %v939 = vrot.slane %v937, 1
        %v940 = vor.u32 %v935, %v939
        %v942 = vshll.u32 %v822, 16
        %v944 = vrot.slane %v942, 1
        %v945 = vsel %vm837, %v940, %v944
        %v947 = vshrl.u32 %v823, 16
        %v949 = vshll.u32 %v823, 16
        %v951 = vrot.slane %v949, 1
        %v952 = vor.u32 %v947, %v951
        %v954 = vshll.u32 %v824, 16
        %v956 = vrot.slane %v954, 1
        %v957 = vsel %vm837, %v952, %v956
        %v959 = vshrl.u32 %v825, 16
        %v961 = vshll.u32 %v825, 16
        %v963 = vrot.slane %v961, 1
        %v964 = vor.u32 %v959, %v963
        %v966 = vshll.u32 %v826, 16
        %v968 = vrot.slane %v966, 1
        %v969 = vsel %vm837, %v964, %v968
        %v971 = vshrl.u32 %v827, 16
        %v973 = vshll.u32 %v827, 16
        %v975 = vrot.slane %v973, 1
        %v976 = vor.u32 %v971, %v975
        %v978 = vshll.u32 %v828, 16
        %v980 = vrot.slane %v978, 1
        %v981 = vsel %vm837, %v976, %v980
        %v983 = vshrl.u32 %v829, 16
        %v985 = vshll.u32 %v829, 16
        %v987 = vrot.slane %v985, 1
        %v988 = vor.u32 %v983, %v987
        %v990 = vshll.u32 %v830, 16
        %v992 = vrot.slane %v990, 1
        %v993 = vsel %vm837, %v988, %v992
        %v995 = vshrl.u32 %v831, 16
        %v997 = vshll.u32 %v831, 16
        %v999 = vrot.slane %v997, 1
        %v1000 = vor.u32 %v995, %v999
        %v1002 = vshll.u32 %v832, 16
        %v1004 = vrot.slane %v1002, 1
        %v1005 = vsel %vm837, %v1000, %v1004
        %v1007 = vshrl.u32 %v833, 16
        %v1009 = vshll.u32 %v833, 16
        %v1011 = vrot.slane %v1009, 1
        %v1012 = vor.u32 %v1007, %v1011
        %v1014 = vshll.u32 %v834, 16
        %v1016 = vrot.slane %v1014, 1
        %v1017 = vsel %vm837, %v1012, %v1016
        %v1019 = vshrl.u32 %v835, 16
        %v1021 = vshll.u32 %v835, 16
        %v1023 = vrot.slane %v1021, 1
        %v1024 = vor.u32 %v1019, %v1023
        %v1026 = vshll.u32 %v836, 16
        %v1028 = vrot.slane %v1026, 1
        %v1029 = vsel %vm837, %v1024, %v1028
        %1046 = vst [vmem:[#allocation3 + $0x10] sm:$0xff] %v849
        %1047 = vst [vmem:[#allocation3 + $0x58] sm:$0xff] %v861
        %1048 = vst [vmem:[#allocation3 + $0xa0] sm:$0xff] %v873
        %1049 = vst [vmem:[#allocation3 + $0xe8] sm:$0xff] %v885
        %1050 = vst [vmem:[#allocation3 + $0x130] sm:$0xff] %v897
        %1051 = vst [vmem:[#allocation3 + $0x178] sm:$0xff] %v909
        %1052 = vst [vmem:[#allocation3 + $0x1c0] sm:$0xff] %v921
        %1053 = vst [vmem:[#allocation3 + $0x208] sm:$0xff] %v933
        %1054 = vst [vmem:[#allocation3 + $0x250] sm:$0xff] %v945
        %1055 = vst [vmem:[#allocation3 + $0x298] sm:$0xff] %v957
        %1056 = vst [vmem:[#allocation3 + $0x2e0] sm:$0xff] %v969
        %1057 = vst [vmem:[#allocation3 + $0x328] sm:$0xff] %v981
        %1058 = vst [vmem:[#allocation3 + $0x370] sm:$0xff] %v993
        %1059 = vst [vmem:[#allocation3 + $0x3b8] sm:$0xff] %v1005
        %1060 = vst [vmem:[#allocation3 + $0x400] sm:$0xff] %v1017
        %1061 = vst [vmem:[#allocation3 + $0x448] sm:$0xff] %v1029
        %v1062 = vld [vmem:[%s467] sm:$0x80]
        %v1063 = vld [vmem:[%s467 + $0x8] sm:$0xff]
        %v1064 = vld [vmem:[%s467 + $0x18] sm:$0x80]
        %v1065 = vld [vmem:[%s467 + $0x20] sm:$0xff]
        %v1066 = vld [vmem:[%s467 + $0x30] sm:$0x80]
        %v1067 = vld [vmem:[%s467 + $0x38] sm:$0xff]
        %v1068 = vld [vmem:[%s467 + $0x48] sm:$0x80]
        %v1069 = vld [vmem:[%s467 + $0x50] sm:$0xff]
        %v1070 = vld [vmem:[%s467 + $0x60] sm:$0x80]
        %v1071 = vld [vmem:[%s467 + $0x68] sm:$0xff]
        %v1072 = vld [vmem:[%s467 + $0x78] sm:$0x80]
        %v1073 = vld [vmem:[%s467 + $0x80] sm:$0xff]
        %v1074 = vld [vmem:[%s467 + $0x90] sm:$0x80]
        %v1075 = vld [vmem:[%s467 + $0x98] sm:$0xff]
        %v1076 = vld [vmem:[%s467 + $0xa8] sm:$0x80]
        %v1077 = vld [vmem:[%s467 + $0xb0] sm:$0xff]
        %v1078 = vld [vmem:[%s467 + $0xc0] sm:$0x80]
        %v1079 = vld [vmem:[%s467 + $0xc8] sm:$0xff]
        %v1080 = vld [vmem:[%s467 + $0xd8] sm:$0x80]
        %v1081 = vld [vmem:[%s467 + $0xe0] sm:$0xff]
        %v1082 = vld [vmem:[%s467 + $0xf0] sm:$0x80]
        %v1083 = vld [vmem:[%s467 + $0xf8] sm:$0xff]
        %v1084 = vld [vmem:[%s467 + $0x108] sm:$0x80]
        %v1085 = vld [vmem:[%s467 + $0x110] sm:$0xff]
        %v1086 = vld [vmem:[%s467 + $0x120] sm:$0x80]
        %v1087 = vld [vmem:[%s467 + $0x128] sm:$0xff]
        %v1088 = vld [vmem:[%s467 + $0x138] sm:$0x80]
        %v1089 = vld [vmem:[%s467 + $0x140] sm:$0xff]
        %v1090 = vld [vmem:[%s467 + $0x150] sm:$0x80]
        %v1091 = vld [vmem:[%s467 + $0x158] sm:$0xff]
        %v1092 = vld [vmem:[%s467 + $0x168] sm:$0x80]
        %v1093 = vld [vmem:[%s467 + $0x170] sm:$0xff]
        %v1095 = vshrl.u32 %v1062, 16
        %v1097 = vrot.slane %v1095, 7
        %v1099 = vshrl.u32 %v1063, 16
        %v1101 = vrot.slane %v1099, 7
        %v1102 = vshll.u32 %v1063, 16
        %v1104 = vor.u32 %v1101, %v1102
        %v1105 = vsel %vm548, %v1097, %v1104
        %v1107 = vshrl.u32 %v1064, 16
        %v1109 = vrot.slane %v1107, 7
        %v1111 = vshrl.u32 %v1065, 16
        %v1113 = vrot.slane %v1111, 7
        %v1114 = vshll.u32 %v1065, 16
        %v1116 = vor.u32 %v1113, %v1114
        %v1117 = vsel %vm548, %v1109, %v1116
        %v1119 = vshrl.u32 %v1066, 16
        %v1121 = vrot.slane %v1119, 7
        %v1123 = vshrl.u32 %v1067, 16
        %v1125 = vrot.slane %v1123, 7
        %v1126 = vshll.u32 %v1067, 16
        %v1128 = vor.u32 %v1125, %v1126
        %v1129 = vsel %vm548, %v1121, %v1128
        %v1131 = vshrl.u32 %v1068, 16
        %v1133 = vrot.slane %v1131, 7
        %v1135 = vshrl.u32 %v1069, 16
        %v1137 = vrot.slane %v1135, 7
        %v1138 = vshll.u32 %v1069, 16
        %v1140 = vor.u32 %v1137, %v1138
        %v1141 = vsel %vm548, %v1133, %v1140
        %v1143 = vshrl.u32 %v1070, 16
        %v1145 = vrot.slane %v1143, 7
        %v1147 = vshrl.u32 %v1071, 16
        %v1149 = vrot.slane %v1147, 7
        %v1150 = vshll.u32 %v1071, 16
        %v1152 = vor.u32 %v1149, %v1150
        %v1153 = vsel %vm548, %v1145, %v1152
        %v1155 = vshrl.u32 %v1072, 16
        %v1157 = vrot.slane %v1155, 7
        %v1159 = vshrl.u32 %v1073, 16
        %v1161 = vrot.slane %v1159, 7
        %v1162 = vshll.u32 %v1073, 16
        %v1164 = vor.u32 %v1161, %v1162
        %v1165 = vsel %vm548, %v1157, %v1164
        %v1167 = vshrl.u32 %v1074, 16
        %v1169 = vrot.slane %v1167, 7
        %v1171 = vshrl.u32 %v1075, 16
        %v1173 = vrot.slane %v1171, 7
        %v1174 = vshll.u32 %v1075, 16
        %v1176 = vor.u32 %v1173, %v1174
        %v1177 = vsel %vm548, %v1169, %v1176
        %v1179 = vshrl.u32 %v1076, 16
        %v1181 = vrot.slane %v1179, 7
        %v1183 = vshrl.u32 %v1077, 16
        %v1185 = vrot.slane %v1183, 7
        %v1186 = vshll.u32 %v1077, 16
        %v1188 = vor.u32 %v1185, %v1186
        %v1189 = vsel %vm548, %v1181, %v1188
        %v1191 = vshrl.u32 %v1078, 16
        %v1193 = vrot.slane %v1191, 7
        %v1195 = vshrl.u32 %v1079, 16
        %v1197 = vrot.slane %v1195, 7
        %v1198 = vshll.u32 %v1079, 16
        %v1200 = vor.u32 %v1197, %v1198
        %v1201 = vsel %vm548, %v1193, %v1200
        %v1203 = vshrl.u32 %v1080, 16
        %v1205 = vrot.slane %v1203, 7
        %v1207 = vshrl.u32 %v1081, 16
        %v1209 = vrot.slane %v1207, 7
        %v1210 = vshll.u32 %v1081, 16
        %v1212 = vor.u32 %v1209, %v1210
        %v1213 = vsel %vm548, %v1205, %v1212
        %v1215 = vshrl.u32 %v1082, 16
        %v1217 = vrot.slane %v1215, 7
        %v1219 = vshrl.u32 %v1083, 16
        %v1221 = vrot.slane %v1219, 7
        %v1222 = vshll.u32 %v1083, 16
        %v1224 = vor.u32 %v1221, %v1222
        %v1225 = vsel %vm548, %v1217, %v1224
        %v1227 = vshrl.u32 %v1084, 16
        %v1229 = vrot.slane %v1227, 7
        %v1231 = vshrl.u32 %v1085, 16
        %v1233 = vrot.slane %v1231, 7
        %v1234 = vshll.u32 %v1085, 16
        %v1236 = vor.u32 %v1233, %v1234
        %v1237 = vsel %vm548, %v1229, %v1236
        %v1239 = vshrl.u32 %v1086, 16
        %v1241 = vrot.slane %v1239, 7
        %v1243 = vshrl.u32 %v1087, 16
        %v1245 = vrot.slane %v1243, 7
        %v1246 = vshll.u32 %v1087, 16
        %v1248 = vor.u32 %v1245, %v1246
        %v1249 = vsel %vm548, %v1241, %v1248
        %v1251 = vshrl.u32 %v1088, 16
        %v1253 = vrot.slane %v1251, 7
        %v1255 = vshrl.u32 %v1089, 16
        %v1257 = vrot.slane %v1255, 7
        %v1258 = vshll.u32 %v1089, 16
        %v1260 = vor.u32 %v1257, %v1258
        %v1261 = vsel %vm548, %v1253, %v1260
        %v1263 = vshrl.u32 %v1090, 16
        %v1265 = vrot.slane %v1263, 7
        %v1267 = vshrl.u32 %v1091, 16
        %v1269 = vrot.slane %v1267, 7
        %v1270 = vshll.u32 %v1091, 16
        %v1272 = vor.u32 %v1269, %v1270
        %v1273 = vsel %vm548, %v1265, %v1272
        %v1275 = vshrl.u32 %v1092, 16
        %v1277 = vrot.slane %v1275, 7
        %v1279 = vshrl.u32 %v1093, 16
        %v1281 = vrot.slane %v1279, 7
        %v1282 = vshll.u32 %v1093, 16
        %v1284 = vor.u32 %v1281, %v1282
        %v1285 = vsel %vm548, %v1277, %v1284
        %1302 = vst [vmem:[#allocation3 + $0x18] sm:$0xff] %v1105
        %1303 = vst [vmem:[#allocation3 + $0x60] sm:$0xff] %v1117
        %1304 = vst [vmem:[#allocation3 + $0xa8] sm:$0xff] %v1129
        %1305 = vst [vmem:[#allocation3 + $0xf0] sm:$0xff] %v1141
        %1306 = vst [vmem:[#allocation3 + $0x138] sm:$0xff] %v1153
        %1307 = vst [vmem:[#allocation3 + $0x180] sm:$0xff] %v1165
        %1308 = vst [vmem:[#allocation3 + $0x1c8] sm:$0xff] %v1177
        %1309 = vst [vmem:[#allocation3 + $0x210] sm:$0xff] %v1189
        %1310 = vst [vmem:[#allocation3 + $0x258] sm:$0xff] %v1201
        %1311 = vst [vmem:[#allocation3 + $0x2a0] sm:$0xff] %v1213
        %1312 = vst [vmem:[#allocation3 + $0x2e8] sm:$0xff] %v1225
        %1313 = vst [vmem:[#allocation3 + $0x330] sm:$0xff] %v1237
        %1314 = vst [vmem:[#allocation3 + $0x378] sm:$0xff] %v1249
        %1315 = vst [vmem:[#allocation3 + $0x3c0] sm:$0xff] %v1261
        %1316 = vst [vmem:[#allocation3 + $0x408] sm:$0xff] %v1273
        %1317 = vst [vmem:[#allocation3 + $0x450] sm:$0xff] %v1285
        %v1318 = vld [vmem:[%s467 + $0x8] sm:$0xff]
        %v1319 = vld [vmem:[%s467 + $0x20] sm:$0xff]
        %v1320 = vld [vmem:[%s467 + $0x38] sm:$0xff]
        %v1321 = vld [vmem:[%s467 + $0x50] sm:$0xff]
        %v1322 = vld [vmem:[%s467 + $0x68] sm:$0xff]
        %v1323 = vld [vmem:[%s467 + $0x80] sm:$0xff]
        %v1324 = vld [vmem:[%s467 + $0x98] sm:$0xff]
        %v1325 = vld [vmem:[%s467 + $0xb0] sm:$0xff]
        %v1326 = vld [vmem:[%s467 + $0xc8] sm:$0xff]
        %v1327 = vld [vmem:[%s467 + $0xe0] sm:$0xff]
        %v1328 = vld [vmem:[%s467 + $0xf8] sm:$0xff]
        %v1329 = vld [vmem:[%s467 + $0x110] sm:$0xff]
        %v1330 = vld [vmem:[%s467 + $0x128] sm:$0xff]
        %v1331 = vld [vmem:[%s467 + $0x140] sm:$0xff]
        %v1332 = vld [vmem:[%s467 + $0x158] sm:$0xff]
        %v1333 = vld [vmem:[%s467 + $0x170] sm:$0xff]
        %1334 = vst [vmem:[#allocation3 + $0x20] sm:$0xff] %v1318
        %1335 = vst [vmem:[#allocation3 + $0x68] sm:$0xff] %v1319
        %1336 = vst [vmem:[#allocation3 + $0xb0] sm:$0xff] %v1320
        %1337 = vst [vmem:[#allocation3 + $0xf8] sm:$0xff] %v1321
        %1338 = vst [vmem:[#allocation3 + $0x140] sm:$0xff] %v1322
        %1339 = vst [vmem:[#allocation3 + $0x188] sm:$0xff] %v1323
        %1340 = vst [vmem:[#allocation3 + $0x1d0] sm:$0xff] %v1324
        %1341 = vst [vmem:[#allocation3 + $0x218] sm:$0xff] %v1325
        %1342 = vst [vmem:[#allocation3 + $0x260] sm:$0xff] %v1326
        %1343 = vst [vmem:[#allocation3 + $0x2a8] sm:$0xff] %v1327
        %1344 = vst [vmem:[#allocation3 + $0x2f0] sm:$0xff] %v1328
        %1345 = vst [vmem:[#allocation3 + $0x338] sm:$0xff] %v1329
        %1346 = vst [vmem:[#allocation3 + $0x380] sm:$0xff] %v1330
        %1347 = vst [vmem:[#allocation3 + $0x3c8] sm:$0xff] %v1331
        %1348 = vst [vmem:[#allocation3 + $0x410] sm:$0xff] %v1332
        %1349 = vst [vmem:[#allocation3 + $0x458] sm:$0xff] %v1333
        %v1350 = vld [vmem:[%s467 + $0x8] sm:$0xff]
        %v1351 = vld [vmem:[%s467 + $0x10] sm:$0x1]
        %v1352 = vld [vmem:[%s467 + $0x20] sm:$0xff]
        %v1353 = vld [vmem:[%s467 + $0x28] sm:$0x1]
        %v1354 = vld [vmem:[%s467 + $0x38] sm:$0xff]
        %v1355 = vld [vmem:[%s467 + $0x40] sm:$0x1]
        %v1356 = vld [vmem:[%s467 + $0x50] sm:$0xff]
        %v1357 = vld [vmem:[%s467 + $0x58] sm:$0x1]
        %v1358 = vld [vmem:[%s467 + $0x68] sm:$0xff]
        %v1359 = vld [vmem:[%s467 + $0x70] sm:$0x1]
        %v1360 = vld [vmem:[%s467 + $0x80] sm:$0xff]
        %v1361 = vld [vmem:[%s467 + $0x88] sm:$0x1]
        %v1362 = vld [vmem:[%s467 + $0x98] sm:$0xff]
        %v1363 = vld [vmem:[%s467 + $0xa0] sm:$0x1]
        %v1364 = vld [vmem:[%s467 + $0xb0] sm:$0xff]
        %v1365 = vld [vmem:[%s467 + $0xb8] sm:$0x1]
        %v1366 = vld [vmem:[%s467 + $0xc8] sm:$0xff]
        %v1367 = vld [vmem:[%s467 + $0xd0] sm:$0x1]
        %v1368 = vld [vmem:[%s467 + $0xe0] sm:$0xff]
        %v1369 = vld [vmem:[%s467 + $0xe8] sm:$0x1]
        %v1370 = vld [vmem:[%s467 + $0xf8] sm:$0xff]
        %v1371 = vld [vmem:[%s467 + $0x100] sm:$0x1]
        %v1372 = vld [vmem:[%s467 + $0x110] sm:$0xff]
        %v1373 = vld [vmem:[%s467 + $0x118] sm:$0x1]
        %v1374 = vld [vmem:[%s467 + $0x128] sm:$0xff]
        %v1375 = vld [vmem:[%s467 + $0x130] sm:$0x1]
        %v1376 = vld [vmem:[%s467 + $0x140] sm:$0xff]
        %v1377 = vld [vmem:[%s467 + $0x148] sm:$0x1]
        %v1378 = vld [vmem:[%s467 + $0x158] sm:$0xff]
        %v1379 = vld [vmem:[%s467 + $0x160] sm:$0x1]
        %v1380 = vld [vmem:[%s467 + $0x170] sm:$0xff]
        %v1381 = vld [vmem:[%s467 + $0x178] sm:$0x1]
        %v1383 = vshrl.u32 %v1350, 16
        %v1385 = vshll.u32 %v1350, 16
        %v1387 = vrot.slane %v1385, 1
        %v1388 = vor.u32 %v1383, %v1387
        %v1390 = vshll.u32 %v1351, 16
        %v1392 = vrot.slane %v1390, 1
        %v1393 = vsel %vm837, %v1388, %v1392
        %v1395 = vshrl.u32 %v1352, 16
        %v1397 = vshll.u32 %v1352, 16
        %v1399 = vrot.slane %v1397, 1
        %v1400 = vor.u32 %v1395, %v1399
        %v1402 = vshll.u32 %v1353, 16
        %v1404 = vrot.slane %v1402, 1
        %v1405 = vsel %vm837, %v1400, %v1404
        %v1407 = vshrl.u32 %v1354, 16
        %v1409 = vshll.u32 %v1354, 16
        %v1411 = vrot.slane %v1409, 1
        %v1412 = vor.u32 %v1407, %v1411
        %v1414 = vshll.u32 %v1355, 16
        %v1416 = vrot.slane %v1414, 1
        %v1417 = vsel %vm837, %v1412, %v1416
        %v1419 = vshrl.u32 %v1356, 16
        %v1421 = vshll.u32 %v1356, 16
        %v1423 = vrot.slane %v1421, 1
        %v1424 = vor.u32 %v1419, %v1423
        %v1426 = vshll.u32 %v1357, 16
        %v1428 = vrot.slane %v1426, 1
        %v1429 = vsel %vm837, %v1424, %v1428
        %v1431 = vshrl.u32 %v1358, 16
        %v1433 = vshll.u32 %v1358, 16
        %v1435 = vrot.slane %v1433, 1
        %v1436 = vor.u32 %v1431, %v1435
        %v1438 = vshll.u32 %v1359, 16
        %v1440 = vrot.slane %v1438, 1
        %v1441 = vsel %vm837, %v1436, %v1440
        %v1443 = vshrl.u32 %v1360, 16
        %v1445 = vshll.u32 %v1360, 16
        %v1447 = vrot.slane %v1445, 1
        %v1448 = vor.u32 %v1443, %v1447
        %v1450 = vshll.u32 %v1361, 16
        %v1452 = vrot.slane %v1450, 1
        %v1453 = vsel %vm837, %v1448, %v1452
        %v1455 = vshrl.u32 %v1362, 16
        %v1457 = vshll.u32 %v1362, 16
        %v1459 = vrot.slane %v1457, 1
        %v1460 = vor.u32 %v1455, %v1459
        %v1462 = vshll.u32 %v1363, 16
        %v1464 = vrot.slane %v1462, 1
        %v1465 = vsel %vm837, %v1460, %v1464
        %v1467 = vshrl.u32 %v1364, 16
        %v1469 = vshll.u32 %v1364, 16
        %v1471 = vrot.slane %v1469, 1
        %v1472 = vor.u32 %v1467, %v1471
        %v1474 = vshll.u32 %v1365, 16
        %v1476 = vrot.slane %v1474, 1
        %v1477 = vsel %vm837, %v1472, %v1476
        %v1479 = vshrl.u32 %v1366, 16
        %v1481 = vshll.u32 %v1366, 16
        %v1483 = vrot.slane %v1481, 1
        %v1484 = vor.u32 %v1479, %v1483
        %v1486 = vshll.u32 %v1367, 16
        %v1488 = vrot.slane %v1486, 1
        %v1489 = vsel %vm837, %v1484, %v1488
        %v1491 = vshrl.u32 %v1368, 16
        %v1493 = vshll.u32 %v1368, 16
        %v1495 = vrot.slane %v1493, 1
        %v1496 = vor.u32 %v1491, %v1495
        %v1498 = vshll.u32 %v1369, 16
        %v1500 = vrot.slane %v1498, 1
        %v1501 = vsel %vm837, %v1496, %v1500
        %v1503 = vshrl.u32 %v1370, 16
        %v1505 = vshll.u32 %v1370, 16
        %v1507 = vrot.slane %v1505, 1
        %v1508 = vor.u32 %v1503, %v1507
        %v1510 = vshll.u32 %v1371, 16
        %v1512 = vrot.slane %v1510, 1
        %v1513 = vsel %vm837, %v1508, %v1512
        %v1515 = vshrl.u32 %v1372, 16
        %v1517 = vshll.u32 %v1372, 16
        %v1519 = vrot.slane %v1517, 1
        %v1520 = vor.u32 %v1515, %v1519
        %v1522 = vshll.u32 %v1373, 16
        %v1524 = vrot.slane %v1522, 1
        %v1525 = vsel %vm837, %v1520, %v1524
        %v1527 = vshrl.u32 %v1374, 16
        %v1529 = vshll.u32 %v1374, 16
        %v1531 = vrot.slane %v1529, 1
        %v1532 = vor.u32 %v1527, %v1531
        %v1534 = vshll.u32 %v1375, 16
        %v1536 = vrot.slane %v1534, 1
        %v1537 = vsel %vm837, %v1532, %v1536
        %v1539 = vshrl.u32 %v1376, 16
        %v1541 = vshll.u32 %v1376, 16
        %v1543 = vrot.slane %v1541, 1
        %v1544 = vor.u32 %v1539, %v1543
        %v1546 = vshll.u32 %v1377, 16
        %v1548 = vrot.slane %v1546, 1
        %v1549 = vsel %vm837, %v1544, %v1548
        %v1551 = vshrl.u32 %v1378, 16
        %v1553 = vshll.u32 %v1378, 16
        %v1555 = vrot.slane %v1553, 1
        %v1556 = vor.u32 %v1551, %v1555
        %v1558 = vshll.u32 %v1379, 16
        %v1560 = vrot.slane %v1558, 1
        %v1561 = vsel %vm837, %v1556, %v1560
        %v1563 = vshrl.u32 %v1380, 16
        %v1565 = vshll.u32 %v1380, 16
        %v1567 = vrot.slane %v1565, 1
        %v1568 = vor.u32 %v1563, %v1567
        %v1570 = vshll.u32 %v1381, 16
        %v1572 = vrot.slane %v1570, 1
        %v1573 = vsel %vm837, %v1568, %v1572
        %1590 = vst [vmem:[#allocation3 + $0x28] sm:$0xff] %v1393
        %1591 = vst [vmem:[#allocation3 + $0x70] sm:$0xff] %v1405
        %1592 = vst [vmem:[#allocation3 + $0xb8] sm:$0xff] %v1417
        %1593 = vst [vmem:[#allocation3 + $0x100] sm:$0xff] %v1429
        %1594 = vst [vmem:[#allocation3 + $0x148] sm:$0xff] %v1441
        %1595 = vst [vmem:[#allocation3 + $0x190] sm:$0xff] %v1453
        %1596 = vst [vmem:[#allocation3 + $0x1d8] sm:$0xff] %v1465
        %1597 = vst [vmem:[#allocation3 + $0x220] sm:$0xff] %v1477
        %1598 = vst [vmem:[#allocation3 + $0x268] sm:$0xff] %v1489
        %1599 = vst [vmem:[#allocation3 + $0x2b0] sm:$0xff] %v1501
        %1600 = vst [vmem:[#allocation3 + $0x2f8] sm:$0xff] %v1513
        %1601 = vst [vmem:[#allocation3 + $0x340] sm:$0xff] %v1525
        %1602 = vst [vmem:[#allocation3 + $0x388] sm:$0xff] %v1537
        %1603 = vst [vmem:[#allocation3 + $0x3d0] sm:$0xff] %v1549
        %1604 = vst [vmem:[#allocation3 + $0x418] sm:$0xff] %v1561
        %1605 = vst [vmem:[#allocation3 + $0x460] sm:$0xff] %v1573
        %s1606 = scalar_lea.vmem [#allocation2], 48
        %v1607 = vld [vmem:[%s1606] sm:$0x80]
        %v1608 = vld [vmem:[%s1606 + $0x8] sm:$0xff]
        %v1609 = vld [vmem:[%s1606 + $0x18] sm:$0x80]
        %v1610 = vld [vmem:[%s1606 + $0x20] sm:$0xff]
        %v1611 = vld [vmem:[%s1606 + $0x30] sm:$0x80]
        %v1612 = vld [vmem:[%s1606 + $0x38] sm:$0xff]
        %v1613 = vld [vmem:[%s1606 + $0x48] sm:$0x80]
        %v1614 = vld [vmem:[%s1606 + $0x50] sm:$0xff]
        %v1615 = vld [vmem:[%s1606 + $0x60] sm:$0x80]
        %v1616 = vld [vmem:[%s1606 + $0x68] sm:$0xff]
        %v1617 = vld [vmem:[%s1606 + $0x78] sm:$0x80]
        %v1618 = vld [vmem:[%s1606 + $0x80] sm:$0xff]
        %v1619 = vld [vmem:[%s1606 + $0x90] sm:$0x80]
        %v1620 = vld [vmem:[%s1606 + $0x98] sm:$0xff]
        %v1621 = vld [vmem:[%s1606 + $0xa8] sm:$0x80]
        %v1622 = vld [vmem:[%s1606 + $0xb0] sm:$0xff]
        %v1623 = vld [vmem:[%s1606 + $0xc0] sm:$0x80]
        %v1624 = vld [vmem:[%s1606 + $0xc8] sm:$0xff]
        %v1625 = vld [vmem:[%s1606 + $0xd8] sm:$0x80]
        %v1626 = vld [vmem:[%s1606 + $0xe0] sm:$0xff]
        %v1627 = vld [vmem:[%s1606 + $0xf0] sm:$0x80]
        %v1628 = vld [vmem:[%s1606 + $0xf8] sm:$0xff]
        %v1629 = vld [vmem:[%s1606 + $0x108] sm:$0x80]
        %v1630 = vld [vmem:[%s1606 + $0x110] sm:$0xff]
        %v1631 = vld [vmem:[%s1606 + $0x120] sm:$0x80]
        %v1632 = vld [vmem:[%s1606 + $0x128] sm:$0xff]
        %v1633 = vld [vmem:[%s1606 + $0x138] sm:$0x80]
        %v1634 = vld [vmem:[%s1606 + $0x140] sm:$0xff]
        %v1635 = vld [vmem:[%s1606 + $0x150] sm:$0x80]
        %v1636 = vld [vmem:[%s1606 + $0x158] sm:$0xff]
        %v1637 = vld [vmem:[%s1606 + $0x168] sm:$0x80]
        %v1638 = vld [vmem:[%s1606 + $0x170] sm:$0xff]
        %v1640 = vshrl.u32 %v1607, 16
        %v1642 = vrot.slane %v1640, 7
        %v1644 = vshrl.u32 %v1608, 16
        %v1646 = vrot.slane %v1644, 7
        %v1647 = vshll.u32 %v1608, 16
        %v1649 = vor.u32 %v1646, %v1647
        %v1650 = vsel %vm548, %v1642, %v1649
        %v1652 = vshrl.u32 %v1609, 16
        %v1654 = vrot.slane %v1652, 7
        %v1656 = vshrl.u32 %v1610, 16
        %v1658 = vrot.slane %v1656, 7
        %v1659 = vshll.u32 %v1610, 16
        %v1661 = vor.u32 %v1658, %v1659
        %v1662 = vsel %vm548, %v1654, %v1661
        %v1664 = vshrl.u32 %v1611, 16
        %v1666 = vrot.slane %v1664, 7
        %v1668 = vshrl.u32 %v1612, 16
        %v1670 = vrot.slane %v1668, 7
        %v1671 = vshll.u32 %v1612, 16
        %v1673 = vor.u32 %v1670, %v1671
        %v1674 = vsel %vm548, %v1666, %v1673
        %v1676 = vshrl.u32 %v1613, 16
        %v1678 = vrot.slane %v1676, 7
        %v1680 = vshrl.u32 %v1614, 16
        %v1682 = vrot.slane %v1680, 7
        %v1683 = vshll.u32 %v1614, 16
        %v1685 = vor.u32 %v1682, %v1683
        %v1686 = vsel %vm548, %v1678, %v1685
        %v1688 = vshrl.u32 %v1615, 16
        %v1690 = vrot.slane %v1688, 7
        %v1692 = vshrl.u32 %v1616, 16
        %v1694 = vrot.slane %v1692, 7
        %v1695 = vshll.u32 %v1616, 16
        %v1697 = vor.u32 %v1694, %v1695
        %v1698 = vsel %vm548, %v1690, %v1697
        %v1700 = vshrl.u32 %v1617, 16
        %v1702 = vrot.slane %v1700, 7
        %v1704 = vshrl.u32 %v1618, 16
        %v1706 = vrot.slane %v1704, 7
        %v1707 = vshll.u32 %v1618, 16
        %v1709 = vor.u32 %v1706, %v1707
        %v1710 = vsel %vm548, %v1702, %v1709
        %v1712 = vshrl.u32 %v1619, 16
        %v1714 = vrot.slane %v1712, 7
        %v1716 = vshrl.u32 %v1620, 16
        %v1718 = vrot.slane %v1716, 7
        %v1719 = vshll.u32 %v1620, 16
        %v1721 = vor.u32 %v1718, %v1719
        %v1722 = vsel %vm548, %v1714, %v1721
        %v1724 = vshrl.u32 %v1621, 16
        %v1726 = vrot.slane %v1724, 7
        %v1728 = vshrl.u32 %v1622, 16
        %v1730 = vrot.slane %v1728, 7
        %v1731 = vshll.u32 %v1622, 16
        %v1733 = vor.u32 %v1730, %v1731
        %v1734 = vsel %vm548, %v1726, %v1733
        %v1736 = vshrl.u32 %v1623, 16
        %v1738 = vrot.slane %v1736, 7
        %v1740 = vshrl.u32 %v1624, 16
        %v1742 = vrot.slane %v1740, 7
        %v1743 = vshll.u32 %v1624, 16
        %v1745 = vor.u32 %v1742, %v1743
        %v1746 = vsel %vm548, %v1738, %v1745
        %v1748 = vshrl.u32 %v1625, 16
        %v1750 = vrot.slane %v1748, 7
        %v1752 = vshrl.u32 %v1626, 16
        %v1754 = vrot.slane %v1752, 7
        %v1755 = vshll.u32 %v1626, 16
        %v1757 = vor.u32 %v1754, %v1755
        %v1758 = vsel %vm548, %v1750, %v1757
        %v1760 = vshrl.u32 %v1627, 16
        %v1762 = vrot.slane %v1760, 7
        %v1764 = vshrl.u32 %v1628, 16
        %v1766 = vrot.slane %v1764, 7
        %v1767 = vshll.u32 %v1628, 16
        %v1769 = vor.u32 %v1766, %v1767
        %v1770 = vsel %vm548, %v1762, %v1769
        %v1772 = vshrl.u32 %v1629, 16
        %v1774 = vrot.slane %v1772, 7
        %v1776 = vshrl.u32 %v1630, 16
        %v1778 = vrot.slane %v1776, 7
        %v1779 = vshll.u32 %v1630, 16
        %v1781 = vor.u32 %v1778, %v1779
        %v1782 = vsel %vm548, %v1774, %v1781
        %v1784 = vshrl.u32 %v1631, 16
        %v1786 = vrot.slane %v1784, 7
        %v1788 = vshrl.u32 %v1632, 16
        %v1790 = vrot.slane %v1788, 7
        %v1791 = vshll.u32 %v1632, 16
        %v1793 = vor.u32 %v1790, %v1791
        %v1794 = vsel %vm548, %v1786, %v1793
        %v1796 = vshrl.u32 %v1633, 16
        %v1798 = vrot.slane %v1796, 7
        %v1800 = vshrl.u32 %v1634, 16
        %v1802 = vrot.slane %v1800, 7
        %v1803 = vshll.u32 %v1634, 16
        %v1805 = vor.u32 %v1802, %v1803
        %v1806 = vsel %vm548, %v1798, %v1805
        %v1808 = vshrl.u32 %v1635, 16
        %v1810 = vrot.slane %v1808, 7
        %v1812 = vshrl.u32 %v1636, 16
        %v1814 = vrot.slane %v1812, 7
        %v1815 = vshll.u32 %v1636, 16
        %v1817 = vor.u32 %v1814, %v1815
        %v1818 = vsel %vm548, %v1810, %v1817
        %v1820 = vshrl.u32 %v1637, 16
        %v1822 = vrot.slane %v1820, 7
        %v1824 = vshrl.u32 %v1638, 16
        %v1826 = vrot.slane %v1824, 7
        %v1827 = vshll.u32 %v1638, 16
        %v1829 = vor.u32 %v1826, %v1827
        %v1830 = vsel %vm548, %v1822, %v1829
        %1847 = vst [vmem:[#allocation3 + $0x30] sm:$0xff] %v1650
        %1848 = vst [vmem:[#allocation3 + $0x78] sm:$0xff] %v1662
        %1849 = vst [vmem:[#allocation3 + $0xc0] sm:$0xff] %v1674
        %1850 = vst [vmem:[#allocation3 + $0x108] sm:$0xff] %v1686
        %1851 = vst [vmem:[#allocation3 + $0x150] sm:$0xff] %v1698
        %1852 = vst [vmem:[#allocation3 + $0x198] sm:$0xff] %v1710
        %1853 = vst [vmem:[#allocation3 + $0x1e0] sm:$0xff] %v1722
        %1854 = vst [vmem:[#allocation3 + $0x228] sm:$0xff] %v1734
        %1855 = vst [vmem:[#allocation3 + $0x270] sm:$0xff] %v1746
        %1856 = vst [vmem:[#allocation3 + $0x2b8] sm:$0xff] %v1758
        %1857 = vst [vmem:[#allocation3 + $0x300] sm:$0xff] %v1770
        %1858 = vst [vmem:[#allocation3 + $0x348] sm:$0xff] %v1782
        %1859 = vst [vmem:[#allocation3 + $0x390] sm:$0xff] %v1794
        %1860 = vst [vmem:[#allocation3 + $0x3d8] sm:$0xff] %v1806
        %1861 = vst [vmem:[#allocation3 + $0x420] sm:$0xff] %v1818
        %1862 = vst [vmem:[#allocation3 + $0x468] sm:$0xff] %v1830
        %v1863 = vld [vmem:[%s1606 + $0x8] sm:$0xff]
        %v1864 = vld [vmem:[%s1606 + $0x20] sm:$0xff]
        %v1865 = vld [vmem:[%s1606 + $0x38] sm:$0xff]
        %v1866 = vld [vmem:[%s1606 + $0x50] sm:$0xff]
        %v1867 = vld [vmem:[%s1606 + $0x68] sm:$0xff]
        %v1868 = vld [vmem:[%s1606 + $0x80] sm:$0xff]
        %v1869 = vld [vmem:[%s1606 + $0x98] sm:$0xff]
        %v1870 = vld [vmem:[%s1606 + $0xb0] sm:$0xff]
        %v1871 = vld [vmem:[%s1606 + $0xc8] sm:$0xff]
        %v1872 = vld [vmem:[%s1606 + $0xe0] sm:$0xff]
        %v1873 = vld [vmem:[%s1606 + $0xf8] sm:$0xff]
        %v1874 = vld [vmem:[%s1606 + $0x110] sm:$0xff]
        %v1875 = vld [vmem:[%s1606 + $0x128] sm:$0xff]
        %v1876 = vld [vmem:[%s1606 + $0x140] sm:$0xff]
        %v1877 = vld [vmem:[%s1606 + $0x158] sm:$0xff]
        %v1878 = vld [vmem:[%s1606 + $0x170] sm:$0xff]
        %1879 = vst [vmem:[#allocation3 + $0x38] sm:$0xff] %v1863
        %1880 = vst [vmem:[#allocation3 + $0x80] sm:$0xff] %v1864
        %1881 = vst [vmem:[#allocation3 + $0xc8] sm:$0xff] %v1865
        %1882 = vst [vmem:[#allocation3 + $0x110] sm:$0xff] %v1866
        %1883 = vst [vmem:[#allocation3 + $0x158] sm:$0xff] %v1867
        %1884 = vst [vmem:[#allocation3 + $0x1a0] sm:$0xff] %v1868
        %1885 = vst [vmem:[#allocation3 + $0x1e8] sm:$0xff] %v1869
        %1886 = vst [vmem:[#allocation3 + $0x230] sm:$0xff] %v1870
        %1887 = vst [vmem:[#allocation3 + $0x278] sm:$0xff] %v1871
        %1888 = vst [vmem:[#allocation3 + $0x2c0] sm:$0xff] %v1872
        %1889 = vst [vmem:[#allocation3 + $0x308] sm:$0xff] %v1873
        %1890 = vst [vmem:[#allocation3 + $0x350] sm:$0xff] %v1874
        %1891 = vst [vmem:[#allocation3 + $0x398] sm:$0xff] %v1875
        %1892 = vst [vmem:[#allocation3 + $0x3e0] sm:$0xff] %v1876
        %1893 = vst [vmem:[#allocation3 + $0x428] sm:$0xff] %v1877
        %1894 = vst [vmem:[#allocation3 + $0x470] sm:$0xff] %v1878
        %v1895 = vld [vmem:[%s1606 + $0x8] sm:$0xff]
        %v1896 = vld [vmem:[%s1606 + $0x10] sm:$0x1]
        %v1897 = vld [vmem:[%s1606 + $0x20] sm:$0xff]
        %v1898 = vld [vmem:[%s1606 + $0x28] sm:$0x1]
        %v1899 = vld [vmem:[%s1606 + $0x38] sm:$0xff]
        %v1900 = vld [vmem:[%s1606 + $0x40] sm:$0x1]
        %v1901 = vld [vmem:[%s1606 + $0x50] sm:$0xff]
        %v1902 = vld [vmem:[%s1606 + $0x58] sm:$0x1]
        %v1903 = vld [vmem:[%s1606 + $0x68] sm:$0xff]
        %v1904 = vld [vmem:[%s1606 + $0x70] sm:$0x1]
        %v1905 = vld [vmem:[%s1606 + $0x80] sm:$0xff]
        %v1906 = vld [vmem:[%s1606 + $0x88] sm:$0x1]
        %v1907 = vld [vmem:[%s1606 + $0x98] sm:$0xff]
        %v1908 = vld [vmem:[%s1606 + $0xa0] sm:$0x1]
        %v1909 = vld [vmem:[%s1606 + $0xb0] sm:$0xff]
        %v1910 = vld [vmem:[%s1606 + $0xb8] sm:$0x1]
        %v1911 = vld [vmem:[%s1606 + $0xc8] sm:$0xff]
        %v1912 = vld [vmem:[%s1606 + $0xd0] sm:$0x1]
        %v1913 = vld [vmem:[%s1606 + $0xe0] sm:$0xff]
        %v1914 = vld [vmem:[%s1606 + $0xe8] sm:$0x1]
        %v1915 = vld [vmem:[%s1606 + $0xf8] sm:$0xff]
        %v1916 = vld [vmem:[%s1606 + $0x100] sm:$0x1]
        %v1917 = vld [vmem:[%s1606 + $0x110] sm:$0xff]
        %v1918 = vld [vmem:[%s1606 + $0x118] sm:$0x1]
        %v1919 = vld [vmem:[%s1606 + $0x128] sm:$0xff]
        %v1920 = vld [vmem:[%s1606 + $0x130] sm:$0x1]
        %v1921 = vld [vmem:[%s1606 + $0x140] sm:$0xff]
        %v1922 = vld [vmem:[%s1606 + $0x148] sm:$0x1]
        %v1923 = vld [vmem:[%s1606 + $0x158] sm:$0xff]
        %v1924 = vld [vmem:[%s1606 + $0x160] sm:$0x1]
        %v1925 = vld [vmem:[%s1606 + $0x170] sm:$0xff]
        %v1926 = vld [vmem:[%s1606 + $0x178] sm:$0x1]
        %v1928 = vshrl.u32 %v1895, 16
        %v1930 = vshll.u32 %v1895, 16
        %v1932 = vrot.slane %v1930, 1
        %v1933 = vor.u32 %v1928, %v1932
        %v1935 = vshll.u32 %v1896, 16
        %v1937 = vrot.slane %v1935, 1
        %v1938 = vsel %vm837, %v1933, %v1937
        %v1940 = vshrl.u32 %v1897, 16
        %v1942 = vshll.u32 %v1897, 16
        %v1944 = vrot.slane %v1942, 1
        %v1945 = vor.u32 %v1940, %v1944
        %v1947 = vshll.u32 %v1898, 16
        %v1949 = vrot.slane %v1947, 1
        %v1950 = vsel %vm837, %v1945, %v1949
        %v1952 = vshrl.u32 %v1899, 16
        %v1954 = vshll.u32 %v1899, 16
        %v1956 = vrot.slane %v1954, 1
        %v1957 = vor.u32 %v1952, %v1956
        %v1959 = vshll.u32 %v1900, 16
        %v1961 = vrot.slane %v1959, 1
        %v1962 = vsel %vm837, %v1957, %v1961
        %v1964 = vshrl.u32 %v1901, 16
        %v1966 = vshll.u32 %v1901, 16
        %v1968 = vrot.slane %v1966, 1
        %v1969 = vor.u32 %v1964, %v1968
        %v1971 = vshll.u32 %v1902, 16
        %v1973 = vrot.slane %v1971, 1
        %v1974 = vsel %vm837, %v1969, %v1973
        %v1976 = vshrl.u32 %v1903, 16
        %v1978 = vshll.u32 %v1903, 16
        %v1980 = vrot.slane %v1978, 1
        %v1981 = vor.u32 %v1976, %v1980
        %v1983 = vshll.u32 %v1904, 16
        %v1985 = vrot.slane %v1983, 1
        %v1986 = vsel %vm837, %v1981, %v1985
        %v1988 = vshrl.u32 %v1905, 16
        %v1990 = vshll.u32 %v1905, 16
        %v1992 = vrot.slane %v1990, 1
        %v1993 = vor.u32 %v1988, %v1992
        %v1995 = vshll.u32 %v1906, 16
        %v1997 = vrot.slane %v1995, 1
        %v1998 = vsel %vm837, %v1993, %v1997
        %v2000 = vshrl.u32 %v1907, 16
        %v2002 = vshll.u32 %v1907, 16
        %v2004 = vrot.slane %v2002, 1
        %v2005 = vor.u32 %v2000, %v2004
        %v2007 = vshll.u32 %v1908, 16
        %v2009 = vrot.slane %v2007, 1
        %v2010 = vsel %vm837, %v2005, %v2009
        %v2012 = vshrl.u32 %v1909, 16
        %v2014 = vshll.u32 %v1909, 16
        %v2016 = vrot.slane %v2014, 1
        %v2017 = vor.u32 %v2012, %v2016
        %v2019 = vshll.u32 %v1910, 16
        %v2021 = vrot.slane %v2019, 1
        %v2022 = vsel %vm837, %v2017, %v2021
        %v2024 = vshrl.u32 %v1911, 16
        %v2026 = vshll.u32 %v1911, 16
        %v2028 = vrot.slane %v2026, 1
        %v2029 = vor.u32 %v2024, %v2028
        %v2031 = vshll.u32 %v1912, 16
        %v2033 = vrot.slane %v2031, 1
        %v2034 = vsel %vm837, %v2029, %v2033
        %v2036 = vshrl.u32 %v1913, 16
        %v2038 = vshll.u32 %v1913, 16
        %v2040 = vrot.slane %v2038, 1
        %v2041 = vor.u32 %v2036, %v2040
        %v2043 = vshll.u32 %v1914, 16
        %v2045 = vrot.slane %v2043, 1
        %v2046 = vsel %vm837, %v2041, %v2045
        %v2048 = vshrl.u32 %v1915, 16
        %v2050 = vshll.u32 %v1915, 16
        %v2052 = vrot.slane %v2050, 1
        %v2053 = vor.u32 %v2048, %v2052
        %v2055 = vshll.u32 %v1916, 16
        %v2057 = vrot.slane %v2055, 1
        %v2058 = vsel %vm837, %v2053, %v2057
        %v2060 = vshrl.u32 %v1917, 16
        %v2062 = vshll.u32 %v1917, 16
        %v2064 = vrot.slane %v2062, 1
        %v2065 = vor.u32 %v2060, %v2064
        %v2067 = vshll.u32 %v1918, 16
        %v2069 = vrot.slane %v2067, 1
        %v2070 = vsel %vm837, %v2065, %v2069
        %v2072 = vshrl.u32 %v1919, 16
        %v2074 = vshll.u32 %v1919, 16
        %v2076 = vrot.slane %v2074, 1
        %v2077 = vor.u32 %v2072, %v2076
        %v2079 = vshll.u32 %v1920, 16
        %v2081 = vrot.slane %v2079, 1
        %v2082 = vsel %vm837, %v2077, %v2081
        %v2084 = vshrl.u32 %v1921, 16
        %v2086 = vshll.u32 %v1921, 16
        %v2088 = vrot.slane %v2086, 1
        %v2089 = vor.u32 %v2084, %v2088
        %v2091 = vshll.u32 %v1922, 16
        %v2093 = vrot.slane %v2091, 1
        %v2094 = vsel %vm837, %v2089, %v2093
        %v2096 = vshrl.u32 %v1923, 16
        %v2098 = vshll.u32 %v1923, 16
        %v2100 = vrot.slane %v2098, 1
        %v2101 = vor.u32 %v2096, %v2100
        %v2103 = vshll.u32 %v1924, 16
        %v2105 = vrot.slane %v2103, 1
        %v2106 = vsel %vm837, %v2101, %v2105
        %v2108 = vshrl.u32 %v1925, 16
        %v2110 = vshll.u32 %v1925, 16
        %v2112 = vrot.slane %v2110, 1
        %v2113 = vor.u32 %v2108, %v2112
        %v2115 = vshll.u32 %v1926, 16
        %v2117 = vrot.slane %v2115, 1
        %v2118 = vsel %vm837, %v2113, %v2117
        %2135 = vst [vmem:[#allocation3 + $0x40] sm:$0xff] %v1938
        %2136 = vst [vmem:[#allocation3 + $0x88] sm:$0xff] %v1950
        %2137 = vst [vmem:[#allocation3 + $0xd0] sm:$0xff] %v1962
        %2138 = vst [vmem:[#allocation3 + $0x118] sm:$0xff] %v1974
        %2139 = vst [vmem:[#allocation3 + $0x160] sm:$0xff] %v1986
        %2140 = vst [vmem:[#allocation3 + $0x1a8] sm:$0xff] %v1998
        %2141 = vst [vmem:[#allocation3 + $0x1f0] sm:$0xff] %v2010
        %2142 = vst [vmem:[#allocation3 + $0x238] sm:$0xff] %v2022
        %2143 = vst [vmem:[#allocation3 + $0x280] sm:$0xff] %v2034
        %2144 = vst [vmem:[#allocation3 + $0x2c8] sm:$0xff] %v2046
        %2145 = vst [vmem:[#allocation3 + $0x310] sm:$0xff] %v2058
        %2146 = vst [vmem:[#allocation3 + $0x358] sm:$0xff] %v2070
        %2147 = vst [vmem:[#allocation3 + $0x3a0] sm:$0xff] %v2082
        %2148 = vst [vmem:[#allocation3 + $0x3e8] sm:$0xff] %v2094
        %2149 = vst [vmem:[#allocation3 + $0x430] sm:$0xff] %v2106
        %2150 = vst [vmem:[#allocation3 + $0x478] sm:$0xff] %v2118
        %v2151 = vld [vmem:[#allocation3] sm:$0xff]
        %v2152 = vld [vmem:[#allocation3 + $0x8] sm:$0xff]
        %v2153 = vld [vmem:[#allocation3 + $0x10] sm:$0xff]
        %v2154 = vld [vmem:[#allocation3 + $0x18] sm:$0xff]
        %v2155 = vld [vmem:[#allocation3 + $0x20] sm:$0xff]
        %v2156 = vld [vmem:[#allocation3 + $0x28] sm:$0xff]
        %v2157 = vld [vmem:[#allocation3 + $0x30] sm:$0xff]
        %v2158 = vld [vmem:[#allocation3 + $0x38] sm:$0xff]
        %v2159 = vld [vmem:[#allocation3 + $0x40] sm:$0xff]
        %v2160 = vld [vmem:[#allocation3 + $0x48] sm:$0xff]
        %v2161 = vld [vmem:[#allocation3 + $0x50] sm:$0xff]
        %v2162 = vld [vmem:[#allocation3 + $0x58] sm:$0xff]
        %v2163 = vld [vmem:[#allocation3 + $0x60] sm:$0xff]
        %v2164 = vld [vmem:[#allocation3 + $0x68] sm:$0xff]
        %v2165 = vld [vmem:[#allocation3 + $0x70] sm:$0xff]
        %v2166 = vld [vmem:[#allocation3 + $0x78] sm:$0xff]
        %v2167 = vld [vmem:[#allocation3 + $0x80] sm:$0xff]
        %v2168 = vld [vmem:[#allocation3 + $0x88] sm:$0xff]
        %v2169 = vld [vmem:[#allocation3 + $0x90] sm:$0xff]
        %v2170 = vld [vmem:[#allocation3 + $0x98] sm:$0xff]
        %v2171 = vld [vmem:[#allocation3 + $0xa0] sm:$0xff]
        %v2172 = vld [vmem:[#allocation3 + $0xa8] sm:$0xff]
        %v2173 = vld [vmem:[#allocation3 + $0xb0] sm:$0xff]
        %v2174 = vld [vmem:[#allocation3 + $0xb8] sm:$0xff]
        %v2175 = vld [vmem:[#allocation3 + $0xc0] sm:$0xff]
        %v2176 = vld [vmem:[#allocation3 + $0xc8] sm:$0xff]
        %v2177 = vld [vmem:[#allocation3 + $0xd0] sm:$0xff]
        %v2178 = vld [vmem:[#allocation3 + $0xd8] sm:$0xff]
        %v2179 = vld [vmem:[#allocation3 + $0xe0] sm:$0xff]
        %v2180 = vld [vmem:[#allocation3 + $0xe8] sm:$0xff]
        %v2181 = vld [vmem:[#allocation3 + $0xf0] sm:$0xff]
        %v2182 = vld [vmem:[#allocation3 + $0xf8] sm:$0xff]
        %v2183 = vld [vmem:[#allocation3 + $0x100] sm:$0xff]
        %v2184 = vld [vmem:[#allocation3 + $0x108] sm:$0xff]
        %v2185 = vld [vmem:[#allocation3 + $0x110] sm:$0xff]
        %v2186 = vld [vmem:[#allocation3 + $0x118] sm:$0xff]
        %v2187 = vld [vmem:[#allocation3 + $0x120] sm:$0xff]
        %v2188 = vld [vmem:[#allocation3 + $0x128] sm:$0xff]
        %v2189 = vld [vmem:[#allocation3 + $0x130] sm:$0xff]
        %v2190 = vld [vmem:[#allocation3 + $0x138] sm:$0xff]
        %v2191 = vld [vmem:[#allocation3 + $0x140] sm:$0xff]
        %v2192 = vld [vmem:[#allocation3 + $0x148] sm:$0xff]
        %v2193 = vld [vmem:[#allocation3 + $0x150] sm:$0xff]
        %v2194 = vld [vmem:[#allocation3 + $0x158] sm:$0xff]
        %v2195 = vld [vmem:[#allocation3 + $0x160] sm:$0xff]
        %v2196 = vld [vmem:[#allocation3 + $0x168] sm:$0xff]
        %v2197 = vld [vmem:[#allocation3 + $0x170] sm:$0xff]
        %v2198 = vld [vmem:[#allocation3 + $0x178] sm:$0xff]
        %v2199 = vld [vmem:[#allocation3 + $0x180] sm:$0xff]
        %v2200 = vld [vmem:[#allocation3 + $0x188] sm:$0xff]
        %v2201 = vld [vmem:[#allocation3 + $0x190] sm:$0xff]
        %v2202 = vld [vmem:[#allocation3 + $0x198] sm:$0xff]
        %v2203 = vld [vmem:[#allocation3 + $0x1a0] sm:$0xff]
        %v2204 = vld [vmem:[#allocation3 + $0x1a8] sm:$0xff]
        %v2205 = vld [vmem:[#allocation3 + $0x1b0] sm:$0xff]
        %v2206 = vld [vmem:[#allocation3 + $0x1b8] sm:$0xff]
        %v2207 = vld [vmem:[#allocation3 + $0x1c0] sm:$0xff]
        %v2208 = vld [vmem:[#allocation3 + $0x1c8] sm:$0xff]
        %v2209 = vld [vmem:[#allocation3 + $0x1d0] sm:$0xff]
        %v2210 = vld [vmem:[#allocation3 + $0x1d8] sm:$0xff]
        %v2211 = vld [vmem:[#allocation3 + $0x1e0] sm:$0xff]
        %v2212 = vld [vmem:[#allocation3 + $0x1e8] sm:$0xff]
        %v2213 = vld [vmem:[#allocation3 + $0x1f0] sm:$0xff]
        %v2214 = vld [vmem:[#allocation3 + $0x1f8] sm:$0xff]
        %v2215 = vld [vmem:[#allocation3 + $0x200] sm:$0xff]
        %v2216 = vld [vmem:[#allocation3 + $0x208] sm:$0xff]
        %v2217 = vld [vmem:[#allocation3 + $0x210] sm:$0xff]
        %v2218 = vld [vmem:[#allocation3 + $0x218] sm:$0xff]
        %v2219 = vld [vmem:[#allocation3 + $0x220] sm:$0xff]
        %v2220 = vld [vmem:[#allocation3 + $0x228] sm:$0xff]
        %v2221 = vld [vmem:[#allocation3 + $0x230] sm:$0xff]
        %v2222 = vld [vmem:[#allocation3 + $0x238] sm:$0xff]
        %v2223 = vld [vmem:[#allocation3 + $0x240] sm:$0xff]
        %v2224 = vld [vmem:[#allocation3 + $0x248] sm:$0xff]
        %v2225 = vld [vmem:[#allocation3 + $0x250] sm:$0xff]
        %v2226 = vld [vmem:[#allocation3 + $0x258] sm:$0xff]
        %v2227 = vld [vmem:[#allocation3 + $0x260] sm:$0xff]
        %v2228 = vld [vmem:[#allocation3 + $0x268] sm:$0xff]
        %v2229 = vld [vmem:[#allocation3 + $0x270] sm:$0xff]
        %v2230 = vld [vmem:[#allocation3 + $0x278] sm:$0xff]
        %v2231 = vld [vmem:[#allocation3 + $0x280] sm:$0xff]
        %v2232 = vld [vmem:[#allocation3 + $0x288] sm:$0xff]
        %v2233 = vld [vmem:[#allocation3 + $0x290] sm:$0xff]
        %v2234 = vld [vmem:[#allocation3 + $0x298] sm:$0xff]
        %v2235 = vld [vmem:[#allocation3 + $0x2a0] sm:$0xff]
        %v2236 = vld [vmem:[#allocation3 + $0x2a8] sm:$0xff]
        %v2237 = vld [vmem:[#allocation3 + $0x2b0] sm:$0xff]
        %v2238 = vld [vmem:[#allocation3 + $0x2b8] sm:$0xff]
        %v2239 = vld [vmem:[#allocation3 + $0x2c0] sm:$0xff]
        %v2240 = vld [vmem:[#allocation3 + $0x2c8] sm:$0xff]
        %v2241 = vld [vmem:[#allocation3 + $0x2d0] sm:$0xff]
        %v2242 = vld [vmem:[#allocation3 + $0x2d8] sm:$0xff]
        %v2243 = vld [vmem:[#allocation3 + $0x2e0] sm:$0xff]
        %v2244 = vld [vmem:[#allocation3 + $0x2e8] sm:$0xff]
        %v2245 = vld [vmem:[#allocation3 + $0x2f0] sm:$0xff]
        %v2246 = vld [vmem:[#allocation3 + $0x2f8] sm:$0xff]
        %v2247 = vld [vmem:[#allocation3 + $0x300] sm:$0xff]
        %v2248 = vld [vmem:[#allocation3 + $0x308] sm:$0xff]
        %v2249 = vld [vmem:[#allocation3 + $0x310] sm:$0xff]
        %v2250 = vld [vmem:[#allocation3 + $0x318] sm:$0xff]
        %v2251 = vld [vmem:[#allocation3 + $0x320] sm:$0xff]
        %v2252 = vld [vmem:[#allocation3 + $0x328] sm:$0xff]
        %v2253 = vld [vmem:[#allocation3 + $0x330] sm:$0xff]
        %v2254 = vld [vmem:[#allocation3 + $0x338] sm:$0xff]
        %v2255 = vld [vmem:[#allocation3 + $0x340] sm:$0xff]
        %v2256 = vld [vmem:[#allocation3 + $0x348] sm:$0xff]
        %v2257 = vld [vmem:[#allocation3 + $0x350] sm:$0xff]
        %v2258 = vld [vmem:[#allocation3 + $0x358] sm:$0xff]
        %v2259 = vld [vmem:[#allocation3 + $0x360] sm:$0xff]
        %v2260 = vld [vmem:[#allocation3 + $0x368] sm:$0xff]
        %v2261 = vld [vmem:[#allocation3 + $0x370] sm:$0xff]
        %v2262 = vld [vmem:[#allocation3 + $0x378] sm:$0xff]
        %v2263 = vld [vmem:[#allocation3 + $0x380] sm:$0xff]
        %v2264 = vld [vmem:[#allocation3 + $0x388] sm:$0xff]
        %v2265 = vld [vmem:[#allocation3 + $0x390] sm:$0xff]
        %v2266 = vld [vmem:[#allocation3 + $0x398] sm:$0xff]
        %v2267 = vld [vmem:[#allocation3 + $0x3a0] sm:$0xff]
        %v2268 = vld [vmem:[#allocation3 + $0x3a8] sm:$0xff]
        %v2269 = vld [vmem:[#allocation3 + $0x3b0] sm:$0xff]
        %v2270 = vld [vmem:[#allocation3 + $0x3b8] sm:$0xff]
        %v2271 = vld [vmem:[#allocation3 + $0x3c0] sm:$0xff]
        %v2272 = vld [vmem:[#allocation3 + $0x3c8] sm:$0xff]
        %v2273 = vld [vmem:[#allocation3 + $0x3d0] sm:$0xff]
        %v2274 = vld [vmem:[#allocation3 + $0x3d8] sm:$0xff]
        %v2275 = vld [vmem:[#allocation3 + $0x3e0] sm:$0xff]
        %v2276 = vld [vmem:[#allocation3 + $0x3e8] sm:$0xff]
        %v2277 = vld [vmem:[#allocation3 + $0x3f0] sm:$0xff]
        %v2278 = vld [vmem:[#allocation3 + $0x3f8] sm:$0xff]
        %v2279 = vld [vmem:[#allocation3 + $0x400] sm:$0xff]
        %v2280 = vld [vmem:[#allocation3 + $0x408] sm:$0xff]
        %v2281 = vld [vmem:[#allocation3 + $0x410] sm:$0xff]
        %v2282 = vld [vmem:[#allocation3 + $0x418] sm:$0xff]
        %v2283 = vld [vmem:[#allocation3 + $0x420] sm:$0xff]
        %v2284 = vld [vmem:[#allocation3 + $0x428] sm:$0xff]
        %v2285 = vld [vmem:[#allocation3 + $0x430] sm:$0xff]
        %v2286 = vld [vmem:[#allocation3 + $0x438] sm:$0xff]
        %v2287 = vld [vmem:[#allocation3 + $0x440] sm:$0xff]
        %v2288 = vld [vmem:[#allocation3 + $0x448] sm:$0xff]
        %v2289 = vld [vmem:[#allocation3 + $0x450] sm:$0xff]
        %v2290 = vld [vmem:[#allocation3 + $0x458] sm:$0xff]
        %v2291 = vld [vmem:[#allocation3 + $0x460] sm:$0xff]
        %v2292 = vld [vmem:[#allocation3 + $0x468] sm:$0xff]
        %v2293 = vld [vmem:[#allocation3 + $0x470] sm:$0xff]
        %v2294 = vld [vmem:[#allocation3 + $0x478] sm:$0xff]
        %v2295 = vld [vmem:[#allocation7] sm:$0xf]
        %v2296 = vld [vmem:[#allocation7 + $0x4] sm:$0xf]
        %v2297 = vld [vmem:[#allocation7 + $0x8] sm:$0xf]
        %v2298 = vld [vmem:[#allocation7 + $0xc] sm:$0xf]
        %v2299 = vld [vmem:[#allocation7 + $0x10] sm:$0xf]
        %v2300 = vld [vmem:[#allocation7 + $0x14] sm:$0xf]
        %v2301 = vld [vmem:[#allocation7 + $0x18] sm:$0xf]
        %v2302 = vld [vmem:[#allocation7 + $0x1c] sm:$0xf]
        %v2303 = vld [vmem:[#allocation7 + $0x20] sm:$0xf]
        %v2304 = vld [vmem:[#allocation7 + $0x24] sm:$0xf]
        %v2305 = vld [vmem:[#allocation7 + $0x28] sm:$0xf]
        %v2306 = vld [vmem:[#allocation7 + $0x2c] sm:$0xf]
        %v2307 = vld [vmem:[#allocation7 + $0x30] sm:$0xf]
        %v2308 = vld [vmem:[#allocation7 + $0x34] sm:$0xf]
        %v2309 = vld [vmem:[#allocation7 + $0x38] sm:$0xf]
        %v2310 = vld [vmem:[#allocation7 + $0x3c] sm:$0xf]
        %v2311 = vld [vmem:[#allocation7 + $0x40] sm:$0xf]
        %v2312 = vld [vmem:[#allocation7 + $0x44] sm:$0xf]
        %v2313 = vld [vmem:[#allocation7 + $0x48] sm:$0xf]
        %v2314 = vld [vmem:[#allocation7 + $0x4c] sm:$0xf]
        %v2315 = vld [vmem:[#allocation7 + $0x50] sm:$0xf]
        %v2316 = vld [vmem:[#allocation7 + $0x54] sm:$0xf]
        %v2317 = vld [vmem:[#allocation7 + $0x58] sm:$0xf]
        %v2318 = vld [vmem:[#allocation7 + $0x5c] sm:$0xf]
        %v2319 = vld [vmem:[#allocation7 + $0x60] sm:$0xf]
        %v2320 = vld [vmem:[#allocation7 + $0x64] sm:$0xf]
        %v2321 = vld [vmem:[#allocation7 + $0x68] sm:$0xf]
        %v2322 = vld [vmem:[#allocation7 + $0x6c] sm:$0xf]
        %v2323 = vld [vmem:[#allocation7 + $0x70] sm:$0xf]
        %v2324 = vld [vmem:[#allocation7 + $0x74] sm:$0xf]
        %v2325 = vld [vmem:[#allocation7 + $0x78] sm:$0xf]
        %v2326 = vld [vmem:[#allocation7 + $0x7c] sm:$0xf]
        %v2327 = vld [vmem:[#allocation7 + $0x80] sm:$0xf]
        %v2328 = vld [vmem:[#allocation7 + $0x84] sm:$0xf]
        %v2329 = vld [vmem:[#allocation7 + $0x88] sm:$0xf]
        %v2330 = vld [vmem:[#allocation7 + $0x8c] sm:$0xf]
        %v2331 = vld [vmem:[#allocation7 + $0x90] sm:$0xf]
        %v2332 = vld [vmem:[#allocation7 + $0x94] sm:$0xf]
        %v2333 = vld [vmem:[#allocation7 + $0x98] sm:$0xf]
        %v2334 = vld [vmem:[#allocation7 + $0x9c] sm:$0xf]
        %v2335 = vld [vmem:[#allocation7 + $0xa0] sm:$0xf]
        %v2336 = vld [vmem:[#allocation7 + $0xa4] sm:$0xf]
        %v2337 = vld [vmem:[#allocation7 + $0xa8] sm:$0xf]
        %v2338 = vld [vmem:[#allocation7 + $0xac] sm:$0xf]
        %v2339 = vld [vmem:[#allocation7 + $0xb0] sm:$0xf]
        %v2340 = vld [vmem:[#allocation7 + $0xb4] sm:$0xf]
        %v2341 = vld [vmem:[#allocation7 + $0xb8] sm:$0xf]
        %v2342 = vld [vmem:[#allocation7 + $0xbc] sm:$0xf]
        %v2343 = vld [vmem:[#allocation7 + $0xc0] sm:$0xf]
        %v2344 = vld [vmem:[#allocation7 + $0xc4] sm:$0xf]
        %v2345 = vld [vmem:[#allocation7 + $0xc8] sm:$0xf]
        %v2346 = vld [vmem:[#allocation7 + $0xcc] sm:$0xf]
        %v2347 = vld [vmem:[#allocation7 + $0xd0] sm:$0xf]
        %v2348 = vld [vmem:[#allocation7 + $0xd4] sm:$0xf]
        %v2349 = vld [vmem:[#allocation7 + $0xd8] sm:$0xf]
        %v2350 = vld [vmem:[#allocation7 + $0xdc] sm:$0xf]
        %v2351 = vld [vmem:[#allocation7 + $0xe0] sm:$0xf]
        %v2352 = vld [vmem:[#allocation7 + $0xe4] sm:$0xf]
        %v2353 = vld [vmem:[#allocation7 + $0xe8] sm:$0xf]
        %v2354 = vld [vmem:[#allocation7 + $0xec] sm:$0xf]
        %v2355 = vld [vmem:[#allocation7 + $0xf0] sm:$0xf]
        %v2356 = vld [vmem:[#allocation7 + $0xf4] sm:$0xf]
        %v2357 = vld [vmem:[#allocation7 + $0xf8] sm:$0xf]
        %v2358 = vld [vmem:[#allocation7 + $0xfc] sm:$0xf]
        %v2359 = vld [vmem:[#allocation7 + $0x100] sm:$0xf]
        %v2360 = vld [vmem:[#allocation7 + $0x104] sm:$0xf]
        %v2361 = vld [vmem:[#allocation7 + $0x108] sm:$0xf]
        %v2362 = vld [vmem:[#allocation7 + $0x10c] sm:$0xf]
        %v2363 = vld [vmem:[#allocation7 + $0x110] sm:$0xf]
        %v2364 = vld [vmem:[#allocation7 + $0x114] sm:$0xf]
        %v2365 = vld [vmem:[#allocation7 + $0x118] sm:$0xf]
        %v2366 = vld [vmem:[#allocation7 + $0x11c] sm:$0xf]
        %v2367 = vld [vmem:[#allocation7 + $0x120] sm:$0xf]
        %v2368 = vld [vmem:[#allocation7 + $0x124] sm:$0xf]
        %v2369 = vld [vmem:[#allocation7 + $0x128] sm:$0xf]
        %v2370 = vld [vmem:[#allocation7 + $0x12c] sm:$0xf]
        %v2371 = vld [vmem:[#allocation7 + $0x130] sm:$0xf]
        %v2372 = vld [vmem:[#allocation7 + $0x134] sm:$0xf]
        %v2373 = vld [vmem:[#allocation7 + $0x138] sm:$0xf]
        %v2374 = vld [vmem:[#allocation7 + $0x13c] sm:$0xf]
        %v2375 = vld [vmem:[#allocation7 + $0x140] sm:$0xf]
        %v2376 = vld [vmem:[#allocation7 + $0x144] sm:$0xf]
        %v2377 = vld [vmem:[#allocation7 + $0x148] sm:$0xf]
        %v2378 = vld [vmem:[#allocation7 + $0x14c] sm:$0xf]
        %v2379 = vld [vmem:[#allocation7 + $0x150] sm:$0xf]
        %v2380 = vld [vmem:[#allocation7 + $0x154] sm:$0xf]
        %v2381 = vld [vmem:[#allocation7 + $0x158] sm:$0xf]
        %v2382 = vld [vmem:[#allocation7 + $0x15c] sm:$0xf]
        %v2383 = vld [vmem:[#allocation7 + $0x160] sm:$0xf]
        %v2384 = vld [vmem:[#allocation7 + $0x164] sm:$0xf]
        %v2385 = vld [vmem:[#allocation7 + $0x168] sm:$0xf]
        %v2386 = vld [vmem:[#allocation7 + $0x16c] sm:$0xf]
        %v2387 = vld [vmem:[#allocation7 + $0x170] sm:$0xf]
        %v2388 = vld [vmem:[#allocation7 + $0x174] sm:$0xf]
        %v2389 = vld [vmem:[#allocation7 + $0x178] sm:$0xf]
        %v2390 = vld [vmem:[#allocation7 + $0x17c] sm:$0xf]
        %v2391 = vld [vmem:[#allocation7 + $0x180] sm:$0xf]
        %v2392 = vld [vmem:[#allocation7 + $0x184] sm:$0xf]
        %v2393 = vld [vmem:[#allocation7 + $0x188] sm:$0xf]
        %v2394 = vld [vmem:[#allocation7 + $0x18c] sm:$0xf]
        %v2395 = vld [vmem:[#allocation7 + $0x190] sm:$0xf]
        %v2396 = vld [vmem:[#allocation7 + $0x194] sm:$0xf]
        %v2397 = vld [vmem:[#allocation7 + $0x198] sm:$0xf]
        %v2398 = vld [vmem:[#allocation7 + $0x19c] sm:$0xf]
        %v2399 = vld [vmem:[#allocation7 + $0x1a0] sm:$0xf]
        %v2400 = vld [vmem:[#allocation7 + $0x1a4] sm:$0xf]
        %v2401 = vld [vmem:[#allocation7 + $0x1a8] sm:$0xf]
        %v2402 = vld [vmem:[#allocation7 + $0x1ac] sm:$0xf]
        %v2403 = vld [vmem:[#allocation7 + $0x1b0] sm:$0xf]
        %v2404 = vld [vmem:[#allocation7 + $0x1b4] sm:$0xf]
        %v2405 = vld [vmem:[#allocation7 + $0x1b8] sm:$0xf]
        %v2406 = vld [vmem:[#allocation7 + $0x1bc] sm:$0xf]
        %v2407 = vld [vmem:[#allocation7 + $0x1c0] sm:$0xf]
        %v2408 = vld [vmem:[#allocation7 + $0x1c4] sm:$0xf]
        %v2409 = vld [vmem:[#allocation7 + $0x1c8] sm:$0xf]
        %v2410 = vld [vmem:[#allocation7 + $0x1cc] sm:$0xf]
        %v2411 = vld [vmem:[#allocation7 + $0x1d0] sm:$0xf]
        %v2412 = vld [vmem:[#allocation7 + $0x1d4] sm:$0xf]
        %v2413 = vld [vmem:[#allocation7 + $0x1d8] sm:$0xf]
        %v2414 = vld [vmem:[#allocation7 + $0x1dc] sm:$0xf]
        %v2415 = vld [vmem:[#allocation7 + $0x1e0] sm:$0xf]
        %v2416 = vld [vmem:[#allocation7 + $0x1e4] sm:$0xf]
        %v2417 = vld [vmem:[#allocation7 + $0x1e8] sm:$0xf]
        %v2418 = vld [vmem:[#allocation7 + $0x1ec] sm:$0xf]
        %v2419 = vld [vmem:[#allocation7 + $0x1f0] sm:$0xf]
        %v2420 = vld [vmem:[#allocation7 + $0x1f4] sm:$0xf]
        %v2421 = vld [vmem:[#allocation7 + $0x1f8] sm:$0xf]
        %v2422 = vld [vmem:[#allocation7 + $0x1fc] sm:$0xf]
        %v2423 = vld [vmem:[#allocation7 + $0x200] sm:$0xf]
        %v2424 = vld [vmem:[#allocation7 + $0x204] sm:$0xf]
        %v2425 = vld [vmem:[#allocation7 + $0x208] sm:$0xf]
        %v2426 = vld [vmem:[#allocation7 + $0x20c] sm:$0xf]
        %v2427 = vld [vmem:[#allocation7 + $0x210] sm:$0xf]
        %v2428 = vld [vmem:[#allocation7 + $0x214] sm:$0xf]
        %v2429 = vld [vmem:[#allocation7 + $0x218] sm:$0xf]
        %v2430 = vld [vmem:[#allocation7 + $0x21c] sm:$0xf]
        %v2431 = vld [vmem:[#allocation7 + $0x220] sm:$0xf]
        %v2432 = vld [vmem:[#allocation7 + $0x224] sm:$0xf]
        %v2433 = vld [vmem:[#allocation7 + $0x228] sm:$0xf]
        %v2434 = vld [vmem:[#allocation7 + $0x22c] sm:$0xf]
        %v2435 = vld [vmem:[#allocation7 + $0x230] sm:$0xf]
        %v2436 = vld [vmem:[#allocation7 + $0x234] sm:$0xf]
        %v2437 = vld [vmem:[#allocation7 + $0x238] sm:$0xf]
        %v2438 = vld [vmem:[#allocation7 + $0x23c] sm:$0xf]
        %v2583 = vunpack.c.l.b16 %v2295
        %v2584 = vunpack.c.l.b16 %v2296
        %v2585 = vunpack.c.l.b16 %v2297
        %v2586 = vunpack.c.l.b16 %v2298
        %v2587 = vunpack.c.l.b16 %v2299
        %v2588 = vunpack.c.l.b16 %v2300
        %v2589 = vunpack.c.l.b16 %v2301
        %v2590 = vunpack.c.l.b16 %v2302
        %v2591 = vunpack.c.l.b16 %v2303
        %v2592 = vunpack.c.l.b16 %v2304
        %v2593 = vunpack.c.l.b16 %v2305
        %v2594 = vunpack.c.l.b16 %v2306
        %v2595 = vunpack.c.l.b16 %v2307
        %v2596 = vunpack.c.l.b16 %v2308
        %v2597 = vunpack.c.l.b16 %v2309
        %v2598 = vunpack.c.l.b16 %v2310
        %v2599 = vunpack.c.l.b16 %v2311
        %v2600 = vunpack.c.l.b16 %v2312
        %v2601 = vunpack.c.l.b16 %v2313
        %v2602 = vunpack.c.l.b16 %v2314
        %v2603 = vunpack.c.l.b16 %v2315
        %v2604 = vunpack.c.l.b16 %v2316
        %v2605 = vunpack.c.l.b16 %v2317
        %v2606 = vunpack.c.l.b16 %v2318
        %v2607 = vunpack.c.l.b16 %v2319
        %v2608 = vunpack.c.l.b16 %v2320
        %v2609 = vunpack.c.l.b16 %v2321
        %v2610 = vunpack.c.l.b16 %v2322
        %v2611 = vunpack.c.l.b16 %v2323
        %v2612 = vunpack.c.l.b16 %v2324
        %v2613 = vunpack.c.l.b16 %v2325
        %v2614 = vunpack.c.l.b16 %v2326
        %v2615 = vunpack.c.l.b16 %v2327
        %v2616 = vunpack.c.l.b16 %v2328
        %v2617 = vunpack.c.l.b16 %v2329
        %v2618 = vunpack.c.l.b16 %v2330
        %v2619 = vunpack.c.l.b16 %v2331
        %v2620 = vunpack.c.l.b16 %v2332
        %v2621 = vunpack.c.l.b16 %v2333
        %v2622 = vunpack.c.l.b16 %v2334
        %v2623 = vunpack.c.l.b16 %v2335
        %v2624 = vunpack.c.l.b16 %v2336
        %v2625 = vunpack.c.l.b16 %v2337
        %v2626 = vunpack.c.l.b16 %v2338
        %v2627 = vunpack.c.l.b16 %v2339
        %v2628 = vunpack.c.l.b16 %v2340
        %v2629 = vunpack.c.l.b16 %v2341
        %v2630 = vunpack.c.l.b16 %v2342
        %v2631 = vunpack.c.l.b16 %v2343
        %v2632 = vunpack.c.l.b16 %v2344
        %v2633 = vunpack.c.l.b16 %v2345
        %v2634 = vunpack.c.l.b16 %v2346
        %v2635 = vunpack.c.l.b16 %v2347
        %v2636 = vunpack.c.l.b16 %v2348
        %v2637 = vunpack.c.l.b16 %v2349
        %v2638 = vunpack.c.l.b16 %v2350
        %v2639 = vunpack.c.l.b16 %v2351
        %v2640 = vunpack.c.l.b16 %v2352
        %v2641 = vunpack.c.l.b16 %v2353
        %v2642 = vunpack.c.l.b16 %v2354
        %v2643 = vunpack.c.l.b16 %v2355
        %v2644 = vunpack.c.l.b16 %v2356
        %v2645 = vunpack.c.l.b16 %v2357
        %v2646 = vunpack.c.l.b16 %v2358
        %v2647 = vunpack.c.l.b16 %v2359
        %v2648 = vunpack.c.l.b16 %v2360
        %v2649 = vunpack.c.l.b16 %v2361
        %v2650 = vunpack.c.l.b16 %v2362
        %v2651 = vunpack.c.l.b16 %v2363
        %v2652 = vunpack.c.l.b16 %v2364
        %v2653 = vunpack.c.l.b16 %v2365
        %v2654 = vunpack.c.l.b16 %v2366
        %v2655 = vunpack.c.l.b16 %v2367
        %v2656 = vunpack.c.l.b16 %v2368
        %v2657 = vunpack.c.l.b16 %v2369
        %v2658 = vunpack.c.l.b16 %v2370
        %v2659 = vunpack.c.l.b16 %v2371
        %v2660 = vunpack.c.l.b16 %v2372
        %v2661 = vunpack.c.l.b16 %v2373
        %v2662 = vunpack.c.l.b16 %v2374
        %v2663 = vunpack.c.l.b16 %v2375
        %v2664 = vunpack.c.l.b16 %v2376
        %v2665 = vunpack.c.l.b16 %v2377
        %v2666 = vunpack.c.l.b16 %v2378
        %v2667 = vunpack.c.l.b16 %v2379
        %v2668 = vunpack.c.l.b16 %v2380
        %v2669 = vunpack.c.l.b16 %v2381
        %v2670 = vunpack.c.l.b16 %v2382
        %v2671 = vunpack.c.l.b16 %v2383
        %v2672 = vunpack.c.l.b16 %v2384
        %v2673 = vunpack.c.l.b16 %v2385
        %v2674 = vunpack.c.l.b16 %v2386
        %v2675 = vunpack.c.l.b16 %v2387
        %v2676 = vunpack.c.l.b16 %v2388
        %v2677 = vunpack.c.l.b16 %v2389
        %v2678 = vunpack.c.l.b16 %v2390
        %v2679 = vunpack.c.l.b16 %v2391
        %v2680 = vunpack.c.l.b16 %v2392
        %v2681 = vunpack.c.l.b16 %v2393
        %v2682 = vunpack.c.l.b16 %v2394
        %v2683 = vunpack.c.l.b16 %v2395
        %v2684 = vunpack.c.l.b16 %v2396
        %v2685 = vunpack.c.l.b16 %v2397
        %v2686 = vunpack.c.l.b16 %v2398
        %v2687 = vunpack.c.l.b16 %v2399
        %v2688 = vunpack.c.l.b16 %v2400
        %v2689 = vunpack.c.l.b16 %v2401
        %v2690 = vunpack.c.l.b16 %v2402
        %v2691 = vunpack.c.l.b16 %v2403
        %v2692 = vunpack.c.l.b16 %v2404
        %v2693 = vunpack.c.l.b16 %v2405
        %v2694 = vunpack.c.l.b16 %v2406
        %v2695 = vunpack.c.l.b16 %v2407
        %v2696 = vunpack.c.l.b16 %v2408
        %v2697 = vunpack.c.l.b16 %v2409
        %v2698 = vunpack.c.l.b16 %v2410
        %v2699 = vunpack.c.l.b16 %v2411
        %v2700 = vunpack.c.l.b16 %v2412
        %v2701 = vunpack.c.l.b16 %v2413
        %v2702 = vunpack.c.l.b16 %v2414
        %v2703 = vunpack.c.l.b16 %v2415
        %v2704 = vunpack.c.l.b16 %v2416
        %v2705 = vunpack.c.l.b16 %v2417
        %v2706 = vunpack.c.l.b16 %v2418
        %v2707 = vunpack.c.l.b16 %v2419
        %v2708 = vunpack.c.l.b16 %v2420
        %v2709 = vunpack.c.l.b16 %v2421
        %v2710 = vunpack.c.l.b16 %v2422
        %v2711 = vunpack.c.l.b16 %v2423
        %v2712 = vunpack.c.l.b16 %v2424
        %v2713 = vunpack.c.l.b16 %v2425
        %v2714 = vunpack.c.l.b16 %v2426
        %v2715 = vunpack.c.l.b16 %v2427
        %v2716 = vunpack.c.l.b16 %v2428
        %v2717 = vunpack.c.l.b16 %v2429
        %v2718 = vunpack.c.l.b16 %v2430
        %v2719 = vunpack.c.l.b16 %v2431
        %v2720 = vunpack.c.l.b16 %v2432
        %v2721 = vunpack.c.l.b16 %v2433
        %v2722 = vunpack.c.l.b16 %v2434
        %v2723 = vunpack.c.l.b16 %v2435
        %v2724 = vunpack.c.l.b16 %v2436
        %v2725 = vunpack.c.l.b16 %v2437
        %v2726 = vunpack.c.l.b16 %v2438
        %v2727 = vpack.c.b16 %v2584, %v2583
        %v2728 = vpack.c.b16 %v2586, %v2585
        %v2729 = vpack.c.b16 %v2588, %v2587
        %v2730 = vpack.c.b16 %v2590, %v2589
        %v2731 = vpack.c.b16 %v2592, %v2591
        %v2732 = vpack.c.b16 %v2594, %v2593
        %v2733 = vpack.c.b16 %v2596, %v2595
        %v2734 = vpack.c.b16 %v2598, %v2597
        %v2735 = vpack.c.b16 %v2600, %v2599
        %v2736 = vpack.c.b16 %v2602, %v2601
        %v2737 = vpack.c.b16 %v2604, %v2603
        %v2738 = vpack.c.b16 %v2606, %v2605
        %v2739 = vpack.c.b16 %v2608, %v2607
        %v2740 = vpack.c.b16 %v2610, %v2609
        %v2741 = vpack.c.b16 %v2612, %v2611
        %v2742 = vpack.c.b16 %v2614, %v2613
        %v2743 = vpack.c.b16 %v2616, %v2615
        %v2744 = vpack.c.b16 %v2618, %v2617
        %v2745 = vpack.c.b16 %v2620, %v2619
        %v2746 = vpack.c.b16 %v2622, %v2621
        %v2747 = vpack.c.b16 %v2624, %v2623
        %v2748 = vpack.c.b16 %v2626, %v2625
        %v2749 = vpack.c.b16 %v2628, %v2627
        %v2750 = vpack.c.b16 %v2630, %v2629
        %v2751 = vpack.c.b16 %v2632, %v2631
        %v2752 = vpack.c.b16 %v2634, %v2633
        %v2753 = vpack.c.b16 %v2636, %v2635
        %v2754 = vpack.c.b16 %v2638, %v2637
        %v2755 = vpack.c.b16 %v2640, %v2639
        %v2756 = vpack.c.b16 %v2642, %v2641
        %v2757 = vpack.c.b16 %v2644, %v2643
        %v2758 = vpack.c.b16 %v2646, %v2645
        %v2759 = vpack.c.b16 %v2648, %v2647
        %v2760 = vpack.c.b16 %v2650, %v2649
        %v2761 = vpack.c.b16 %v2652, %v2651
        %v2762 = vpack.c.b16 %v2654, %v2653
        %v2763 = vpack.c.b16 %v2656, %v2655
        %v2764 = vpack.c.b16 %v2658, %v2657
        %v2765 = vpack.c.b16 %v2660, %v2659
        %v2766 = vpack.c.b16 %v2662, %v2661
        %v2767 = vpack.c.b16 %v2664, %v2663
        %v2768 = vpack.c.b16 %v2666, %v2665
        %v2769 = vpack.c.b16 %v2668, %v2667
        %v2770 = vpack.c.b16 %v2670, %v2669
        %v2771 = vpack.c.b16 %v2672, %v2671
        %v2772 = vpack.c.b16 %v2674, %v2673
        %v2773 = vpack.c.b16 %v2676, %v2675
        %v2774 = vpack.c.b16 %v2678, %v2677
        %v2775 = vpack.c.b16 %v2680, %v2679
        %v2776 = vpack.c.b16 %v2682, %v2681
        %v2777 = vpack.c.b16 %v2684, %v2683
        %v2778 = vpack.c.b16 %v2686, %v2685
        %v2779 = vpack.c.b16 %v2688, %v2687
        %v2780 = vpack.c.b16 %v2690, %v2689
        %v2781 = vpack.c.b16 %v2692, %v2691
        %v2782 = vpack.c.b16 %v2694, %v2693
        %v2783 = vpack.c.b16 %v2696, %v2695
        %v2784 = vpack.c.b16 %v2698, %v2697
        %v2785 = vpack.c.b16 %v2700, %v2699
        %v2786 = vpack.c.b16 %v2702, %v2701
        %v2787 = vpack.c.b16 %v2704, %v2703
        %v2788 = vpack.c.b16 %v2706, %v2705
        %v2789 = vpack.c.b16 %v2708, %v2707
        %v2790 = vpack.c.b16 %v2710, %v2709
        %v2791 = vpack.c.b16 %v2712, %v2711
        %v2792 = vpack.c.b16 %v2714, %v2713
        %v2793 = vpack.c.b16 %v2716, %v2715
        %v2794 = vpack.c.b16 %v2718, %v2717
        %v2795 = vpack.c.b16 %v2720, %v2719
        %v2796 = vpack.c.b16 %v2722, %v2721
        %v2797 = vpack.c.b16 %v2724, %v2723
        %v2798 = vpack.c.b16 %v2726, %v2725
        %2871 = vmatprep.subr.bf16.mxu0 0
        %2872 = vmatpush1.bf16.msra.mxu0 %v2727
        %2873 = vmatprep.subr.bf16.mxu0 0
        %2874 = vmatpush1.bf16.msra.mxu0 %v2728
        %2875 = vmatprep.subr.bf16.mxu0 0
        %2876 = vmatpush1.bf16.msra.mxu0 %v2729
        %2877 = vmatprep.subr.bf16.mxu0 0
        %2878 = vmatpush1.bf16.msra.mxu0 %v2730
        %2879 = vmatprep.subr.bf16.mxu0 0
        %2880 = vmatpush1.bf16.msra.mxu0 %v2731
        %2881 = vmatprep.subr.bf16.mxu0 0
        %2882 = vmatpush1.bf16.msra.mxu0 %v2732
        %2883 = vmatprep.subr.bf16.mxu0 0
        %2884 = vmatpush1.bf16.msra.mxu0 %v2733
        %2885 = vmatprep.subr.bf16.mxu0 0
        %2886 = vmatpush1.bf16.msra.mxu0 %v2734
        %2887 = vmatprep.subr.bf16.mxu0 0
        %2888 = vmatpush1.bf16.msra.mxu0 %v2735
        %2889 = vmatprep.subr.bf16.mxu0 0
        %2890 = vmatpush1.bf16.msra.mxu0 %v2736
        %2891 = vmatprep.subr.bf16.mxu0 0
        %2892 = vmatpush1.bf16.msra.mxu0 %v2737
        %2893 = vmatprep.subr.bf16.mxu0 0
        %2894 = vmatpush1.bf16.msra.mxu0 %v2738
        %2895 = vmatprep.subr.bf16.mxu0 0
        %2896 = vmatpush1.bf16.msra.mxu0 %v2739
        %2897 = vmatprep.subr.bf16.mxu0 0
        %2898 = vmatpush1.bf16.msra.mxu0 %v2740
        %2899 = vmatprep.subr.bf16.mxu0 0
        %2900 = vmatpush1.bf16.msra.mxu0 %v2741
        %2901 = vmatprep.subr.bf16.mxu0 0
        %2902 = vmatpush1.bf16.msra.mxu0 %v2742
        %2903 = vmatprep.mubr.bf16.mxu0 %v2152
        %2904 = vmatmul.mubr.bf16.gmra.mrb[0].mxu0 %v2151
        %v2905 = vpop.f32.mrb[0].mxu0
        %v2906 = vadd.f32 0.0, %v2905
        %v2907 = vpop.f32.mrb[0].mxu0
        %v2908 = vpop.f32.mrb[0].mxu0
        %v2909 = vadd.f32 0.0, %v2908
        %v2910 = vpop.f32.mrb[0].mxu0
        %2911 = vmatprep.mubr.bf16.mxu0 %v2161
        %2912 = vmatmul.mubr.bf16.gmra.mrb[0].mxu0 %v2160
        %v2913 = vpop.f32.mrb[0].mxu0
        %v2914 = vadd.f32 0.0, %v2913
        %v2915 = vpop.f32.mrb[0].mxu0
        %v2916 = vpop.f32.mrb[0].mxu0
        %v2917 = vadd.f32 0.0, %v2916
        %v2918 = vpop.f32.mrb[0].mxu0
        %2919 = vmatprep.mubr.bf16.mxu0 %v2170
        %2920 = vmatmul.mubr.bf16.gmra.mrb[0].mxu0 %v2169
        %v2921 = vpop.f32.mrb[0].mxu0
        %v2922 = vadd.f32 0.0, %v2921
        %v2923 = vpop.f32.mrb[0].mxu0
        %v2924 = vpop.f32.mrb[0].mxu0
        %v2925 = vadd.f32 0.0, %v2924
        %v2926 = vpop.f32.mrb[0].mxu0
        %2927 = vmatprep.mubr.bf16.mxu0 %v2179
        %2928 = vmatmul.mubr.bf16.gmra.mrb[0].mxu0 %v2178
        %v2929 = vpop.f32.mrb[0].mxu0
        %v2930 = vadd.f32 0.0, %v2929
        %v2931 = vpop.f32.mrb[0].mxu0
        %v2932 = vpop.f32.mrb[0].mxu0
        %v2933 = vadd.f32 0.0, %v2932
        %v2934 = vpop.f32.mrb[0].mxu0
        %2935 = vmatprep.mubr.bf16.mxu0 %v2188
        %2936 = vmatmul.mubr.bf16.gmra.mrb[0].mxu0 %v2187
        %v2937 = vpop.f32.mrb[0].mxu0
        %v2938 = vadd.f32 0.0, %v2937
        %v2939 = vpop.f32.mrb[0].mxu0
        %v2940 = vpop.f32.mrb[0].mxu0
        %v2941 = vadd.f32 0.0, %v2940
        %v2942 = vpop.f32.mrb[0].mxu0
        %2943 = vmatprep.mubr.bf16.mxu0 %v2197
        %2944 = vmatmul.mubr.bf16.gmra.mrb[0].mxu0 %v2196
        %v2945 = vpop.f32.mrb[0].mxu0
        %v2946 = vadd.f32 0.0, %v2945
        %v2947 = vpop.f32.mrb[0].mxu0
        %v2948 = vpop.f32.mrb[0].mxu0
        %v2949 = vadd.f32 0.0, %v2948
        %v2950 = vpop.f32.mrb[0].mxu0
        %2951 = vmatprep.mubr.bf16.mxu0 %v2206
        %2952 = vmatmul.mubr.bf16.gmra.mrb[0].mxu0 %v2205
        %v2953 = vpop.f32.mrb[0].mxu0
        %v2954 = vadd.f32 0.0, %v2953
        %v2955 = vpop.f32.mrb[0].mxu0
        %v2956 = vpop.f32.mrb[0].mxu0
        %v2957 = vadd.f32 0.0, %v2956
        %v2958 = vpop.f32.mrb[0].mxu0
        %2959 = vmatprep.mubr.bf16.mxu0 %v2215
        %2960 = vmatmul.mubr.bf16.gmra.mrb[0].mxu0 %v2214
        %v2961 = vpop.f32.mrb[0].mxu0
        %v2962 = vadd.f32 0.0, %v2961
        %v2963 = vpop.f32.mrb[0].mxu0
        %v2964 = vpop.f32.mrb[0].mxu0
        %v2965 = vadd.f32 0.0, %v2964
        %v2966 = vpop.f32.mrb[0].mxu0
        %2967 = vmatprep.mubr.bf16.mxu0 %v2224
        %2968 = vmatmul.mubr.bf16.gmra.mrb[0].mxu0 %v2223
        %v2969 = vpop.f32.mrb[0].mxu0
        %v2970 = vadd.f32 0.0, %v2969
        %v2971 = vpop.f32.mrb[0].mxu0
        %v2972 = vpop.f32.mrb[0].mxu0
        %v2973 = vadd.f32 0.0, %v2972
        %v2974 = vpop.f32.mrb[0].mxu0
        %2975 = vmatprep.mubr.bf16.mxu0 %v2233
        %2976 = vmatmul.mubr.bf16.gmra.mrb[0].mxu0 %v2232
        %v2977 = vpop.f32.mrb[0].mxu0
        %v2978 = vadd.f32 0.0, %v2977
        %v2979 = vpop.f32.mrb[0].mxu0
        %v2980 = vpop.f32.mrb[0].mxu0
        %v2981 = vadd.f32 0.0, %v2980
        %v2982 = vpop.f32.mrb[0].mxu0
        %2983 = vmatprep.mubr.bf16.mxu0 %v2242
        %2984 = vmatmul.mubr.bf16.gmra.mrb[0].mxu0 %v2241
        %v2985 = vpop.f32.mrb[0].mxu0
        %v2986 = vadd.f32 0.0, %v2985
        %v2987 = vpop.f32.mrb[0].mxu0
        %v2988 = vpop.f32.mrb[0].mxu0
        %v2989 = vadd.f32 0.0, %v2988
        %v2990 = vpop.f32.mrb[0].mxu0
        %2991 = vmatprep.mubr.bf16.mxu0 %v2251
        %2992 = vmatmul.mubr.bf16.gmra.mrb[0].mxu0 %v2250
        %v2993 = vpop.f32.mrb[0].mxu0
        %v2994 = vadd.f32 0.0, %v2993
        %v2995 = vpop.f32.mrb[0].mxu0
        %v2996 = vpop.f32.mrb[0].mxu0
        %v2997 = vadd.f32 0.0, %v2996
        %v2998 = vpop.f32.mrb[0].mxu0
        %2999 = vmatprep.mubr.bf16.mxu0 %v2260
        %3000 = vmatmul.mubr.bf16.gmra.mrb[0].mxu0 %v2259
        %v3001 = vpop.f32.mrb[0].mxu0
        %v3002 = vadd.f32 0.0, %v3001
        %v3003 = vpop.f32.mrb[0].mxu0
        %v3004 = vpop.f32.mrb[0].mxu0
        %v3005 = vadd.f32 0.0, %v3004
        %v3006 = vpop.f32.mrb[0].mxu0
        %3007 = vmatprep.mubr.bf16.mxu0 %v2269
        %3008 = vmatmul.mubr.bf16.gmra.mrb[0].mxu0 %v2268
        %v3009 = vpop.f32.mrb[0].mxu0
        %v3010 = vadd.f32 0.0, %v3009
        %v3011 = vpop.f32.mrb[0].mxu0
        %v3012 = vpop.f32.mrb[0].mxu0
        %v3013 = vadd.f32 0.0, %v3012
        %v3014 = vpop.f32.mrb[0].mxu0
        %3015 = vmatprep.mubr.bf16.mxu0 %v2278
        %3016 = vmatmul.mubr.bf16.gmra.mrb[0].mxu0 %v2277
        %v3017 = vpop.f32.mrb[0].mxu0
        %v3018 = vadd.f32 0.0, %v3017
        %v3019 = vpop.f32.mrb[0].mxu0
        %v3020 = vpop.f32.mrb[0].mxu0
        %v3021 = vadd.f32 0.0, %v3020
        %v3022 = vpop.f32.mrb[0].mxu0
        %3023 = vmatprep.mubr.bf16.mxu0 %v2287
        %3024 = vmatmul.mubr.bf16.gmra.mrb[0].mxu0 %v2286
        %v3025 = vpop.f32.mrb[0].mxu0
        %v3026 = vadd.f32 0.0, %v3025
        %v3027 = vpop.f32.mrb[0].mxu0
        %v3028 = vpop.f32.mrb[0].mxu0
        %v3029 = vadd.f32 0.0, %v3028
        %v3030 = vpop.f32.mrb[0].mxu0
        %3031 = vdwg.mxu0
        %3032 = vmatprep.subr.bf16.mxu0 0
        %3033 = vmatpush1.bf16.msra.mxu0 %v2743
        %3034 = vmatprep.subr.bf16.mxu0 0
        %3035 = vmatpush1.bf16.msra.mxu0 %v2744
        %3036 = vmatprep.subr.bf16.mxu0 0
        %3037 = vmatpush1.bf16.msra.mxu0 %v2745
        %3038 = vmatprep.subr.bf16.mxu0 0
        %3039 = vmatpush1.bf16.msra.mxu0 %v2746
        %3040 = vmatprep.subr.bf16.mxu0 0
        %3041 = vmatpush1.bf16.msra.mxu0 %v2747
        %3042 = vmatprep.subr.bf16.mxu0 0
        %3043 = vmatpush1.bf16.msra.mxu0 %v2748
        %3044 = vmatprep.subr.bf16.mxu0 0
        %3045 = vmatpush1.bf16.msra.mxu0 %v2749
        %3046 = vmatprep.subr.bf16.mxu0 0
        %3047 = vmatpush1.bf16.msra.mxu0 %v2750
        %3048 = vmatprep.subr.bf16.mxu0 0
        %3049 = vmatpush1.bf16.msra.mxu0 %v2751
        %3050 = vmatprep.subr.bf16.mxu0 0
        %3051 = vmatpush1.bf16.msra.mxu0 %v2752
        %3052 = vmatprep.subr.bf16.mxu0 0
        %3053 = vmatpush1.bf16.msra.mxu0 %v2753
        %3054 = vmatprep.subr.bf16.mxu0 0
        %3055 = vmatpush1.bf16.msra.mxu0 %v2754
        %3056 = vmatprep.subr.bf16.mxu0 0
        %3057 = vmatpush1.bf16.msra.mxu0 %v2755
        %3058 = vmatprep.subr.bf16.mxu0 0
        %3059 = vmatpush1.bf16.msra.mxu0 %v2756
        %3060 = vmatprep.subr.bf16.mxu0 0
        %3061 = vmatpush1.bf16.msra.mxu0 %v2757
        %3062 = vmatprep.subr.bf16.mxu0 0
        %3063 = vmatpush1.bf16.msra.mxu0 %v2758
        %3064 = vmatprep.mubr.bf16.mxu0 %v2154
        %3065 = vmatmul.mubr.bf16.gmra.mrb[0].mxu0 %v2153
        %v3066 = vpop.f32.mrb[0].mxu0
        %v3067 = vadd.f32 %v2906, %v3066
        %v3068 = vpop.f32.mrb[0].mxu0
        %v3069 = vpop.f32.mrb[0].mxu0
        %v3070 = vadd.f32 %v2909, %v3069
        %v3071 = vpop.f32.mrb[0].mxu0
        %3072 = vmatprep.mubr.bf16.mxu0 %v2163
        %3073 = vmatmul.mubr.bf16.gmra.mrb[0].mxu0 %v2162
        %v3074 = vpop.f32.mrb[0].mxu0
        %v3075 = vadd.f32 %v2914, %v3074
        %v3076 = vpop.f32.mrb[0].mxu0
        %v3077 = vpop.f32.mrb[0].mxu0
        %v3078 = vadd.f32 %v2917, %v3077
        %v3079 = vpop.f32.mrb[0].mxu0
        %3080 = vmatprep.mubr.bf16.mxu0 %v2172
        %3081 = vmatmul.mubr.bf16.gmra.mrb[0].mxu0 %v2171
        %v3082 = vpop.f32.mrb[0].mxu0
        %v3083 = vadd.f32 %v2922, %v3082
        %v3084 = vpop.f32.mrb[0].mxu0
        %v3085 = vpop.f32.mrb[0].mxu0
        %v3086 = vadd.f32 %v2925, %v3085
        %v3087 = vpop.f32.mrb[0].mxu0
        %3088 = vmatprep.mubr.bf16.mxu0 %v2181
        %3089 = vmatmul.mubr.bf16.gmra.mrb[0].mxu0 %v2180
        %v3090 = vpop.f32.mrb[0].mxu0
        %v3091 = vadd.f32 %v2930, %v3090
        %v3092 = vpop.f32.mrb[0].mxu0
        %v3093 = vpop.f32.mrb[0].mxu0
        %v3094 = vadd.f32 %v2933, %v3093
        %v3095 = vpop.f32.mrb[0].mxu0
        %3096 = vmatprep.mubr.bf16.mxu0 %v2190
        %3097 = vmatmul.mubr.bf16.gmra.mrb[0].mxu0 %v2189
        %v3098 = vpop.f32.mrb[0].mxu0
        %v3099 = vadd.f32 %v2938, %v3098
        %v3100 = vpop.f32.mrb[0].mxu0
        %v3101 = vpop.f32.mrb[0].mxu0
        %v3102 = vadd.f32 %v2941, %v3101
        %v3103 = vpop.f32.mrb[0].mxu0
        %3104 = vmatprep.mubr.bf16.mxu0 %v2199
        %3105 = vmatmul.mubr.bf16.gmra.mrb[0].mxu0 %v2198
        %v3106 = vpop.f32.mrb[0].mxu0
        %v3107 = vadd.f32 %v2946, %v3106
        %v3108 = vpop.f32.mrb[0].mxu0
        %v3109 = vpop.f32.mrb[0].mxu0
        %v3110 = vadd.f32 %v2949, %v3109
        %v3111 = vpop.f32.mrb[0].mxu0
        %3112 = vmatprep.mubr.bf16.mxu0 %v2208
        %3113 = vmatmul.mubr.bf16.gmra.mrb[0].mxu0 %v2207
        %v3114 = vpop.f32.mrb[0].mxu0
        %v3115 = vadd.f32 %v2954, %v3114
        %v3116 = vpop.f32.mrb[0].mxu0
        %v3117 = vpop.f32.mrb[0].mxu0
        %v3118 = vadd.f32 %v2957, %v3117
        %v3119 = vpop.f32.mrb[0].mxu0
        %3120 = vmatprep.mubr.bf16.mxu0 %v2217
        %3121 = vmatmul.mubr.bf16.gmra.mrb[0].mxu0 %v2216
        %v3122 = vpop.f32.mrb[0].mxu0
        %v3123 = vadd.f32 %v2962, %v3122
        %v3124 = vpop.f32.mrb[0].mxu0
        %v3125 = vpop.f32.mrb[0].mxu0
        %v3126 = vadd.f32 %v2965, %v3125
        %v3127 = vpop.f32.mrb[0].mxu0
        %3128 = vmatprep.mubr.bf16.mxu0 %v2226
        %3129 = vmatmul.mubr.bf16.gmra.mrb[0].mxu0 %v2225
        %v3130 = vpop.f32.mrb[0].mxu0
        %v3131 = vadd.f32 %v2970, %v3130
        %v3132 = vpop.f32.mrb[0].mxu0
        %v3133 = vpop.f32.mrb[0].mxu0
        %v3134 = vadd.f32 %v2973, %v3133
        %v3135 = vpop.f32.mrb[0].mxu0
        %3136 = vmatprep.mubr.bf16.mxu0 %v2235
        %3137 = vmatmul.mubr.bf16.gmra.mrb[0].mxu0 %v2234
        %v3138 = vpop.f32.mrb[0].mxu0
        %v3139 = vadd.f32 %v2978, %v3138
        %v3140 = vpop.f32.mrb[0].mxu0
        %v3141 = vpop.f32.mrb[0].mxu0
        %v3142 = vadd.f32 %v2981, %v3141
        %v3143 = vpop.f32.mrb[0].mxu0
        %3144 = vmatprep.mubr.bf16.mxu0 %v2244
        %3145 = vmatmul.mubr.bf16.gmra.mrb[0].mxu0 %v2243
        %v3146 = vpop.f32.mrb[0].mxu0
        %v3147 = vadd.f32 %v2986, %v3146
        %v3148 = vpop.f32.mrb[0].mxu0
        %v3149 = vpop.f32.mrb[0].mxu0
        %v3150 = vadd.f32 %v2989, %v3149
        %v3151 = vpop.f32.mrb[0].mxu0
        %3152 = vmatprep.mubr.bf16.mxu0 %v2253
        %3153 = vmatmul.mubr.bf16.gmra.mrb[0].mxu0 %v2252
        %v3154 = vpop.f32.mrb[0].mxu0
        %v3155 = vadd.f32 %v2994, %v3154
        %v3156 = vpop.f32.mrb[0].mxu0
        %v3157 = vpop.f32.mrb[0].mxu0
        %v3158 = vadd.f32 %v2997, %v3157
        %v3159 = vpop.f32.mrb[0].mxu0
        %3160 = vmatprep.mubr.bf16.mxu0 %v2262
        %3161 = vmatmul.mubr.bf16.gmra.mrb[0].mxu0 %v2261
        %v3162 = vpop.f32.mrb[0].mxu0
        %v3163 = vadd.f32 %v3002, %v3162
        %v3164 = vpop.f32.mrb[0].mxu0
        %v3165 = vpop.f32.mrb[0].mxu0
        %v3166 = vadd.f32 %v3005, %v3165
        %v3167 = vpop.f32.mrb[0].mxu0
        %3168 = vmatprep.mubr.bf16.mxu0 %v2271
        %3169 = vmatmul.mubr.bf16.gmra.mrb[0].mxu0 %v2270
        %v3170 = vpop.f32.mrb[0].mxu0
        %v3171 = vadd.f32 %v3010, %v3170
        %v3172 = vpop.f32.mrb[0].mxu0
        %v3173 = vpop.f32.mrb[0].mxu0
        %v3174 = vadd.f32 %v3013, %v3173
        %v3175 = vpop.f32.mrb[0].mxu0
        %3176 = vmatprep.mubr.bf16.mxu0 %v2280
        %3177 = vmatmul.mubr.bf16.gmra.mrb[0].mxu0 %v2279
        %v3178 = vpop.f32.mrb[0].mxu0
        %v3179 = vadd.f32 %v3018, %v3178
        %v3180 = vpop.f32.mrb[0].mxu0
        %v3181 = vpop.f32.mrb[0].mxu0
        %v3182 = vadd.f32 %v3021, %v3181
        %v3183 = vpop.f32.mrb[0].mxu0
        %3184 = vmatprep.mubr.bf16.mxu0 %v2289
        %3185 = vmatmul.mubr.bf16.gmra.mrb[0].mxu0 %v2288
        %v3186 = vpop.f32.mrb[0].mxu0
        %v3187 = vadd.f32 %v3026, %v3186
        %v3188 = vpop.f32.mrb[0].mxu0
        %v3189 = vpop.f32.mrb[0].mxu0
        %v3190 = vadd.f32 %v3029, %v3189
        %v3191 = vpop.f32.mrb[0].mxu0
        %3192 = vdwg.mxu0
        %3193 = vmatprep.subr.bf16.mxu0 0
        %3194 = vmatpush1.bf16.msra.mxu0 %v2759
        %3195 = vmatprep.subr.bf16.mxu0 0
        %3196 = vmatpush1.bf16.msra.mxu0 %v2760
        %3197 = vmatprep.subr.bf16.mxu0 0
        %3198 = vmatpush1.bf16.msra.mxu0 %v2761
        %3199 = vmatprep.subr.bf16.mxu0 0
        %3200 = vmatpush1.bf16.msra.mxu0 %v2762
        %3201 = vmatprep.subr.bf16.mxu0 0
        %3202 = vmatpush1.bf16.msra.mxu0 %v2763
        %3203 = vmatprep.subr.bf16.mxu0 0
        %3204 = vmatpush1.bf16.msra.mxu0 %v2764
        %3205 = vmatprep.subr.bf16.mxu0 0
        %3206 = vmatpush1.bf16.msra.mxu0 %v2765
        %3207 = vmatprep.subr.bf16.mxu0 0
        %3208 = vmatpush1.bf16.msra.mxu0 %v2766
        %3209 = vmatprep.subr.bf16.mxu0 0
        %3210 = vmatpush1.bf16.msra.mxu0 %v2767
        %3211 = vmatprep.subr.bf16.mxu0 0
        %3212 = vmatpush1.bf16.msra.mxu0 %v2768
        %3213 = vmatprep.subr.bf16.mxu0 0
        %3214 = vmatpush1.bf16.msra.mxu0 %v2769
        %3215 = vmatprep.subr.bf16.mxu0 0
        %3216 = vmatpush1.bf16.msra.mxu0 %v2770
        %3217 = vmatprep.subr.bf16.mxu0 0
        %3218 = vmatpush1.bf16.msra.mxu0 %v2771
        %3219 = vmatprep.subr.bf16.mxu0 0
        %3220 = vmatpush1.bf16.msra.mxu0 %v2772
        %3221 = vmatprep.subr.bf16.mxu0 0
        %3222 = vmatpush1.bf16.msra.mxu0 %v2773
        %3223 = vmatprep.subr.bf16.mxu0 0
        %3224 = vmatpush1.bf16.msra.mxu0 %v2774
        %3225 = vmatprep.mubr.bf16.mxu0 %v2156
        %3226 = vmatmul.mubr.bf16.gmra.mrb[0].mxu0 %v2155
        %v3227 = vpop.f32.mrb[0].mxu0
        %v3228 = vadd.f32 %v3067, %v3227
        %v3229 = vpop.f32.mrb[0].mxu0
        %v3230 = vpop.f32.mrb[0].mxu0
        %v3231 = vadd.f32 %v3070, %v3230
        %v3232 = vpop.f32.mrb[0].mxu0
        %3233 = vmatprep.mubr.bf16.mxu0 %v2165
        %3234 = vmatmul.mubr.bf16.gmra.mrb[0].mxu0 %v2164
        %v3235 = vpop.f32.mrb[0].mxu0
        %v3236 = vadd.f32 %v3075, %v3235
        %v3237 = vpop.f32.mrb[0].mxu0
        %v3238 = vpop.f32.mrb[0].mxu0
        %v3239 = vadd.f32 %v3078, %v3238
        %v3240 = vpop.f32.mrb[0].mxu0
        %3241 = vmatprep.mubr.bf16.mxu0 %v2174
        %3242 = vmatmul.mubr.bf16.gmra.mrb[0].mxu0 %v2173
        %v3243 = vpop.f32.mrb[0].mxu0
        %v3244 = vadd.f32 %v3083, %v3243
        %v3245 = vpop.f32.mrb[0].mxu0
        %v3246 = vpop.f32.mrb[0].mxu0
        %v3247 = vadd.f32 %v3086, %v3246
        %v3248 = vpop.f32.mrb[0].mxu0
        %3249 = vmatprep.mubr.bf16.mxu0 %v2183
        %3250 = vmatmul.mubr.bf16.gmra.mrb[0].mxu0 %v2182
        %v3251 = vpop.f32.mrb[0].mxu0
        %v3252 = vadd.f32 %v3091, %v3251
        %v3253 = vpop.f32.mrb[0].mxu0
        %v3254 = vpop.f32.mrb[0].mxu0
        %v3255 = vadd.f32 %v3094, %v3254
        %v3256 = vpop.f32.mrb[0].mxu0
        %3257 = vmatprep.mubr.bf16.mxu0 %v2192
        %3258 = vmatmul.mubr.bf16.gmra.mrb[0].mxu0 %v2191
        %v3259 = vpop.f32.mrb[0].mxu0
        %v3260 = vadd.f32 %v3099, %v3259
        %v3261 = vpop.f32.mrb[0].mxu0
        %v3262 = vpop.f32.mrb[0].mxu0
        %v3263 = vadd.f32 %v3102, %v3262
        %v3264 = vpop.f32.mrb[0].mxu0
        %3265 = vmatprep.mubr.bf16.mxu0 %v2201
        %3266 = vmatmul.mubr.bf16.gmra.mrb[0].mxu0 %v2200
        %v3267 = vpop.f32.mrb[0].mxu0
        %v3268 = vadd.f32 %v3107, %v3267
        %v3269 = vpop.f32.mrb[0].mxu0
        %v3270 = vpop.f32.mrb[0].mxu0
        %v3271 = vadd.f32 %v3110, %v3270
        %v3272 = vpop.f32.mrb[0].mxu0
        %3273 = vmatprep.mubr.bf16.mxu0 %v2210
        %3274 = vmatmul.mubr.bf16.gmra.mrb[0].mxu0 %v2209
        %v3275 = vpop.f32.mrb[0].mxu0
        %v3276 = vadd.f32 %v3115, %v3275
        %v3277 = vpop.f32.mrb[0].mxu0
        %v3278 = vpop.f32.mrb[0].mxu0
        %v3279 = vadd.f32 %v3118, %v3278
        %v3280 = vpop.f32.mrb[0].mxu0
        %3281 = vmatprep.mubr.bf16.mxu0 %v2219
        %3282 = vmatmul.mubr.bf16.gmra.mrb[0].mxu0 %v2218
        %v3283 = vpop.f32.mrb[0].mxu0
        %v3284 = vadd.f32 %v3123, %v3283
        %v3285 = vpop.f32.mrb[0].mxu0
        %v3286 = vpop.f32.mrb[0].mxu0
        %v3287 = vadd.f32 %v3126, %v3286
        %v3288 = vpop.f32.mrb[0].mxu0
        %3289 = vmatprep.mubr.bf16.mxu0 %v2228
        %3290 = vmatmul.mubr.bf16.gmra.mrb[0].mxu0 %v2227
        %v3291 = vpop.f32.mrb[0].mxu0
        %v3292 = vadd.f32 %v3131, %v3291
        %v3293 = vpop.f32.mrb[0].mxu0
        %v3294 = vpop.f32.mrb[0].mxu0
        %v3295 = vadd.f32 %v3134, %v3294
        %v3296 = vpop.f32.mrb[0].mxu0
        %3297 = vmatprep.mubr.bf16.mxu0 %v2237
        %3298 = vmatmul.mubr.bf16.gmra.mrb[0].mxu0 %v2236
        %v3299 = vpop.f32.mrb[0].mxu0
        %v3300 = vadd.f32 %v3139, %v3299
        %v3301 = vpop.f32.mrb[0].mxu0
        %v3302 = vpop.f32.mrb[0].mxu0
        %v3303 = vadd.f32 %v3142, %v3302
        %v3304 = vpop.f32.mrb[0].mxu0
        %3305 = vmatprep.mubr.bf16.mxu0 %v2246
        %3306 = vmatmul.mubr.bf16.gmra.mrb[0].mxu0 %v2245
        %v3307 = vpop.f32.mrb[0].mxu0
        %v3308 = vadd.f32 %v3147, %v3307
        %v3309 = vpop.f32.mrb[0].mxu0
        %v3310 = vpop.f32.mrb[0].mxu0
        %v3311 = vadd.f32 %v3150, %v3310
        %v3312 = vpop.f32.mrb[0].mxu0
        %3313 = vmatprep.mubr.bf16.mxu0 %v2255
        %3314 = vmatmul.mubr.bf16.gmra.mrb[0].mxu0 %v2254
        %v3315 = vpop.f32.mrb[0].mxu0
        %v3316 = vadd.f32 %v3155, %v3315
        %v3317 = vpop.f32.mrb[0].mxu0
        %v3318 = vpop.f32.mrb[0].mxu0
        %v3319 = vadd.f32 %v3158, %v3318
        %v3320 = vpop.f32.mrb[0].mxu0
        %3321 = vmatprep.mubr.bf16.mxu0 %v2264
        %3322 = vmatmul.mubr.bf16.gmra.mrb[0].mxu0 %v2263
        %v3323 = vpop.f32.mrb[0].mxu0
        %v3324 = vadd.f32 %v3163, %v3323
        %v3325 = vpop.f32.mrb[0].mxu0
        %v3326 = vpop.f32.mrb[0].mxu0
        %v3327 = vadd.f32 %v3166, %v3326
        %v3328 = vpop.f32.mrb[0].mxu0
        %3329 = vmatprep.mubr.bf16.mxu0 %v2273
        %3330 = vmatmul.mubr.bf16.gmra.mrb[0].mxu0 %v2272
        %v3331 = vpop.f32.mrb[0].mxu0
        %v3332 = vadd.f32 %v3171, %v3331
        %v3333 = vpop.f32.mrb[0].mxu0
        %v3334 = vpop.f32.mrb[0].mxu0
        %v3335 = vadd.f32 %v3174, %v3334
        %v3336 = vpop.f32.mrb[0].mxu0
        %3337 = vmatprep.mubr.bf16.mxu0 %v2282
        %3338 = vmatmul.mubr.bf16.gmra.mrb[0].mxu0 %v2281
        %v3339 = vpop.f32.mrb[0].mxu0
        %v3340 = vadd.f32 %v3179, %v3339
        %v3341 = vpop.f32.mrb[0].mxu0
        %v3342 = vpop.f32.mrb[0].mxu0
        %v3343 = vadd.f32 %v3182, %v3342
        %v3344 = vpop.f32.mrb[0].mxu0
        %3345 = vmatprep.mubr.bf16.mxu0 %v2291
        %3346 = vmatmul.mubr.bf16.gmra.mrb[0].mxu0 %v2290
        %v3347 = vpop.f32.mrb[0].mxu0
        %v3348 = vadd.f32 %v3187, %v3347
        %v3349 = vpop.f32.mrb[0].mxu0
        %v3350 = vpop.f32.mrb[0].mxu0
        %v3351 = vadd.f32 %v3190, %v3350
        %v3352 = vpop.f32.mrb[0].mxu0
        %3353 = vdwg.mxu0
        %3354 = vmatprep.subr.bf16.mxu0 0
        %3355 = vmatpush1.bf16.msra.mxu0 %v2775
        %3356 = vmatprep.subr.bf16.mxu0 0
        %3357 = vmatpush1.bf16.msra.mxu0 %v2776
        %3358 = vmatprep.subr.bf16.mxu0 0
        %3359 = vmatpush1.bf16.msra.mxu0 %v2777
        %3360 = vmatprep.subr.bf16.mxu0 0
        %3361 = vmatpush1.bf16.msra.mxu0 %v2778
        %3362 = vmatprep.subr.bf16.mxu0 0
        %3363 = vmatpush1.bf16.msra.mxu0 %v2779
        %3364 = vmatprep.subr.bf16.mxu0 0
        %3365 = vmatpush1.bf16.msra.mxu0 %v2780
        %3366 = vmatprep.subr.bf16.mxu0 0
        %3367 = vmatpush1.bf16.msra.mxu0 %v2781
        %3368 = vmatprep.subr.bf16.mxu0 0
        %3369 = vmatpush1.bf16.msra.mxu0 %v2782
        %3370 = vmatprep.subr.bf16.mxu0 0
        %3371 = vmatpush1.bf16.msra.mxu0 %v2783
        %3372 = vmatprep.subr.bf16.mxu0 0
        %3373 = vmatpush1.bf16.msra.mxu0 %v2784
        %3374 = vmatprep.subr.bf16.mxu0 0
        %3375 = vmatpush1.bf16.msra.mxu0 %v2785
        %3376 = vmatprep.subr.bf16.mxu0 0
        %3377 = vmatpush1.bf16.msra.mxu0 %v2786
        %3378 = vmatprep.subr.bf16.mxu0 0
        %3379 = vmatpush1.bf16.msra.mxu0 %v2787
        %3380 = vmatprep.subr.bf16.mxu0 0
        %3381 = vmatpush1.bf16.msra.mxu0 %v2788
        %3382 = vmatprep.subr.bf16.mxu0 0
        %3383 = vmatpush1.bf16.msra.mxu0 %v2789
        %3384 = vmatprep.subr.bf16.mxu0 0
        %3385 = vmatpush1.bf16.msra.mxu0 %v2790
        %3386 = vmatprep.mubr.bf16.mxu0 %v2158
        %3387 = vmatmul.mubr.bf16.gmra.mrb[0].mxu0 %v2157
        %v3388 = vpop.f32.mrb[0].mxu0
        %v3389 = vadd.f32 %v3228, %v3388
        %v3390 = vpop.f32.mrb[0].mxu0
        %v3391 = vpop.f32.mrb[0].mxu0
        %v3392 = vadd.f32 %v3231, %v3391
        %v3393 = vpop.f32.mrb[0].mxu0
        %3394 = vmatprep.mubr.bf16.mxu0 %v2167
        %3395 = vmatmul.mubr.bf16.gmra.mrb[0].mxu0 %v2166
        %v3396 = vpop.f32.mrb[0].mxu0
        %v3397 = vadd.f32 %v3236, %v3396
        %v3398 = vpop.f32.mrb[0].mxu0
        %v3399 = vpop.f32.mrb[0].mxu0
        %v3400 = vadd.f32 %v3239, %v3399
        %v3401 = vpop.f32.mrb[0].mxu0
        %3402 = vmatprep.mubr.bf16.mxu0 %v2176
        %3403 = vmatmul.mubr.bf16.gmra.mrb[0].mxu0 %v2175
        %v3404 = vpop.f32.mrb[0].mxu0
        %v3405 = vadd.f32 %v3244, %v3404
        %v3406 = vpop.f32.mrb[0].mxu0
        %v3407 = vpop.f32.mrb[0].mxu0
        %v3408 = vadd.f32 %v3247, %v3407
        %v3409 = vpop.f32.mrb[0].mxu0
        %3410 = vmatprep.mubr.bf16.mxu0 %v2185
        %3411 = vmatmul.mubr.bf16.gmra.mrb[0].mxu0 %v2184
        %v3412 = vpop.f32.mrb[0].mxu0
        %v3413 = vadd.f32 %v3252, %v3412
        %v3414 = vpop.f32.mrb[0].mxu0
        %v3415 = vpop.f32.mrb[0].mxu0
        %v3416 = vadd.f32 %v3255, %v3415
        %v3417 = vpop.f32.mrb[0].mxu0
        %3418 = vmatprep.mubr.bf16.mxu0 %v2194
        %3419 = vmatmul.mubr.bf16.gmra.mrb[0].mxu0 %v2193
        %v3420 = vpop.f32.mrb[0].mxu0
        %v3421 = vadd.f32 %v3260, %v3420
        %v3422 = vpop.f32.mrb[0].mxu0
        %v3423 = vpop.f32.mrb[0].mxu0
        %v3424 = vadd.f32 %v3263, %v3423
        %v3425 = vpop.f32.mrb[0].mxu0
        %3426 = vmatprep.mubr.bf16.mxu0 %v2203
        %3427 = vmatmul.mubr.bf16.gmra.mrb[0].mxu0 %v2202
        %v3428 = vpop.f32.mrb[0].mxu0
        %v3429 = vadd.f32 %v3268, %v3428
        %v3430 = vpop.f32.mrb[0].mxu0
        %v3431 = vpop.f32.mrb[0].mxu0
        %v3432 = vadd.f32 %v3271, %v3431
        %v3433 = vpop.f32.mrb[0].mxu0
        %3434 = vmatprep.mubr.bf16.mxu0 %v2212
        %3435 = vmatmul.mubr.bf16.gmra.mrb[0].mxu0 %v2211
        %v3436 = vpop.f32.mrb[0].mxu0
        %v3437 = vadd.f32 %v3276, %v3436
        %v3438 = vpop.f32.mrb[0].mxu0
        %v3439 = vpop.f32.mrb[0].mxu0
        %v3440 = vadd.f32 %v3279, %v3439
        %v3441 = vpop.f32.mrb[0].mxu0
        %3442 = vmatprep.mubr.bf16.mxu0 %v2221
        %3443 = vmatmul.mubr.bf16.gmra.mrb[0].mxu0 %v2220
        %v3444 = vpop.f32.mrb[0].mxu0
        %v3445 = vadd.f32 %v3284, %v3444
        %v3446 = vpop.f32.mrb[0].mxu0
        %v3447 = vpop.f32.mrb[0].mxu0
        %v3448 = vadd.f32 %v3287, %v3447
        %v3449 = vpop.f32.mrb[0].mxu0
        %3450 = vmatprep.mubr.bf16.mxu0 %v2230
        %3451 = vmatmul.mubr.bf16.gmra.mrb[0].mxu0 %v2229
        %v3452 = vpop.f32.mrb[0].mxu0
        %v3453 = vadd.f32 %v3292, %v3452
        %v3454 = vpop.f32.mrb[0].mxu0
        %v3455 = vpop.f32.mrb[0].mxu0
        %v3456 = vadd.f32 %v3295, %v3455
        %v3457 = vpop.f32.mrb[0].mxu0
        %3458 = vmatprep.mubr.bf16.mxu0 %v2239
        %3459 = vmatmul.mubr.bf16.gmra.mrb[0].mxu0 %v2238
        %v3460 = vpop.f32.mrb[0].mxu0
        %v3461 = vadd.f32 %v3300, %v3460
        %v3462 = vpop.f32.mrb[0].mxu0
        %v3463 = vpop.f32.mrb[0].mxu0
        %v3464 = vadd.f32 %v3303, %v3463
        %v3465 = vpop.f32.mrb[0].mxu0
        %3466 = vmatprep.mubr.bf16.mxu0 %v2248
        %3467 = vmatmul.mubr.bf16.gmra.mrb[0].mxu0 %v2247
        %v3468 = vpop.f32.mrb[0].mxu0
        %v3469 = vadd.f32 %v3308, %v3468
        %v3470 = vpop.f32.mrb[0].mxu0
        %v3471 = vpop.f32.mrb[0].mxu0
        %v3472 = vadd.f32 %v3311, %v3471
        %v3473 = vpop.f32.mrb[0].mxu0
        %3474 = vmatprep.mubr.bf16.mxu0 %v2257
        %3475 = vmatmul.mubr.bf16.gmra.mrb[0].mxu0 %v2256
        %v3476 = vpop.f32.mrb[0].mxu0
        %v3477 = vadd.f32 %v3316, %v3476
        %v3478 = vpop.f32.mrb[0].mxu0
        %v3479 = vpop.f32.mrb[0].mxu0
        %v3480 = vadd.f32 %v3319, %v3479
        %v3481 = vpop.f32.mrb[0].mxu0
        %3482 = vmatprep.mubr.bf16.mxu0 %v2266
        %3483 = vmatmul.mubr.bf16.gmra.mrb[0].mxu0 %v2265
        %v3484 = vpop.f32.mrb[0].mxu0
        %v3485 = vadd.f32 %v3324, %v3484
        %v3486 = vpop.f32.mrb[0].mxu0
        %v3487 = vpop.f32.mrb[0].mxu0
        %v3488 = vadd.f32 %v3327, %v3487
        %v3489 = vpop.f32.mrb[0].mxu0
        %3490 = vmatprep.mubr.bf16.mxu0 %v2275
        %3491 = vmatmul.mubr.bf16.gmra.mrb[0].mxu0 %v2274
        %v3492 = vpop.f32.mrb[0].mxu0
        %v3493 = vadd.f32 %v3332, %v3492
        %v3494 = vpop.f32.mrb[0].mxu0
        %v3495 = vpop.f32.mrb[0].mxu0
        %v3496 = vadd.f32 %v3335, %v3495
        %v3497 = vpop.f32.mrb[0].mxu0
        %3498 = vmatprep.mubr.bf16.mxu0 %v2284
        %3499 = vmatmul.mubr.bf16.gmra.mrb[0].mxu0 %v2283
        %v3500 = vpop.f32.mrb[0].mxu0
        %v3501 = vadd.f32 %v3340, %v3500
        %v3502 = vpop.f32.mrb[0].mxu0
        %v3503 = vpop.f32.mrb[0].mxu0
        %v3504 = vadd.f32 %v3343, %v3503
        %v3505 = vpop.f32.mrb[0].mxu0
        %3506 = vmatprep.mubr.bf16.mxu0 %v2293
        %3507 = vmatmul.mubr.bf16.gmra.mrb[0].mxu0 %v2292
        %v3508 = vpop.f32.mrb[0].mxu0
        %v3509 = vadd.f32 %v3348, %v3508
        %v3510 = vpop.f32.mrb[0].mxu0
        %v3511 = vpop.f32.mrb[0].mxu0
        %v3512 = vadd.f32 %v3351, %v3511
        %v3513 = vpop.f32.mrb[0].mxu0
        %3514 = vdwg.mxu0
        %3515 = vmatprep.subr.bf16.mxu0 0
        %3516 = vmatpush1.bf16.msra.mxu0 %v2791
        %3517 = vmatprep.subr.bf16.mxu0 0
        %3518 = vmatpush1.bf16.msra.mxu0 %v2792
        %3519 = vmatprep.subr.bf16.mxu0 0
        %3520 = vmatpush1.bf16.msra.mxu0 %v2793
        %3521 = vmatprep.subr.bf16.mxu0 0
        %3522 = vmatpush1.bf16.msra.mxu0 %v2794
        %3523 = vmatprep.subr.bf16.mxu0 0
        %3524 = vmatpush1.bf16.msra.mxu0 %v2795
        %3525 = vmatprep.subr.bf16.mxu0 0
        %3526 = vmatpush1.bf16.msra.mxu0 %v2796
        %3527 = vmatprep.subr.bf16.mxu0 0
        %3528 = vmatpush1.bf16.msra.mxu0 %v2797
        %3529 = vmatprep.subr.bf16.mxu0 0
        %3530 = vmatpush1.bf16.msra.mxu0 %v2798
        %3531 = vmatprep.subr.bf16.mxu0 0
        %3532 = vmatpush1.bf16.msra.mxu0 0
        %3533 = vmatprep.subr.bf16.mxu0 0
        %3534 = vmatpush1.bf16.msra.mxu0 0
        %3535 = vmatprep.subr.bf16.mxu0 0
        %3536 = vmatpush1.bf16.msra.mxu0 0
        %3537 = vmatprep.subr.bf16.mxu0 0
        %3538 = vmatpush1.bf16.msra.mxu0 0
        %3539 = vmatprep.subr.bf16.mxu0 0
        %3540 = vmatpush1.bf16.msra.mxu0 0
        %3541 = vmatprep.subr.bf16.mxu0 0
        %3542 = vmatpush1.bf16.msra.mxu0 0
        %3543 = vmatprep.subr.bf16.mxu0 0
        %3544 = vmatpush1.bf16.msra.mxu0 0
        %3545 = vmatprep.subr.bf16.mxu0 0
        %3546 = vmatpush1.bf16.msra.mxu0 0
        %3547 = vmatprep.mubr.bf16.mxu0 0
        %3548 = vmatmul.mubr.bf16.gmra.mrb[0].mxu0 %v2159
        %v3549 = vpop.f32.mrb[0].mxu0
        %v3550 = vadd.f32 %v3389, %v3549
        %v3551 = vpop.f32.mrb[0].mxu0
        %v3552 = vpop.f32.mrb[0].mxu0
        %v3553 = vadd.f32 %v3392, %v3552
        %v3554 = vpop.f32.mrb[0].mxu0
        %3555 = vmatprep.mubr.bf16.mxu0 0
        %3556 = vmatmul.mubr.bf16.gmra.mrb[0].mxu0 %v2168
        %v3557 = vpop.f32.mrb[0].mxu0
        %v3558 = vadd.f32 %v3397, %v3557
        %v3559 = vpop.f32.mrb[0].mxu0
        %v3560 = vpop.f32.mrb[0].mxu0
        %v3561 = vadd.f32 %v3400, %v3560
        %v3562 = vpop.f32.mrb[0].mxu0
        %3563 = vmatprep.mubr.bf16.mxu0 0
        %3564 = vmatmul.mubr.bf16.gmra.mrb[0].mxu0 %v2177
        %v3565 = vpop.f32.mrb[0].mxu0
        %v3566 = vadd.f32 %v3405, %v3565
        %v3567 = vpop.f32.mrb[0].mxu0
        %v3568 = vpop.f32.mrb[0].mxu0
        %v3569 = vadd.f32 %v3408, %v3568
        %v3570 = vpop.f32.mrb[0].mxu0
        %3571 = vmatprep.mubr.bf16.mxu0 0
        %3572 = vmatmul.mubr.bf16.gmra.mrb[0].mxu0 %v2186
        %v3573 = vpop.f32.mrb[0].mxu0
        %v3574 = vadd.f32 %v3413, %v3573
        %v3575 = vpop.f32.mrb[0].mxu0
        %v3576 = vpop.f32.mrb[0].mxu0
        %v3577 = vadd.f32 %v3416, %v3576
        %v3578 = vpop.f32.mrb[0].mxu0
        %3579 = vmatprep.mubr.bf16.mxu0 0
        %3580 = vmatmul.mubr.bf16.gmra.mrb[0].mxu0 %v2195
        %v3581 = vpop.f32.mrb[0].mxu0
        %v3582 = vadd.f32 %v3421, %v3581
        %v3583 = vpop.f32.mrb[0].mxu0
        %v3584 = vpop.f32.mrb[0].mxu0
        %v3585 = vadd.f32 %v3424, %v3584
        %v3586 = vpop.f32.mrb[0].mxu0
        %3587 = vmatprep.mubr.bf16.mxu0 0
        %3588 = vmatmul.mubr.bf16.gmra.mrb[0].mxu0 %v2204
        %v3589 = vpop.f32.mrb[0].mxu0
        %v3590 = vadd.f32 %v3429, %v3589
        %v3591 = vpop.f32.mrb[0].mxu0
        %v3592 = vpop.f32.mrb[0].mxu0
        %v3593 = vadd.f32 %v3432, %v3592
        %v3594 = vpop.f32.mrb[0].mxu0
        %3595 = vmatprep.mubr.bf16.mxu0 0
        %3596 = vmatmul.mubr.bf16.gmra.mrb[0].mxu0 %v2213
        %v3597 = vpop.f32.mrb[0].mxu0
        %v3598 = vadd.f32 %v3437, %v3597
        %v3599 = vpop.f32.mrb[0].mxu0
        %v3600 = vpop.f32.mrb[0].mxu0
        %v3601 = vadd.f32 %v3440, %v3600
        %v3602 = vpop.f32.mrb[0].mxu0
        %3603 = vmatprep.mubr.bf16.mxu0 0
        %3604 = vmatmul.mubr.bf16.gmra.mrb[0].mxu0 %v2222
        %v3605 = vpop.f32.mrb[0].mxu0
        %v3606 = vadd.f32 %v3445, %v3605
        %v3607 = vpop.f32.mrb[0].mxu0
        %v3608 = vpop.f32.mrb[0].mxu0
        %v3609 = vadd.f32 %v3448, %v3608
        %v3610 = vpop.f32.mrb[0].mxu0
        %3611 = vmatprep.mubr.bf16.mxu0 0
        %3612 = vmatmul.mubr.bf16.gmra.mrb[0].mxu0 %v2231
        %v3613 = vpop.f32.mrb[0].mxu0
        %v3614 = vadd.f32 %v3453, %v3613
        %v3615 = vpop.f32.mrb[0].mxu0
        %v3616 = vpop.f32.mrb[0].mxu0
        %v3617 = vadd.f32 %v3456, %v3616
        %v3618 = vpop.f32.mrb[0].mxu0
        %3619 = vmatprep.mubr.bf16.mxu0 0
        %3620 = vmatmul.mubr.bf16.gmra.mrb[0].mxu0 %v2240
        %v3621 = vpop.f32.mrb[0].mxu0
        %v3622 = vadd.f32 %v3461, %v3621
        %v3623 = vpop.f32.mrb[0].mxu0
        %v3624 = vpop.f32.mrb[0].mxu0
        %v3625 = vadd.f32 %v3464, %v3624
        %v3626 = vpop.f32.mrb[0].mxu0
        %3627 = vmatprep.mubr.bf16.mxu0 0
        %3628 = vmatmul.mubr.bf16.gmra.mrb[0].mxu0 %v2249
        %v3629 = vpop.f32.mrb[0].mxu0
        %v3630 = vadd.f32 %v3469, %v3629
        %v3631 = vpop.f32.mrb[0].mxu0
        %v3632 = vpop.f32.mrb[0].mxu0
        %v3633 = vadd.f32 %v3472, %v3632
        %v3634 = vpop.f32.mrb[0].mxu0
        %3635 = vmatprep.mubr.bf16.mxu0 0
        %3636 = vmatmul.mubr.bf16.gmra.mrb[0].mxu0 %v2258
        %v3637 = vpop.f32.mrb[0].mxu0
        %v3638 = vadd.f32 %v3477, %v3637
        %v3639 = vpop.f32.mrb[0].mxu0
        %v3640 = vpop.f32.mrb[0].mxu0
        %v3641 = vadd.f32 %v3480, %v3640
        %v3642 = vpop.f32.mrb[0].mxu0
        %3643 = vmatprep.mubr.bf16.mxu0 0
        %3644 = vmatmul.mubr.bf16.gmra.mrb[0].mxu0 %v2267
        %v3645 = vpop.f32.mrb[0].mxu0
        %v3646 = vadd.f32 %v3485, %v3645
        %v3647 = vpop.f32.mrb[0].mxu0
        %v3648 = vpop.f32.mrb[0].mxu0
        %v3649 = vadd.f32 %v3488, %v3648
        %v3650 = vpop.f32.mrb[0].mxu0
        %3651 = vmatprep.mubr.bf16.mxu0 0
        %3652 = vmatmul.mubr.bf16.gmra.mrb[0].mxu0 %v2276
        %v3653 = vpop.f32.mrb[0].mxu0
        %v3654 = vadd.f32 %v3493, %v3653
        %v3655 = vpop.f32.mrb[0].mxu0
        %v3656 = vpop.f32.mrb[0].mxu0
        %v3657 = vadd.f32 %v3496, %v3656
        %v3658 = vpop.f32.mrb[0].mxu0
        %3659 = vmatprep.mubr.bf16.mxu0 0
        %3660 = vmatmul.mubr.bf16.gmra.mrb[0].mxu0 %v2285
        %v3661 = vpop.f32.mrb[0].mxu0
        %v3662 = vadd.f32 %v3501, %v3661
        %v3663 = vpop.f32.mrb[0].mxu0
        %v3664 = vpop.f32.mrb[0].mxu0
        %v3665 = vadd.f32 %v3504, %v3664
        %v3666 = vpop.f32.mrb[0].mxu0
        %3667 = vmatprep.mubr.bf16.mxu0 0
        %3668 = vmatmul.mubr.bf16.gmra.mrb[0].mxu0 %v2294
        %v3669 = vpop.f32.mrb[0].mxu0
        %v3670 = vadd.f32 %v3509, %v3669
        %v3671 = vpop.f32.mrb[0].mxu0
        %v3672 = vpop.f32.mrb[0].mxu0
        %v3673 = vadd.f32 %v3512, %v3672
        %v3674 = vpop.f32.mrb[0].mxu0
        %3675 = vdwg.mxu0
        %v3676 = vpack.c.bf16 %v3553, %v3550
        %v3677 = vpack.c.bf16 %v3561, %v3558
        %v3678 = vpack.c.bf16 %v3569, %v3566
        %v3679 = vpack.c.bf16 %v3577, %v3574
        %v3680 = vpack.c.bf16 %v3585, %v3582
        %v3681 = vpack.c.bf16 %v3593, %v3590
        %v3682 = vpack.c.bf16 %v3601, %v3598
        %v3683 = vpack.c.bf16 %v3609, %v3606
        %v3684 = vpack.c.bf16 %v3617, %v3614
        %v3685 = vpack.c.bf16 %v3625, %v3622
        %v3686 = vpack.c.bf16 %v3633, %v3630
        %v3687 = vpack.c.bf16 %v3641, %v3638
        %v3688 = vpack.c.bf16 %v3649, %v3646
        %v3689 = vpack.c.bf16 %v3657, %v3654
        %v3690 = vpack.c.bf16 %v3665, %v3662
        %v3691 = vpack.c.bf16 %v3673, %v3670
        %v3708 = vunpack.c.l.b16 %v3676
        %v3709 = vunpack.c.h.b16 %v3676
        %v3710 = vunpack.c.l.b16 %v3677
        %v3711 = vunpack.c.h.b16 %v3677
        %v3712 = vunpack.c.l.b16 %v3678
        %v3713 = vunpack.c.h.b16 %v3678
        %v3714 = vunpack.c.l.b16 %v3679
        %v3715 = vunpack.c.h.b16 %v3679
        %v3716 = vunpack.c.l.b16 %v3680
        %v3717 = vunpack.c.h.b16 %v3680
        %v3718 = vunpack.c.l.b16 %v3681
        %v3719 = vunpack.c.h.b16 %v3681
        %v3720 = vunpack.c.l.b16 %v3682
        %v3721 = vunpack.c.h.b16 %v3682
        %v3722 = vunpack.c.l.b16 %v3683
        %v3723 = vunpack.c.h.b16 %v3683
        %v3724 = vunpack.c.l.b16 %v3684
        %v3725 = vunpack.c.h.b16 %v3684
        %v3726 = vunpack.c.l.b16 %v3685
        %v3727 = vunpack.c.h.b16 %v3685
        %v3728 = vunpack.c.l.b16 %v3686
        %v3729 = vunpack.c.h.b16 %v3686
        %v3730 = vunpack.c.l.b16 %v3687
        %v3731 = vunpack.c.h.b16 %v3687
        %v3732 = vunpack.c.l.b16 %v3688
        %v3733 = vunpack.c.h.b16 %v3688
        %v3734 = vunpack.c.l.b16 %v3689
        %v3735 = vunpack.c.h.b16 %v3689
        %v3736 = vunpack.c.l.b16 %v3690
        %v3737 = vunpack.c.h.b16 %v3690
        %v3738 = vunpack.c.l.b16 %v3691
        %v3739 = vunpack.c.h.b16 %v3691
        %v3740 = vpack.c.b16 %v3708, %v3708
        %v3741 = vpack.c.b16 %v3709, %v3709
        %v3742 = vpack.c.b16 %v3710, %v3710
        %v3743 = vpack.c.b16 %v3711, %v3711
        %v3744 = vpack.c.b16 %v3712, %v3712
        %v3745 = vpack.c.b16 %v3713, %v3713
        %v3746 = vpack.c.b16 %v3714, %v3714
        %v3747 = vpack.c.b16 %v3715, %v3715
        %v3748 = vpack.c.b16 %v3716, %v3716
        %v3749 = vpack.c.b16 %v3717, %v3717
        %v3750 = vpack.c.b16 %v3718, %v3718
        %v3751 = vpack.c.b16 %v3719, %v3719
        %v3752 = vpack.c.b16 %v3720, %v3720
        %v3753 = vpack.c.b16 %v3721, %v3721
        %v3754 = vpack.c.b16 %v3722, %v3722
        %v3755 = vpack.c.b16 %v3723, %v3723
        %v3756 = vpack.c.b16 %v3724, %v3724
        %v3757 = vpack.c.b16 %v3725, %v3725
        %v3758 = vpack.c.b16 %v3726, %v3726
        %v3759 = vpack.c.b16 %v3727, %v3727
        %v3760 = vpack.c.b16 %v3728, %v3728
        %v3761 = vpack.c.b16 %v3729, %v3729
        %v3762 = vpack.c.b16 %v3730, %v3730
        %v3763 = vpack.c.b16 %v3731, %v3731
        %v3764 = vpack.c.b16 %v3732, %v3732
        %v3765 = vpack.c.b16 %v3733, %v3733
        %v3766 = vpack.c.b16 %v3734, %v3734
        %v3767 = vpack.c.b16 %v3735, %v3735
        %v3768 = vpack.c.b16 %v3736, %v3736
        %v3769 = vpack.c.b16 %v3737, %v3737
        %v3770 = vpack.c.b16 %v3738, %v3738
        %v3771 = vpack.c.b16 %v3739, %v3739
        %3804 = vst [vmem:[%s288] sm:$0xf] %v3740
        %3805 = vst [vmem:[%s288 + $0x4] sm:$0xf] %v3741
        %3806 = vst [vmem:[%s288 + $0x8] sm:$0xf] %v3742
        %3807 = vst [vmem:[%s288 + $0xc] sm:$0xf] %v3743
        %3808 = vst [vmem:[%s288 + $0x10] sm:$0xf] %v3744
        %3809 = vst [vmem:[%s288 + $0x14] sm:$0xf] %v3745
        %3810 = vst [vmem:[%s288 + $0x18] sm:$0xf] %v3746
        %3811 = vst [vmem:[%s288 + $0x1c] sm:$0xf] %v3747
        %3812 = vst [vmem:[%s288 + $0x20] sm:$0xf] %v3748
        %3813 = vst [vmem:[%s288 + $0x24] sm:$0xf] %v3749
        %3814 = vst [vmem:[%s288 + $0x28] sm:$0xf] %v3750
        %3815 = vst [vmem:[%s288 + $0x2c] sm:$0xf] %v3751
        %3816 = vst [vmem:[%s288 + $0x30] sm:$0xf] %v3752
        %3817 = vst [vmem:[%s288 + $0x34] sm:$0xf] %v3753
        %3818 = vst [vmem:[%s288 + $0x38] sm:$0xf] %v3754
        %3819 = vst [vmem:[%s288 + $0x3c] sm:$0xf] %v3755
        %3820 = vst [vmem:[%s288 + $0x40] sm:$0xf] %v3756
        %3821 = vst [vmem:[%s288 + $0x44] sm:$0xf] %v3757
        %3822 = vst [vmem:[%s288 + $0x48] sm:$0xf] %v3758
        %3823 = vst [vmem:[%s288 + $0x4c] sm:$0xf] %v3759
        %3824 = vst [vmem:[%s288 + $0x50] sm:$0xf] %v3760
        %3825 = vst [vmem:[%s288 + $0x54] sm:$0xf] %v3761
        %3826 = vst [vmem:[%s288 + $0x58] sm:$0xf] %v3762
        %3827 = vst [vmem:[%s288 + $0x5c] sm:$0xf] %v3763
        %3828 = vst [vmem:[%s288 + $0x60] sm:$0xf] %v3764
        %3829 = vst [vmem:[%s288 + $0x64] sm:$0xf] %v3765
        %3830 = vst [vmem:[%s288 + $0x68] sm:$0xf] %v3766
        %3831 = vst [vmem:[%s288 + $0x6c] sm:$0xf] %v3767
        %3832 = vst [vmem:[%s288 + $0x70] sm:$0xf] %v3768
        %3833 = vst [vmem:[%s288 + $0x74] sm:$0xf] %v3769
        %3834 = vst [vmem:[%s288 + $0x78] sm:$0xf] %v3770
        %3835 = vst [vmem:[%s288 + $0x7c] sm:$0xf] %v3771
        %v3836 = vadd.f32 %v3550, %v3553
        %v3837 = vadd.f32 %v3836, %v3558
        %v3838 = vadd.f32 %v3837, %v3561
        %v3839 = vadd.f32 %v3838, %v3566
        %v3840 = vadd.f32 %v3839, %v3569
        %v3841 = vadd.f32 %v3840, %v3574
        %v3842 = vadd.f32 %v3841, %v3577
        %v3843 = vadd.f32 %v3842, %v3582
        %v3844 = vadd.f32 %v3843, %v3585
        %v3845 = vadd.f32 %v3844, %v3590
        %v3846 = vadd.f32 %v3845, %v3593
        %v3847 = vadd.f32 %v3846, %v3598
        %v3848 = vadd.f32 %v3847, %v3601
        %v3849 = vadd.f32 %v3848, %v3606
        %v3850 = vadd.f32 %v3849, %v3609
        %v3851 = vadd.f32 %v3850, %v3614
        %v3852 = vadd.f32 %v3851, %v3617
        %v3853 = vadd.f32 %v3852, %v3622
        %v3854 = vadd.f32 %v3853, %v3625
        %v3855 = vadd.f32 %v3854, %v3630
        %v3856 = vadd.f32 %v3855, %v3633
        %v3857 = vadd.f32 %v3856, %v3638
        %v3858 = vadd.f32 %v3857, %v3641
        %v3859 = vadd.f32 %v3858, %v3646
        %v3860 = vadd.f32 %v3859, %v3649
        %v3861 = vadd.f32 %v3860, %v3654
        %v3862 = vadd.f32 %v3861, %v3657
        %v3863 = vadd.f32 %v3862, %v3662
        %v3864 = vadd.f32 %v3863, %v3665
        %v3865 = vadd.f32 %v3864, %v3670
        %v3866 = vadd.f32 %v3865, %v3673
        %v3867 = vrot.slane %v3866, 4
        %v3868 = vadd.f32 %v3866, %v3867
        %v3869 = vrot.slane %v3868, 2
        %v3870 = vadd.f32 %v3868, %v3869
        %v3871 = vrot.slane %v3870, 1
        %v3872 = vadd.f32 %v3870, %v3871
        %3873 = vst [vmem:[%s294] sm:$0x1] %v3872
        %v3874 = vmul.f32 %v3550, %v3550
        %v3875 = vmul.f32 %v3553, %v3553
        %v3876 = vmul.f32 %v3558, %v3558
        %v3877 = vmul.f32 %v3561, %v3561
        %v3878 = vmul.f32 %v3566, %v3566
        %v3879 = vmul.f32 %v3569, %v3569
        %v3880 = vmul.f32 %v3574, %v3574
        %v3881 = vmul.f32 %v3577, %v3577
        %v3882 = vmul.f32 %v3582, %v3582
        %v3883 = vmul.f32 %v3585, %v3585
        %v3884 = vmul.f32 %v3590, %v3590
        %v3885 = vmul.f32 %v3593, %v3593
        %v3886 = vmul.f32 %v3598, %v3598
        %v3887 = vmul.f32 %v3601, %v3601
        %v3888 = vmul.f32 %v3606, %v3606
        %v3889 = vmul.f32 %v3609, %v3609
        %v3890 = vmul.f32 %v3614, %v3614
        %v3891 = vmul.f32 %v3617, %v3617
        %v3892 = vmul.f32 %v3622, %v3622
        %v3893 = vmul.f32 %v3625, %v3625
        %v3894 = vmul.f32 %v3630, %v3630
        %v3895 = vmul.f32 %v3633, %v3633
        %v3896 = vmul.f32 %v3638, %v3638
        %v3897 = vmul.f32 %v3641, %v3641
        %v3898 = vmul.f32 %v3646, %v3646
        %v3899 = vmul.f32 %v3649, %v3649
        %v3900 = vmul.f32 %v3654, %v3654
        %v3901 = vmul.f32 %v3657, %v3657
        %v3902 = vmul.f32 %v3662, %v3662
        %v3903 = vmul.f32 %v3665, %v3665
        %v3904 = vmul.f32 %v3670, %v3670
        %v3905 = vmul.f32 %v3673, %v3673
        %v3906 = vadd.f32 %v3874, %v3875
        %v3907 = vadd.f32 %v3906, %v3876
        %v3908 = vadd.f32 %v3907, %v3877
        %v3909 = vadd.f32 %v3908, %v3878
        %v3910 = vadd.f32 %v3909, %v3879
        %v3911 = vadd.f32 %v3910, %v3880
        %v3912 = vadd.f32 %v3911, %v3881
        %v3913 = vadd.f32 %v3912, %v3882
        %v3914 = vadd.f32 %v3913, %v3883
        %v3915 = vadd.f32 %v3914, %v3884
        %v3916 = vadd.f32 %v3915, %v3885
        %v3917 = vadd.f32 %v3916, %v3886
        %v3918 = vadd.f32 %v3917, %v3887
        %v3919 = vadd.f32 %v3918, %v3888
        %v3920 = vadd.f32 %v3919, %v3889
        %v3921 = vadd.f32 %v3920, %v3890
        %v3922 = vadd.f32 %v3921, %v3891
        %v3923 = vadd.f32 %v3922, %v3892
        %v3924 = vadd.f32 %v3923, %v3893
        %v3925 = vadd.f32 %v3924, %v3894
        %v3926 = vadd.f32 %v3925, %v3895
        %v3927 = vadd.f32 %v3926, %v3896
        %v3928 = vadd.f32 %v3927, %v3897
        %v3929 = vadd.f32 %v3928, %v3898
        %v3930 = vadd.f32 %v3929, %v3899
        %v3931 = vadd.f32 %v3930, %v3900
        %v3932 = vadd.f32 %v3931, %v3901
        %v3933 = vadd.f32 %v3932, %v3902
        %v3934 = vadd.f32 %v3933, %v3903
        %v3935 = vadd.f32 %v3934, %v3904
        %v3936 = vadd.f32 %v3935, %v3905
        %v3937 = vrot.slane %v3936, 4
        %v3938 = vadd.f32 %v3936, %v3937
        %v3939 = vrot.slane %v3938, 2
        %v3940 = vadd.f32 %v3938, %v3939
        %v3941 = vrot.slane %v3940, 1
        %v3942 = vadd.f32 %v3940, %v3941
        %3943 = vst [vmem:[%s300] sm:$0x1] %v3942
        %s3944 = sand.u32 %s125, 1
        %s3945 = scalar_lea.sflag [#allocation6], %s3944
        %s3946 = sand.u32 %s125, 1
        %s3947 = smul.addr %s3946, 128
        %s3948 = scalar_lea.vmem [#allocation9], %s3947
        %s3949 = sand.u32 %s28, 1
        %s3950 = scalar_lea.sflag [#allocation11], %s3949
        %s3951 = sand.u32 %s151, 1
        %s3952 = scalar_lea.vmem [#allocation10], %s3951
        %s3953 = sand.u32 %s28, 1
        %s3954 = scalar_lea.sflag [#allocation11], %s3953
        %s3955 = sand.u32 %s177, 1
        %s3956 = scalar_lea.vmem [#allocation12], %s3955
        // Predicated region
        $region45: #{tpu_custom_call.1} parent=35 // pred_check
          %p3957 = pneg %p135
        $region46: #{tpu_custom_call.1} parent=35 // pred_check_branch
          %3959 = sbr.rel (%p3957) target = $region48
        $region47: #{tpu_custom_call.1} parent=35 // pred_region
          %s3961 = ssub.s32 2048, 2048
          %3962 = vsyncadd %s3945, %s3961
          %s3963 = smul.addr %s28, 32
          %s3964 = smul.addr %s3963, 64
          %s3965 = scalar_lea.hbm %s4, %s3964
          %s3966 = sshll.u32 %s3948, 4
          %s3967 = int_to_ptr.vmem [resolvable:$true] %s3966
          %3972 = dma.vmem_to_hbm [thread:$0]  %s3967, 2048, %s3965, %s3945, 64, 64, 4
        $region48: #{tpu_custom_call.1} parent=35 // pred_fallthru
          _
        // Predicated region
        $region49: #{tpu_custom_call.1} parent=35 // pred_check
          %p3973 = pneg %p161
        $region50: #{tpu_custom_call.1} parent=35 // pred_check_branch
          %3975 = sbr.rel (%p3973) target = $region52
        $region51: #{tpu_custom_call.1} parent=35 // pred_region
          %s3977 = ssub.s32 16, 16
          %3978 = vsyncadd %s3950, %s3977
          %s3979 = smul.addr %s28, 16
          %s3980 = scalar_lea.hbm %s5, %s3979
          %s3982 = sshll.u32 %s3952, 4
          %s3983 = int_to_ptr.vmem [resolvable:$true] %s3982
          %3985 = dma.vmem_to_hbm [thread:$0]  %s3983, 16, %s3980, %s3950
        $region52: #{tpu_custom_call.1} parent=35 // pred_fallthru
          _
        // Predicated region
        $region53: #{tpu_custom_call.1} parent=35 // pred_check
          %p3986 = pneg %p187
        $region54: #{tpu_custom_call.1} parent=35 // pred_check_branch
          %3988 = sbr.rel (%p3986) target = $region56
        $region55: #{tpu_custom_call.1} parent=35 // pred_region
          %s3990 = ssub.s32 16, 16
          %3991 = vsyncadd %s3954, %s3990
          %s3992 = smul.addr %s28, 16
          %s3993 = scalar_lea.hbm %s6, %s3992
          %s3995 = sshll.u32 %s3956, 4
          %s3996 = int_to_ptr.vmem [resolvable:$true] %s3995
          %3998 = dma.vmem_to_hbm [thread:$0]  %s3996, 16, %s3993, %s3954
        $region56: #{tpu_custom_call.1} parent=35 // pred_fallthru
          _
      $region36: #{tpu_custom_call.1} parent=5 // pred_fallthru
        _
      %p3999 = scmp.le.s32.totalorder 2, %s23
      // Predicated region
      $region57: #{tpu_custom_call.1} parent=5 // pred_check
        %p4000 = pneg %p3999
      $region58: #{tpu_custom_call.1} parent=5 // pred_check_branch
        %4002 = sbr.rel (%p4000) target = $region60
      $region59: #{tpu_custom_call.1} parent=5 // pred_region
        %s4003 = ssub.s32 %s23, 2
        // Predicated region
        $region61: #{tpu_custom_call.1} parent=59 // pred_check
          %p4004 = pneg %p141
        $region62: #{tpu_custom_call.1} parent=59 // pred_check_branch
          %4006 = sbr.rel (%p4004) target = $region64
        $region63: #{tpu_custom_call.1} parent=59 // pred_region
          %s4007 = sand.u32 %s126, 1
          %s4008 = scalar_lea.sflag [#allocation6], %s4007
          %s4009 = sand.u32 %s126, 1
          %s4010 = smul.addr %s4009, 128
          %s4011 = scalar_lea.vmem [#allocation9], %s4010
          %4012 = dma.done %s4008, 2048
        $region64: #{tpu_custom_call.1} parent=59 // pred_fallthru
          _
        // Predicated region
        $region65: #{tpu_custom_call.1} parent=59 // pred_check
          %p4013 = pneg %p167
        $region66: #{tpu_custom_call.1} parent=59 // pred_check_branch
          %4015 = sbr.rel (%p4013) target = $region68
        $region67: #{tpu_custom_call.1} parent=59 // pred_region
          %s4016 = sand.u32 %s29, 1
          %s4017 = scalar_lea.sflag [#allocation11], %s4016
          %s4018 = sand.u32 %s152, 1
          %s4019 = scalar_lea.vmem [#allocation10], %s4018
          %4020 = dma.done %s4017, 16
        $region68: #{tpu_custom_call.1} parent=59 // pred_fallthru
          _
        // Predicated region
        $region69: #{tpu_custom_call.1} parent=59 // pred_check
          %p4021 = pneg %p193
        $region70: #{tpu_custom_call.1} parent=59 // pred_check_branch
          %4023 = sbr.rel (%p4021) target = $region72
        $region71: #{tpu_custom_call.1} parent=59 // pred_region
          %s4024 = sand.u32 %s29, 1
          %s4025 = scalar_lea.sflag [#allocation11], %s4024
          %s4026 = sand.u32 %s178, 1
          %s4027 = scalar_lea.vmem [#allocation12], %s4026
          %4028 = dma.done %s4025, 16
        $region72: #{tpu_custom_call.1} parent=59 // pred_fallthru
          _
      $region60: #{tpu_custom_call.1} parent=5 // pred_fallthru
        _
    $region6: #{tpu_custom_call.1} parent=1 // loop_footer
      %s27 = sadd.s32 1, %s23
    $region7: #{tpu_custom_call.1} parent=1 // loop_footer_branch
      %22 = sbr.rel target = $region3
    $region8: #{tpu_custom_call.1} parent=1 // loop_exit
      _
    %4029 = vsyncpa [#allocation5], 1
    %s4030 = scalar_lea.sflag [#allocation5], 1
    %4031 = vsyncpa %s4030, 1
    %4032 = vsyncpa [#allocation8], 1
    %4033 = vsyncpa [#allocation6], 1
    %s4034 = scalar_lea.sflag [#allocation6], 1
    %4035 = vsyncpa %s4034, 1
    %4036 = vsyncpa [#allocation11], 1
    %s4037 = scalar_lea.sflag [#allocation11], 1
    %4038 = vsyncpa %s4037, 1

</llo_original>
